<compile_context>
chip_gen: v5e
topology: v5e:2x2
jax: 0.10.0
libtpu: 0.0.40
codegen_flags: <defaults>
</compile_context>

<pallas_src>
import numpy as np
import jax
import jax.numpy as jnp
from jax.experimental import pallas as pl
from jax.experimental.pallas import tpu as pltpu

# ---- small synthetic config (matches the module's __init__ structure) ------
LATENT_NDIM = 32
SEQ_LEN = 90          # conv chain reduces length 90 -> 29 -> 9 -> 3 -> 1
N_PTS = 4
BATCH = 2
EPS = 1e-5            # nn.GroupNorm default eps
PAD = 128             # per-point block width (lane-aligned)

# (kernel_size, stride, in_ch, out_ch) for conv1..conv4
LAYERS = [
    (6, 3, 2,                LATENT_NDIM // 8),
    (5, 3, LATENT_NDIM // 8, LATENT_NDIM // 4),
    (5, 2, LATENT_NDIM // 4, LATENT_NDIM // 2),
    (3, 1, LATENT_NDIM // 2, LATENT_NDIM),
]


def _out_len(L, K, S):
    return (L - K) // S + 1


def _chain_widths():
    L = SEQ_LEN
    widths = []
    for (K, S, _, Cout) in LAYERS:
        L = _out_len(L, K, S)
        widths.append(L * Cout)
    return tuple(widths)


CNTS = _chain_widths()                      # (116, 72, 48, 32)
assert CNTS[-1] == LATENT_NDIM
assert all(c <= PAD for c in CNTS)


# ----------------------------- kernel ---------------------------------------
def embedding_kernel(x_ref, w1_ref, w2_ref, w3_ref, w4_ref,
                     a1_ref, a2_ref, a3_ref, a4_ref, o_ref):
    """x_ref: (B, S*P*2) f32.  w1: (S*P*2, P*128) bf16 block-diagonal over P.
    w2/w3: (128,128) bf16, w4: (128,32) bf16 (shared across points).
    a*: (3, width) f32 rows = [bias; gamma; beta] (zero in pad lanes).
    o_ref: (B, P*latent_ndim = 128) f32 — lane-dense output."""
    # Layer 1: one block-diagonal MXU dot absorbs the PyTorch permute.
    x = x_ref[...].astype(jnp.bfloat16)
    y_all = jnp.dot(x, w1_ref[...], preferred_element_type=jnp.float32)   # (B, P*128)

    a1 = a1_ref[...]; a2 = a2_ref[...]; a3 = a3_ref[...]; a4 = a4_ref[...]
    w2 = w2_ref[...]; w3 = w3_ref[...]; w4 = w4_ref[...]

    # Hoisted lane masks: pad lanes of each block must not pollute GN stats.
    lane = jax.lax.broadcasted_iota(jnp.int32, (1, PAD), 1)
    masks = (lane < CNTS[0], lane < CNTS[1], lane < CNTS[2], None)  # last is full

    def gn_silu(y, aux, cnt, mask):
        # GroupNorm(num_groups=1) over one (point, sample) block + SiLU, in f32.
        inv = 1.0 / float(cnt)
        mean = jnp.sum(y, axis=-1, keepdims=True) * inv
        c = y - mean
        if mask is not None:
            c = jnp.where(mask, c, 0.0)          # two-pass var, pads excluded
        var = jnp.sum(c * c, axis=-1, keepdims=True) * inv
        yn = c * (jax.lax.rsqrt(var + EPS) * aux[1:2, :]) + aux[2:3, :]
        # SiLU = y * sigmoid(y); exact reciprocal (cost invisible at this size).
        return yn * pl.reciprocal(1.0 + jnp.exp(-yn), approx=False)

    # Per-point blocks (aligned 128-lane slices); unrolled at trace time (P=4).
    blocks = []
    for p in range(N_PTS):
        yp = y_all[:, p * PAD:(p + 1) * PAD] + a1[0:1, :]
        blocks.append(gn_silu(yp, a1, CNTS[0], masks[0]))

    # Layers 2..4: shared per-point dense weights; blocks stay independent.
    for wv, av, cnt, mask in ((w2, a2, CNTS[1], masks[1]),
                              (w3, a3, CNTS[2], masks[2]),
                              (w4, a4, CNTS[3], masks[3])):
        blocks = [gn_silu(jnp.dot(blk.astype(jnp.bfloat16), wv,
                                  preferred_element_type=jnp.float32) + av[0:1, :],
                          av, cnt, mask)
                  for blk in blocks]

    # Lane-dense (B, 128) store -> unmasked vst.
    o_ref[...] = jnp.concatenate(blocks, axis=-1).astype(o_ref.dtype)


# --------------------------- parameter prep ---------------------------------
def init_params(key):
    """Deterministic synthetic params in PyTorch layout (no checkpoint)."""
    params = []
    for (K, S, Cin, Cout) in LAYERS:
        key, k1, k2 = jax.random.split(key, 3)
        bound = 1.0 / (Cin * K) ** 0.5
        w_pt = jax.random.uniform(k1, (Cout, Cin, K), jnp.float32, -bound, bound)
        b = jax.random.uniform(k2, (Cout,), jnp.float32, -bound, bound)
        gamma = jnp.ones((Cout,), jnp.float32)   # GroupNorm default affine
        beta = jnp.zeros((Cout,), jnp.float32)
        params.append((w_pt, b, gamma, beta))
    return params


def _make_aux(b, g, be, Lout, Cout, width):
    """Pack [bias; gamma; beta] tiled over positions into one (3, width) array."""
    a = np.zeros((3, width), np.float32)
    m = Lout * Cout
    a[0, :m] = np.tile(np.asarray(b, np.float32), Lout)
    a[1, :m] = np.tile(np.asarray(g, np.float32), Lout)
    a[2, :m] = np.tile(np.asarray(be, np.float32), Lout)
    return jnp.asarray(a)


def densify_params(params, seq_len=SEQ_LEN, n_pts=N_PTS):
    """One-time preprocessing (on concrete weights):
       * layer 1 -> block-diagonal dense matmul (absorbs the PyTorch permute),
         columns zero-padded so each point block is exactly 128 lanes wide;
       * layers 2-4 -> shared per-point dense matmuls with zero-padded rows/cols;
       * bias/gamma/beta packed per layer into one (3, width) array.
       Weights are stored in bf16 (review item 3)."""
    weights, auxs = [], []

    # ---- layer 1: block-diagonal over n_pts ----
    K, St, Cin, Cout = LAYERS[0]
    Lout = _out_len(seq_len, K, St)
    w_np = np.asarray(params[0][0], np.float32)                # (Cout, Cin, K)
    W1 = np.zeros((seq_len * n_pts * Cin, n_pts * PAD), np.float32)
    for p in range(n_pts):
        for lo in range(Lout):
            for k in range(K):
                li = lo * St + k
                r = (li * n_pts + p) * Cin                     # x[b, li, p, c]
                c = p * PAD + lo * Cout
                W1[r:r + Cin, c:c + Cout] = w_np[:, :, k].T    # (Cin, Cout) block
    weights.append(jnp.asarray(W1).astype(jnp.bfloat16))
    auxs.append(_make_aux(params[0][1], params[0][2], params[0][3], Lout, Cout, PAD))
    Lin = Lout

    # ---- layers 2..4: shared per-point dense weights ----
    for idx in range(1, len(LAYERS)):
        K, St, Cin, Cout = LAYERS[idx]
        w, b, g, be = params[idx]
        Lout = _out_len(Lin, K, St)
        width_out = PAD if idx < len(LAYERS) - 1 else Lout * Cout   # last layer unpadded
        w_np = np.asarray(w, np.float32)
        W = np.zeros((PAD, width_out), np.float32)
        for lo in range(Lout):
            for k in range(K):
                li = lo * St + k
                W[li * Cin:(li + 1) * Cin, lo * Cout:(lo + 1) * Cout] = w_np[:, :, k].T
        weights.append(jnp.asarray(W).astype(jnp.bfloat16))
        auxs.append(_make_aux(b, g, be, Lout, Cout, width_out))
        Lin = Lout

    return weights, auxs


# ------------------------------- wrapper -------------------------------------
def embedding_forward(x, weights, auxs):
    """x: (B, seq_len, n_pts, 2)  ->  (B, n_pts, latent_ndim).
    Works for any B (stack batches into one call to amortize launch cost)."""
    B, S, P, C = x.shape
    assert S == SEQ_LEN and P == N_PTS and C == 2
    # Free reshape (no transpose); the layer-1 block-diagonal weight absorbs
    # the PyTorch permute(0, 2, 3, 1).
    x2d = x.reshape(B, S * P * C).astype(jnp.float32)

    vmem = pl.BlockSpec(memory_space=pltpu.MemorySpace.VMEM)
    out = pl.pallas_call(
        embedding_kernel,
        out_shape=jax.ShapeDtypeStruct((B, P * LATENT_NDIM), jnp.float32),
        in_specs=[vmem] * (1 + len(weights) + len(auxs)),   # 9 operands
        out_specs=vmem,
    )(x2d, *weights, *auxs)

    return out.reshape(B, P, LATENT_NDIM)                   # free reshape


# ------------------------------ reference ------------------------------------
def reference_forward(x, params):
    """Pure-JAX reference in the original PyTorch layout, with the same bf16
    weight/activation quantization as the kernel (so only accumulation-order
    and sigmoid-impl differences remain)."""
    B, S, P, C = x.shape
    h = jnp.transpose(x, (0, 2, 3, 1)).reshape(B * P, C, S)
    for (K, St, _, Cout), (w, b, g, be) in zip(LAYERS, params):
        Lin = h.shape[-1]
        Lout = _out_len(Lin, K, St)
        hq = h.astype(jnp.bfloat16).astype(jnp.float32)
        wq = w.astype(jnp.bfloat16).astype(jnp.float32)
        win = jnp.stack([hq[:, :, lo * St: lo * St + K] for lo in range(Lout)],
                        axis=1)                               # (N, Lout, Cin, K)
        y = jnp.einsum("nlck,ock->nol", win, wq) + b[None, :, None]
        mean = jnp.mean(y, axis=(1, 2), keepdims=True)
        var = jnp.mean((y - mean) ** 2, axis=(1, 2), keepdims=True)
        y = (y - mean) * jax.lax.rsqrt(var + EPS) * g[None, :, None] + be[None, :, None]
        h = y * jax.nn.sigmoid(y)
    return h.reshape(B, P, LATENT_NDIM)


if __name__ == "__main__":
    key = jax.random.PRNGKey(0)
    kx, kp = jax.random.split(key)
    x = jax.random.normal(kx, (BATCH, SEQ_LEN, N_PTS, 2), dtype=jnp.float32)
    params = init_params(kp)
    weights, auxs = densify_params(params)

    out = embedding_forward(x, weights, auxs)
    out = jax.block_until_ready(out)

    assert out.shape == (BATCH, N_PTS, LATENT_NDIM), out.shape
    assert bool(jnp.all(jnp.isfinite(out)))

    ref = reference_forward(x, params)
    max_err = float(jnp.max(jnp.abs(out - ref)))
    assert max_err < 1e-2, f"max abs error vs reference: {max_err}"

    print("KERNEL_OK")
</pallas_src>

<mosaic_0001>
module attributes {stable_mosaic.version = 11 : i64} {
  func.func @embedding_kernel(%arg0: memref<2x720xf32, #tpu.memory_space<vmem>>, %arg1: memref<720x512xbf16, #tpu.memory_space<vmem>>, %arg2: memref<128x128xbf16, #tpu.memory_space<vmem>>, %arg3: memref<128x128xbf16, #tpu.memory_space<vmem>>, %arg4: memref<128x32xbf16, #tpu.memory_space<vmem>>, %arg5: memref<3x128xf32, #tpu.memory_space<vmem>>, %arg6: memref<3x128xf32, #tpu.memory_space<vmem>>, %arg7: memref<3x128xf32, #tpu.memory_space<vmem>>, %arg8: memref<3x32xf32, #tpu.memory_space<vmem>>, %arg9: memref<2x128xf32, #tpu.memory_space<vmem>>) attributes {dimension_semantics = [], scalar_prefetch = 0 : i64, scratch_operands = 0 : i64, tpu.core_type = #tpu.core_type<tc>} {
    %c0 = arith.constant 0 : index
    %c0_0 = arith.constant 0 : index
    %0 = vector.load %arg0[%c0, %c0_0] : memref<2x720xf32, #tpu.memory_space<vmem>>, vector<2x720xf32>
    %1 = arith.truncf %0 : vector<2x720xf32> to vector<2x720xbf16>
    %c0_1 = arith.constant 0 : index
    %c0_2 = arith.constant 0 : index
    %2 = vector.load %arg1[%c0_1, %c0_2] : memref<720x512xbf16, #tpu.memory_space<vmem>>, vector<720x512xbf16>
    %cst = arith.constant dense<0.000000e+00> : vector<2x512xf32>
    %3 = tpu.matmul %1, %2, %cst {dimension_numbers = #tpu.dot_dimension_numbers<[1], [0], [0], [1], [0, 0, 1, 1], [], []>} : vector<2x720xbf16>, vector<720x512xbf16>, vector<2x512xf32> -> vector<2x512xf32>
    %c0_3 = arith.constant 0 : index
    %c0_4 = arith.constant 0 : index
    %4 = vector.load %arg5[%c0_3, %c0_4] : memref<3x128xf32, #tpu.memory_space<vmem>>, vector<3x128xf32>
    %c0_5 = arith.constant 0 : index
    %c0_6 = arith.constant 0 : index
    %5 = vector.load %arg6[%c0_5, %c0_6] : memref<3x128xf32, #tpu.memory_space<vmem>>, vector<3x128xf32>
    %c0_7 = arith.constant 0 : index
    %c0_8 = arith.constant 0 : index
    %6 = vector.load %arg7[%c0_7, %c0_8] : memref<3x128xf32, #tpu.memory_space<vmem>>, vector<3x128xf32>
    %c0_9 = arith.constant 0 : index
    %c0_10 = arith.constant 0 : index
    %7 = vector.load %arg8[%c0_9, %c0_10] : memref<3x32xf32, #tpu.memory_space<vmem>>, vector<3x32xf32>
    %c0_11 = arith.constant 0 : index
    %c0_12 = arith.constant 0 : index
    %8 = vector.load %arg2[%c0_11, %c0_12] : memref<128x128xbf16, #tpu.memory_space<vmem>>, vector<128x128xbf16>
    %c0_13 = arith.constant 0 : index
    %c0_14 = arith.constant 0 : index
    %9 = vector.load %arg3[%c0_13, %c0_14] : memref<128x128xbf16, #tpu.memory_space<vmem>>, vector<128x128xbf16>
    %c0_15 = arith.constant 0 : index
    %c0_16 = arith.constant 0 : index
    %10 = vector.load %arg4[%c0_15, %c0_16] : memref<128x32xbf16, #tpu.memory_space<vmem>>, vector<128x32xbf16>
    %11 = tpu.iota {dimensions = array<i32: 1>} : vector<1x128xi32>
    %c116_i32 = arith.constant 116 : i32
    %12 = vector.broadcast %c116_i32 : i32 to vector<1x128xi32>
    %13 = arith.cmpi slt, %11, %12 : vector<1x128xi32>
    %c72_i32 = arith.constant 72 : i32
    %14 = vector.broadcast %c72_i32 : i32 to vector<1x128xi32>
    %15 = arith.cmpi slt, %11, %14 : vector<1x128xi32>
    %c48_i32 = arith.constant 48 : i32
    %16 = vector.broadcast %c48_i32 : i32 to vector<1x128xi32>
    %17 = arith.cmpi slt, %11, %16 : vector<1x128xi32>
    %18 = vector.extract_strided_slice %3 {offsets = [0, 0], sizes = [2, 128], strides = [1, 1]} : vector<2x512xf32> to vector<2x128xf32>
    %19 = vector.extract_strided_slice %4 {offsets = [0, 0], sizes = [1, 128], strides = [1, 1]} : vector<3x128xf32> to vector<1x128xf32>
    %20 = vector.broadcast %19 : vector<1x128xf32> to vector<2x128xf32>
    %21 = arith.addf %18, %20 : vector<2x128xf32>
    %cst_17 = arith.constant dense<0.000000e+00> : vector<2xf32>
    %22 = vector.multi_reduction <add>, %21, %cst_17 [1] : vector<2x128xf32> to vector<2xf32>
    %23 = vector.shape_cast %22 : vector<2xf32> to vector<2x1xf32>
    %cst_18 = arith.constant 8.620690e-03 : f32
    %24 = vector.broadcast %cst_18 : f32 to vector<2x1xf32>
    %25 = arith.mulf %23, %24 : vector<2x1xf32>
    %26 = vector.broadcast %25 : vector<2x1xf32> to vector<2x128xf32>
    %27 = arith.subf %21, %26 : vector<2x128xf32>
    %cst_19 = arith.constant 0.000000e+00 : f32
    %28 = vector.shape_cast %13 : vector<1x128xi1> to vector<1x128xi1>
    %29 = vector.broadcast %28 : vector<1x128xi1> to vector<2x128xi1>
    %30 = vector.broadcast %cst_19 : f32 to vector<2x128xf32>
    %31 = arith.select %29, %27, %30 : vector<2x128xi1>, vector<2x128xf32>
    %32 = arith.mulf %31, %31 : vector<2x128xf32>
    %cst_20 = arith.constant dense<0.000000e+00> : vector<2xf32>
    %33 = vector.multi_reduction <add>, %32, %cst_20 [1] : vector<2x128xf32> to vector<2xf32>
    %34 = vector.shape_cast %33 : vector<2xf32> to vector<2x1xf32>
    %cst_21 = arith.constant 8.620690e-03 : f32
    %35 = vector.broadcast %cst_21 : f32 to vector<2x1xf32>
    %36 = arith.mulf %34, %35 : vector<2x1xf32>
    %cst_22 = arith.constant 9.99999974E-6 : f32
    %37 = vector.broadcast %cst_22 : f32 to vector<2x1xf32>
    %38 = arith.addf %36, %37 : vector<2x1xf32>
    %39 = math.rsqrt %38 : vector<2x1xf32>
    %40 = vector.extract_strided_slice %4 {offsets = [1, 0], sizes = [1, 128], strides = [1, 1]} : vector<3x128xf32> to vector<1x128xf32>
    %41 = vector.broadcast %39 : vector<2x1xf32> to vector<2x128xf32>
    %42 = vector.broadcast %40 : vector<1x128xf32> to vector<2x128xf32>
    %43 = arith.mulf %41, %42 : vector<2x128xf32>
    %44 = arith.mulf %31, %43 : vector<2x128xf32>
    %45 = vector.extract_strided_slice %4 {offsets = [2, 0], sizes = [1, 128], strides = [1, 1]} : vector<3x128xf32> to vector<1x128xf32>
    %46 = vector.broadcast %45 : vector<1x128xf32> to vector<2x128xf32>
    %47 = arith.addf %44, %46 : vector<2x128xf32>
    %cst_23 = arith.constant 0.000000e+00 : f32
    %48 = vector.broadcast %cst_23 : f32 to vector<2x128xf32>
    %49 = arith.subf %48, %47 : vector<2x128xf32>
    %50 = math.exp %49 : vector<2x128xf32>
    %cst_24 = arith.constant 1.000000e+00 : f32
    %51 = vector.broadcast %cst_24 : f32 to vector<2x128xf32>
    %52 = arith.addf %51, %50 : vector<2x128xf32>
    %53 = tpu.reciprocal %52 : vector<2x128xf32> -> vector<2x128xf32>
    %54 = arith.mulf %47, %53 : vector<2x128xf32>
    %55 = vector.extract_strided_slice %3 {offsets = [0, 128], sizes = [2, 128], strides = [1, 1]} : vector<2x512xf32> to vector<2x128xf32>
    %56 = vector.extract_strided_slice %4 {offsets = [0, 0], sizes = [1, 128], strides = [1, 1]} : vector<3x128xf32> to vector<1x128xf32>
    %57 = vector.broadcast %56 : vector<1x128xf32> to vector<2x128xf32>
    %58 = arith.addf %55, %57 : vector<2x128xf32>
    %cst_25 = arith.constant dense<0.000000e+00> : vector<2xf32>
    %59 = vector.multi_reduction <add>, %58, %cst_25 [1] : vector<2x128xf32> to vector<2xf32>
    %60 = vector.shape_cast %59 : vector<2xf32> to vector<2x1xf32>
    %cst_26 = arith.constant 8.620690e-03 : f32
    %61 = vector.broadcast %cst_26 : f32 to vector<2x1xf32>
    %62 = arith.mulf %60, %61 : vector<2x1xf32>
    %63 = vector.broadcast %62 : vector<2x1xf32> to vector<2x128xf32>
    %64 = arith.subf %58, %63 : vector<2x128xf32>
    %cst_27 = arith.constant 0.000000e+00 : f32
    %65 = vector.shape_cast %13 : vector<1x128xi1> to vector<1x128xi1>
    %66 = vector.broadcast %65 : vector<1x128xi1> to vector<2x128xi1>
    %67 = vector.broadcast %cst_27 : f32 to vector<2x128xf32>
    %68 = arith.select %66, %64, %67 : vector<2x128xi1>, vector<2x128xf32>
    %69 = arith.mulf %68, %68 : vector<2x128xf32>
    %cst_28 = arith.constant dense<0.000000e+00> : vector<2xf32>
    %70 = vector.multi_reduction <add>, %69, %cst_28 [1] : vector<2x128xf32> to vector<2xf32>
    %71 = vector.shape_cast %70 : vector<2xf32> to vector<2x1xf32>
    %cst_29 = arith.constant 8.620690e-03 : f32
    %72 = vector.broadcast %cst_29 : f32 to vector<2x1xf32>
    %73 = arith.mulf %71, %72 : vector<2x1xf32>
    %cst_30 = arith.constant 9.99999974E-6 : f32
    %74 = vector.broadcast %cst_30 : f32 to vector<2x1xf32>
    %75 = arith.addf %73, %74 : vector<2x1xf32>
    %76 = math.rsqrt %75 : vector<2x1xf32>
    %77 = vector.extract_strided_slice %4 {offsets = [1, 0], sizes = [1, 128], strides = [1, 1]} : vector<3x128xf32> to vector<1x128xf32>
    %78 = vector.broadcast %76 : vector<2x1xf32> to vector<2x128xf32>
    %79 = vector.broadcast %77 : vector<1x128xf32> to vector<2x128xf32>
    %80 = arith.mulf %78, %79 : vector<2x128xf32>
    %81 = arith.mulf %68, %80 : vector<2x128xf32>
    %82 = vector.extract_strided_slice %4 {offsets = [2, 0], sizes = [1, 128], strides = [1, 1]} : vector<3x128xf32> to vector<1x128xf32>
    %83 = vector.broadcast %82 : vector<1x128xf32> to vector<2x128xf32>
    %84 = arith.addf %81, %83 : vector<2x128xf32>
    %cst_31 = arith.constant 0.000000e+00 : f32
    %85 = vector.broadcast %cst_31 : f32 to vector<2x128xf32>
    %86 = arith.subf %85, %84 : vector<2x128xf32>
    %87 = math.exp %86 : vector<2x128xf32>
    %cst_32 = arith.constant 1.000000e+00 : f32
    %88 = vector.broadcast %cst_32 : f32 to vector<2x128xf32>
    %89 = arith.addf %88, %87 : vector<2x128xf32>
    %90 = tpu.reciprocal %89 : vector<2x128xf32> -> vector<2x128xf32>
    %91 = arith.mulf %84, %90 : vector<2x128xf32>
    %92 = vector.extract_strided_slice %3 {offsets = [0, 256], sizes = [2, 128], strides = [1, 1]} : vector<2x512xf32> to vector<2x128xf32>
    %93 = vector.extract_strided_slice %4 {offsets = [0, 0], sizes = [1, 128], strides = [1, 1]} : vector<3x128xf32> to vector<1x128xf32>
    %94 = vector.broadcast %93 : vector<1x128xf32> to vector<2x128xf32>
    %95 = arith.addf %92, %94 : vector<2x128xf32>
    %cst_33 = arith.constant dense<0.000000e+00> : vector<2xf32>
    %96 = vector.multi_reduction <add>, %95, %cst_33 [1] : vector<2x128xf32> to vector<2xf32>
    %97 = vector.shape_cast %96 : vector<2xf32> to vector<2x1xf32>
    %cst_34 = arith.constant 8.620690e-03 : f32
    %98 = vector.broadcast %cst_34 : f32 to vector<2x1xf32>
    %99 = arith.mulf %97, %98 : vector<2x1xf32>
    %100 = vector.broadcast %99 : vector<2x1xf32> to vector<2x128xf32>
    %101 = arith.subf %95, %100 : vector<2x128xf32>
    %cst_35 = arith.constant 0.000000e+00 : f32
    %102 = vector.shape_cast %13 : vector<1x128xi1> to vector<1x128xi1>
    %103 = vector.broadcast %102 : vector<1x128xi1> to vector<2x128xi1>
    %104 = vector.broadcast %cst_35 : f32 to vector<2x128xf32>
    %105 = arith.select %103, %101, %104 : vector<2x128xi1>, vector<2x128xf32>
    %106 = arith.mulf %105, %105 : vector<2x128xf32>
    %cst_36 = arith.constant dense<0.000000e+00> : vector<2xf32>
    %107 = vector.multi_reduction <add>, %106, %cst_36 [1] : vector<2x128xf32> to vector<2xf32>
    %108 = vector.shape_cast %107 : vector<2xf32> to vector<2x1xf32>
    %cst_37 = arith.constant 8.620690e-03 : f32
    %109 = vector.broadcast %cst_37 : f32 to vector<2x1xf32>
    %110 = arith.mulf %108, %109 : vector<2x1xf32>
    %cst_38 = arith.constant 9.99999974E-6 : f32
    %111 = vector.broadcast %cst_38 : f32 to vector<2x1xf32>
    %112 = arith.addf %110, %111 : vector<2x1xf32>
    %113 = math.rsqrt %112 : vector<2x1xf32>
    %114 = vector.extract_strided_slice %4 {offsets = [1, 0], sizes = [1, 128], strides = [1, 1]} : vector<3x128xf32> to vector<1x128xf32>
    %115 = vector.broadcast %113 : vector<2x1xf32> to vector<2x128xf32>
    %116 = vector.broadcast %114 : vector<1x128xf32> to vector<2x128xf32>
    %117 = arith.mulf %115, %116 : vector<2x128xf32>
    %118 = arith.mulf %105, %117 : vector<2x128xf32>
    %119 = vector.extract_strided_slice %4 {offsets = [2, 0], sizes = [1, 128], strides = [1, 1]} : vector<3x128xf32> to vector<1x128xf32>
    %120 = vector.broadcast %119 : vector<1x128xf32> to vector<2x128xf32>
    %121 = arith.addf %118, %120 : vector<2x128xf32>
    %cst_39 = arith.constant 0.000000e+00 : f32
    %122 = vector.broadcast %cst_39 : f32 to vector<2x128xf32>
    %123 = arith.subf %122, %121 : vector<2x128xf32>
    %124 = math.exp %123 : vector<2x128xf32>
    %cst_40 = arith.constant 1.000000e+00 : f32
    %125 = vector.broadcast %cst_40 : f32 to vector<2x128xf32>
    %126 = arith.addf %125, %124 : vector<2x128xf32>
    %127 = tpu.reciprocal %126 : vector<2x128xf32> -> vector<2x128xf32>
    %128 = arith.mulf %121, %127 : vector<2x128xf32>
    %129 = vector.extract_strided_slice %3 {offsets = [0, 384], sizes = [2, 128], strides = [1, 1]} : vector<2x512xf32> to vector<2x128xf32>
    %130 = vector.extract_strided_slice %4 {offsets = [0, 0], sizes = [1, 128], strides = [1, 1]} : vector<3x128xf32> to vector<1x128xf32>
    %131 = vector.broadcast %130 : vector<1x128xf32> to vector<2x128xf32>
    %132 = arith.addf %129, %131 : vector<2x128xf32>
    %cst_41 = arith.constant dense<0.000000e+00> : vector<2xf32>
    %133 = vector.multi_reduction <add>, %132, %cst_41 [1] : vector<2x128xf32> to vector<2xf32>
    %134 = vector.shape_cast %133 : vector<2xf32> to vector<2x1xf32>
    %cst_42 = arith.constant 8.620690e-03 : f32
    %135 = vector.broadcast %cst_42 : f32 to vector<2x1xf32>
    %136 = arith.mulf %134, %135 : vector<2x1xf32>
    %137 = vector.broadcast %136 : vector<2x1xf32> to vector<2x128xf32>
    %138 = arith.subf %132, %137 : vector<2x128xf32>
    %cst_43 = arith.constant 0.000000e+00 : f32
    %139 = vector.shape_cast %13 : vector<1x128xi1> to vector<1x128xi1>
    %140 = vector.broadcast %139 : vector<1x128xi1> to vector<2x128xi1>
    %141 = vector.broadcast %cst_43 : f32 to vector<2x128xf32>
    %142 = arith.select %140, %138, %141 : vector<2x128xi1>, vector<2x128xf32>
    %143 = arith.mulf %142, %142 : vector<2x128xf32>
    %cst_44 = arith.constant dense<0.000000e+00> : vector<2xf32>
    %144 = vector.multi_reduction <add>, %143, %cst_44 [1] : vector<2x128xf32> to vector<2xf32>
    %145 = vector.shape_cast %144 : vector<2xf32> to vector<2x1xf32>
    %cst_45 = arith.constant 8.620690e-03 : f32
    %146 = vector.broadcast %cst_45 : f32 to vector<2x1xf32>
    %147 = arith.mulf %145, %146 : vector<2x1xf32>
    %cst_46 = arith.constant 9.99999974E-6 : f32
    %148 = vector.broadcast %cst_46 : f32 to vector<2x1xf32>
    %149 = arith.addf %147, %148 : vector<2x1xf32>
    %150 = math.rsqrt %149 : vector<2x1xf32>
    %151 = vector.extract_strided_slice %4 {offsets = [1, 0], sizes = [1, 128], strides = [1, 1]} : vector<3x128xf32> to vector<1x128xf32>
    %152 = vector.broadcast %150 : vector<2x1xf32> to vector<2x128xf32>
    %153 = vector.broadcast %151 : vector<1x128xf32> to vector<2x128xf32>
    %154 = arith.mulf %152, %153 : vector<2x128xf32>
    %155 = arith.mulf %142, %154 : vector<2x128xf32>
    %156 = vector.extract_strided_slice %4 {offsets = [2, 0], sizes = [1, 128], strides = [1, 1]} : vector<3x128xf32> to vector<1x128xf32>
    %157 = vector.broadcast %156 : vector<1x128xf32> to vector<2x128xf32>
    %158 = arith.addf %155, %157 : vector<2x128xf32>
    %cst_47 = arith.constant 0.000000e+00 : f32
    %159 = vector.broadcast %cst_47 : f32 to vector<2x128xf32>
    %160 = arith.subf %159, %158 : vector<2x128xf32>
    %161 = math.exp %160 : vector<2x128xf32>
    %cst_48 = arith.constant 1.000000e+00 : f32
    %162 = vector.broadcast %cst_48 : f32 to vector<2x128xf32>
    %163 = arith.addf %162, %161 : vector<2x128xf32>
    %164 = tpu.reciprocal %163 : vector<2x128xf32> -> vector<2x128xf32>
    %165 = arith.mulf %158, %164 : vector<2x128xf32>
    %166 = arith.truncf %54 : vector<2x128xf32> to vector<2x128xbf16>
    %cst_49 = arith.constant dense<0.000000e+00> : vector<2x128xf32>
    %167 = tpu.matmul %166, %8, %cst_49 {dimension_numbers = #tpu.dot_dimension_numbers<[1], [0], [0], [1], [0, 0, 1, 1], [], []>} : vector<2x128xbf16>, vector<128x128xbf16>, vector<2x128xf32> -> vector<2x128xf32>
    %168 = vector.extract_strided_slice %5 {offsets = [0, 0], sizes = [1, 128], strides = [1, 1]} : vector<3x128xf32> to vector<1x128xf32>
    %169 = vector.broadcast %168 : vector<1x128xf32> to vector<2x128xf32>
    %170 = arith.addf %167, %169 : vector<2x128xf32>
    %cst_50 = arith.constant dense<0.000000e+00> : vector<2xf32>
    %171 = vector.multi_reduction <add>, %170, %cst_50 [1] : vector<2x128xf32> to vector<2xf32>
    %172 = vector.shape_cast %171 : vector<2xf32> to vector<2x1xf32>
    %cst_51 = arith.constant 0.013888889 : f32
    %173 = vector.broadcast %cst_51 : f32 to vector<2x1xf32>
    %174 = arith.mulf %172, %173 : vector<2x1xf32>
    %175 = vector.broadcast %174 : vector<2x1xf32> to vector<2x128xf32>
    %176 = arith.subf %170, %175 : vector<2x128xf32>
    %cst_52 = arith.constant 0.000000e+00 : f32
    %177 = vector.shape_cast %15 : vector<1x128xi1> to vector<1x128xi1>
    %178 = vector.broadcast %177 : vector<1x128xi1> to vector<2x128xi1>
    %179 = vector.broadcast %cst_52 : f32 to vector<2x128xf32>
    %180 = arith.select %178, %176, %179 : vector<2x128xi1>, vector<2x128xf32>
    %181 = arith.mulf %180, %180 : vector<2x128xf32>
    %cst_53 = arith.constant dense<0.000000e+00> : vector<2xf32>
    %182 = vector.multi_reduction <add>, %181, %cst_53 [1] : vector<2x128xf32> to vector<2xf32>
    %183 = vector.shape_cast %182 : vector<2xf32> to vector<2x1xf32>
    %cst_54 = arith.constant 0.013888889 : f32
    %184 = vector.broadcast %cst_54 : f32 to vector<2x1xf32>
    %185 = arith.mulf %183, %184 : vector<2x1xf32>
    %cst_55 = arith.constant 9.99999974E-6 : f32
    %186 = vector.broadcast %cst_55 : f32 to vector<2x1xf32>
    %187 = arith.addf %185, %186 : vector<2x1xf32>
    %188 = math.rsqrt %187 : vector<2x1xf32>
    %189 = vector.extract_strided_slice %5 {offsets = [1, 0], sizes = [1, 128], strides = [1, 1]} : vector<3x128xf32> to vector<1x128xf32>
    %190 = vector.broadcast %188 : vector<2x1xf32> to vector<2x128xf32>
    %191 = vector.broadcast %189 : vector<1x128xf32> to vector<2x128xf32>
    %192 = arith.mulf %190, %191 : vector<2x128xf32>
    %193 = arith.mulf %180, %192 : vector<2x128xf32>
    %194 = vector.extract_strided_slice %5 {offsets = [2, 0], sizes = [1, 128], strides = [1, 1]} : vector<3x128xf32> to vector<1x128xf32>
    %195 = vector.broadcast %194 : vector<1x128xf32> to vector<2x128xf32>
    %196 = arith.addf %193, %195 : vector<2x128xf32>
    %cst_56 = arith.constant 0.000000e+00 : f32
    %197 = vector.broadcast %cst_56 : f32 to vector<2x128xf32>
    %198 = arith.subf %197, %196 : vector<2x128xf32>
    %199 = math.exp %198 : vector<2x128xf32>
    %cst_57 = arith.constant 1.000000e+00 : f32
    %200 = vector.broadcast %cst_57 : f32 to vector<2x128xf32>
    %201 = arith.addf %200, %199 : vector<2x128xf32>
    %202 = tpu.reciprocal %201 : vector<2x128xf32> -> vector<2x128xf32>
    %203 = arith.mulf %196, %202 : vector<2x128xf32>
    %204 = arith.truncf %91 : vector<2x128xf32> to vector<2x128xbf16>
    %cst_58 = arith.constant dense<0.000000e+00> : vector<2x128xf32>
    %205 = tpu.matmul %204, %8, %cst_58 {dimension_numbers = #tpu.dot_dimension_numbers<[1], [0], [0], [1], [0, 0, 1, 1], [], []>} : vector<2x128xbf16>, vector<128x128xbf16>, vector<2x128xf32> -> vector<2x128xf32>
    %206 = vector.extract_strided_slice %5 {offsets = [0, 0], sizes = [1, 128], strides = [1, 1]} : vector<3x128xf32> to vector<1x128xf32>
    %207 = vector.broadcast %206 : vector<1x128xf32> to vector<2x128xf32>
    %208 = arith.addf %205, %207 : vector<2x128xf32>
    %cst_59 = arith.constant dense<0.000000e+00> : vector<2xf32>
    %209 = vector.multi_reduction <add>, %208, %cst_59 [1] : vector<2x128xf32> to vector<2xf32>
    %210 = vector.shape_cast %209 : vector<2xf32> to vector<2x1xf32>
    %cst_60 = arith.constant 0.013888889 : f32
    %211 = vector.broadcast %cst_60 : f32 to vector<2x1xf32>
    %212 = arith.mulf %210, %211 : vector<2x1xf32>
    %213 = vector.broadcast %212 : vector<2x1xf32> to vector<2x128xf32>
    %214 = arith.subf %208, %213 : vector<2x128xf32>
    %cst_61 = arith.constant 0.000000e+00 : f32
    %215 = vector.shape_cast %15 : vector<1x128xi1> to vector<1x128xi1>
    %216 = vector.broadcast %215 : vector<1x128xi1> to vector<2x128xi1>
    %217 = vector.broadcast %cst_61 : f32 to vector<2x128xf32>
    %218 = arith.select %216, %214, %217 : vector<2x128xi1>, vector<2x128xf32>
    %219 = arith.mulf %218, %218 : vector<2x128xf32>
    %cst_62 = arith.constant dense<0.000000e+00> : vector<2xf32>
    %220 = vector.multi_reduction <add>, %219, %cst_62 [1] : vector<2x128xf32> to vector<2xf32>
    %221 = vector.shape_cast %220 : vector<2xf32> to vector<2x1xf32>
    %cst_63 = arith.constant 0.013888889 : f32
    %222 = vector.broadcast %cst_63 : f32 to vector<2x1xf32>
    %223 = arith.mulf %221, %222 : vector<2x1xf32>
    %cst_64 = arith.constant 9.99999974E-6 : f32
    %224 = vector.broadcast %cst_64 : f32 to vector<2x1xf32>
    %225 = arith.addf %223, %224 : vector<2x1xf32>
    %226 = math.rsqrt %225 : vector<2x1xf32>
    %227 = vector.extract_strided_slice %5 {offsets = [1, 0], sizes = [1, 128], strides = [1, 1]} : vector<3x128xf32> to vector<1x128xf32>
    %228 = vector.broadcast %226 : vector<2x1xf32> to vector<2x128xf32>
    %229 = vector.broadcast %227 : vector<1x128xf32> to vector<2x128xf32>
    %230 = arith.mulf %228, %229 : vector<2x128xf32>
    %231 = arith.mulf %218, %230 : vector<2x128xf32>
    %232 = vector.extract_strided_slice %5 {offsets = [2, 0], sizes = [1, 128], strides = [1, 1]} : vector<3x128xf32> to vector<1x128xf32>
    %233 = vector.broadcast %232 : vector<1x128xf32> to vector<2x128xf32>
    %234 = arith.addf %231, %233 : vector<2x128xf32>
    %cst_65 = arith.constant 0.000000e+00 : f32
    %235 = vector.broadcast %cst_65 : f32 to vector<2x128xf32>
    %236 = arith.subf %235, %234 : vector<2x128xf32>
    %237 = math.exp %236 : vector<2x128xf32>
    %cst_66 = arith.constant 1.000000e+00 : f32
    %238 = vector.broadcast %cst_66 : f32 to vector<2x128xf32>
    %239 = arith.addf %238, %237 : vector<2x128xf32>
    %240 = tpu.reciprocal %239 : vector<2x128xf32> -> vector<2x128xf32>
    %241 = arith.mulf %234, %240 : vector<2x128xf32>
    %242 = arith.truncf %128 : vector<2x128xf32> to vector<2x128xbf16>
    %cst_67 = arith.constant dense<0.000000e+00> : vector<2x128xf32>
    %243 = tpu.matmul %242, %8, %cst_67 {dimension_numbers = #tpu.dot_dimension_numbers<[1], [0], [0], [1], [0, 0, 1, 1], [], []>} : vector<2x128xbf16>, vector<128x128xbf16>, vector<2x128xf32> -> vector<2x128xf32>
    %244 = vector.extract_strided_slice %5 {offsets = [0, 0], sizes = [1, 128], strides = [1, 1]} : vector<3x128xf32> to vector<1x128xf32>
    %245 = vector.broadcast %244 : vector<1x128xf32> to vector<2x128xf32>
    %246 = arith.addf %243, %245 : vector<2x128xf32>
    %cst_68 = arith.constant dense<0.000000e+00> : vector<2xf32>
    %247 = vector.multi_reduction <add>, %246, %cst_68 [1] : vector<2x128xf32> to vector<2xf32>
    %248 = vector.shape_cast %247 : vector<2xf32> to vector<2x1xf32>
    %cst_69 = arith.constant 0.013888889 : f32
    %249 = vector.broadcast %cst_69 : f32 to vector<2x1xf32>
    %250 = arith.mulf %248, %249 : vector<2x1xf32>
    %251 = vector.broadcast %250 : vector<2x1xf32> to vector<2x128xf32>
    %252 = arith.subf %246, %251 : vector<2x128xf32>
    %cst_70 = arith.constant 0.000000e+00 : f32
    %253 = vector.shape_cast %15 : vector<1x128xi1> to vector<1x128xi1>
    %254 = vector.broadcast %253 : vector<1x128xi1> to vector<2x128xi1>
    %255 = vector.broadcast %cst_70 : f32 to vector<2x128xf32>
    %256 = arith.select %254, %252, %255 : vector<2x128xi1>, vector<2x128xf32>
    %257 = arith.mulf %256, %256 : vector<2x128xf32>
    %cst_71 = arith.constant dense<0.000000e+00> : vector<2xf32>
    %258 = vector.multi_reduction <add>, %257, %cst_71 [1] : vector<2x128xf32> to vector<2xf32>
    %259 = vector.shape_cast %258 : vector<2xf32> to vector<2x1xf32>
    %cst_72 = arith.constant 0.013888889 : f32
    %260 = vector.broadcast %cst_72 : f32 to vector<2x1xf32>
    %261 = arith.mulf %259, %260 : vector<2x1xf32>
    %cst_73 = arith.constant 9.99999974E-6 : f32
    %262 = vector.broadcast %cst_73 : f32 to vector<2x1xf32>
    %263 = arith.addf %261, %262 : vector<2x1xf32>
    %264 = math.rsqrt %263 : vector<2x1xf32>
    %265 = vector.extract_strided_slice %5 {offsets = [1, 0], sizes = [1, 128], strides = [1, 1]} : vector<3x128xf32> to vector<1x128xf32>
    %266 = vector.broadcast %264 : vector<2x1xf32> to vector<2x128xf32>
    %267 = vector.broadcast %265 : vector<1x128xf32> to vector<2x128xf32>
    %268 = arith.mulf %266, %267 : vector<2x128xf32>
    %269 = arith.mulf %256, %268 : vector<2x128xf32>
    %270 = vector.extract_strided_slice %5 {offsets = [2, 0], sizes = [1, 128], strides = [1, 1]} : vector<3x128xf32> to vector<1x128xf32>
    %271 = vector.broadcast %270 : vector<1x128xf32> to vector<2x128xf32>
    %272 = arith.addf %269, %271 : vector<2x128xf32>
    %cst_74 = arith.constant 0.000000e+00 : f32
    %273 = vector.broadcast %cst_74 : f32 to vector<2x128xf32>
    %274 = arith.subf %273, %272 : vector<2x128xf32>
    %275 = math.exp %274 : vector<2x128xf32>
    %cst_75 = arith.constant 1.000000e+00 : f32
    %276 = vector.broadcast %cst_75 : f32 to vector<2x128xf32>
    %277 = arith.addf %276, %275 : vector<2x128xf32>
    %278 = tpu.reciprocal %277 : vector<2x128xf32> -> vector<2x128xf32>
    %279 = arith.mulf %272, %278 : vector<2x128xf32>
    %280 = arith.truncf %165 : vector<2x128xf32> to vector<2x128xbf16>
    %cst_76 = arith.constant dense<0.000000e+00> : vector<2x128xf32>
    %281 = tpu.matmul %280, %8, %cst_76 {dimension_numbers = #tpu.dot_dimension_numbers<[1], [0], [0], [1], [0, 0, 1, 1], [], []>} : vector<2x128xbf16>, vector<128x128xbf16>, vector<2x128xf32> -> vector<2x128xf32>
    %282 = vector.extract_strided_slice %5 {offsets = [0, 0], sizes = [1, 128], strides = [1, 1]} : vector<3x128xf32> to vector<1x128xf32>
    %283 = vector.broadcast %282 : vector<1x128xf32> to vector<2x128xf32>
    %284 = arith.addf %281, %283 : vector<2x128xf32>
    %cst_77 = arith.constant dense<0.000000e+00> : vector<2xf32>
    %285 = vector.multi_reduction <add>, %284, %cst_77 [1] : vector<2x128xf32> to vector<2xf32>
    %286 = vector.shape_cast %285 : vector<2xf32> to vector<2x1xf32>
    %cst_78 = arith.constant 0.013888889 : f32
    %287 = vector.broadcast %cst_78 : f32 to vector<2x1xf32>
    %288 = arith.mulf %286, %287 : vector<2x1xf32>
    %289 = vector.broadcast %288 : vector<2x1xf32> to vector<2x128xf32>
    %290 = arith.subf %284, %289 : vector<2x128xf32>
    %cst_79 = arith.constant 0.000000e+00 : f32
    %291 = vector.shape_cast %15 : vector<1x128xi1> to vector<1x128xi1>
    %292 = vector.broadcast %291 : vector<1x128xi1> to vector<2x128xi1>
    %293 = vector.broadcast %cst_79 : f32 to vector<2x128xf32>
    %294 = arith.select %292, %290, %293 : vector<2x128xi1>, vector<2x128xf32>
    %295 = arith.mulf %294, %294 : vector<2x128xf32>
    %cst_80 = arith.constant dense<0.000000e+00> : vector<2xf32>
    %296 = vector.multi_reduction <add>, %295, %cst_80 [1] : vector<2x128xf32> to vector<2xf32>
    %297 = vector.shape_cast %296 : vector<2xf32> to vector<2x1xf32>
    %cst_81 = arith.constant 0.013888889 : f32
    %298 = vector.broadcast %cst_81 : f32 to vector<2x1xf32>
    %299 = arith.mulf %297, %298 : vector<2x1xf32>
    %cst_82 = arith.constant 9.99999974E-6 : f32
    %300 = vector.broadcast %cst_82 : f32 to vector<2x1xf32>
    %301 = arith.addf %299, %300 : vector<2x1xf32>
    %302 = math.rsqrt %301 : vector<2x1xf32>
    %303 = vector.extract_strided_slice %5 {offsets = [1, 0], sizes = [1, 128], strides = [1, 1]} : vector<3x128xf32> to vector<1x128xf32>
    %304 = vector.broadcast %302 : vector<2x1xf32> to vector<2x128xf32>
    %305 = vector.broadcast %303 : vector<1x128xf32> to vector<2x128xf32>
    %306 = arith.mulf %304, %305 : vector<2x128xf32>
    %307 = arith.mulf %294, %306 : vector<2x128xf32>
    %308 = vector.extract_strided_slice %5 {offsets = [2, 0], sizes = [1, 128], strides = [1, 1]} : vector<3x128xf32> to vector<1x128xf32>
    %309 = vector.broadcast %308 : vector<1x128xf32> to vector<2x128xf32>
    %310 = arith.addf %307, %309 : vector<2x128xf32>
    %cst_83 = arith.constant 0.000000e+00 : f32
    %311 = vector.broadcast %cst_83 : f32 to vector<2x128xf32>
    %312 = arith.subf %311, %310 : vector<2x128xf32>
    %313 = math.exp %312 : vector<2x128xf32>
    %cst_84 = arith.constant 1.000000e+00 : f32
    %314 = vector.broadcast %cst_84 : f32 to vector<2x128xf32>
    %315 = arith.addf %314, %313 : vector<2x128xf32>
    %316 = tpu.reciprocal %315 : vector<2x128xf32> -> vector<2x128xf32>
    %317 = arith.mulf %310, %316 : vector<2x128xf32>
    %318 = arith.truncf %203 : vector<2x128xf32> to vector<2x128xbf16>
    %cst_85 = arith.constant dense<0.000000e+00> : vector<2x128xf32>
    %319 = tpu.matmul %318, %9, %cst_85 {dimension_numbers = #tpu.dot_dimension_numbers<[1], [0], [0], [1], [0, 0, 1, 1], [], []>} : vector<2x128xbf16>, vector<128x128xbf16>, vector<2x128xf32> -> vector<2x128xf32>
    %320 = vector.extract_strided_slice %6 {offsets = [0, 0], sizes = [1, 128], strides = [1, 1]} : vector<3x128xf32> to vector<1x128xf32>
    %321 = vector.broadcast %320 : vector<1x128xf32> to vector<2x128xf32>
    %322 = arith.addf %319, %321 : vector<2x128xf32>
    %cst_86 = arith.constant dense<0.000000e+00> : vector<2xf32>
    %323 = vector.multi_reduction <add>, %322, %cst_86 [1] : vector<2x128xf32> to vector<2xf32>
    %324 = vector.shape_cast %323 : vector<2xf32> to vector<2x1xf32>
    %cst_87 = arith.constant 0.020833334 : f32
    %325 = vector.broadcast %cst_87 : f32 to vector<2x1xf32>
    %326 = arith.mulf %324, %325 : vector<2x1xf32>
    %327 = vector.broadcast %326 : vector<2x1xf32> to vector<2x128xf32>
    %328 = arith.subf %322, %327 : vector<2x128xf32>
    %cst_88 = arith.constant 0.000000e+00 : f32
    %329 = vector.shape_cast %17 : vector<1x128xi1> to vector<1x128xi1>
    %330 = vector.broadcast %329 : vector<1x128xi1> to vector<2x128xi1>
    %331 = vector.broadcast %cst_88 : f32 to vector<2x128xf32>
    %332 = arith.select %330, %328, %331 : vector<2x128xi1>, vector<2x128xf32>
    %333 = arith.mulf %332, %332 : vector<2x128xf32>
    %cst_89 = arith.constant dense<0.000000e+00> : vector<2xf32>
    %334 = vector.multi_reduction <add>, %333, %cst_89 [1] : vector<2x128xf32> to vector<2xf32>
    %335 = vector.shape_cast %334 : vector<2xf32> to vector<2x1xf32>
    %cst_90 = arith.constant 0.020833334 : f32
    %336 = vector.broadcast %cst_90 : f32 to vector<2x1xf32>
    %337 = arith.mulf %335, %336 : vector<2x1xf32>
    %cst_91 = arith.constant 9.99999974E-6 : f32
    %338 = vector.broadcast %cst_91 : f32 to vector<2x1xf32>
    %339 = arith.addf %337, %338 : vector<2x1xf32>
    %340 = math.rsqrt %339 : vector<2x1xf32>
    %341 = vector.extract_strided_slice %6 {offsets = [1, 0], sizes = [1, 128], strides = [1, 1]} : vector<3x128xf32> to vector<1x128xf32>
    %342 = vector.broadcast %340 : vector<2x1xf32> to vector<2x128xf32>
    %343 = vector.broadcast %341 : vector<1x128xf32> to vector<2x128xf32>
    %344 = arith.mulf %342, %343 : vector<2x128xf32>
    %345 = arith.mulf %332, %344 : vector<2x128xf32>
    %346 = vector.extract_strided_slice %6 {offsets = [2, 0], sizes = [1, 128], strides = [1, 1]} : vector<3x128xf32> to vector<1x128xf32>
    %347 = vector.broadcast %346 : vector<1x128xf32> to vector<2x128xf32>
    %348 = arith.addf %345, %347 : vector<2x128xf32>
    %cst_92 = arith.constant 0.000000e+00 : f32
    %349 = vector.broadcast %cst_92 : f32 to vector<2x128xf32>
    %350 = arith.subf %349, %348 : vector<2x128xf32>
    %351 = math.exp %350 : vector<2x128xf32>
    %cst_93 = arith.constant 1.000000e+00 : f32
    %352 = vector.broadcast %cst_93 : f32 to vector<2x128xf32>
    %353 = arith.addf %352, %351 : vector<2x128xf32>
    %354 = tpu.reciprocal %353 : vector<2x128xf32> -> vector<2x128xf32>
    %355 = arith.mulf %348, %354 : vector<2x128xf32>
    %356 = arith.truncf %241 : vector<2x128xf32> to vector<2x128xbf16>
    %cst_94 = arith.constant dense<0.000000e+00> : vector<2x128xf32>
    %357 = tpu.matmul %356, %9, %cst_94 {dimension_numbers = #tpu.dot_dimension_numbers<[1], [0], [0], [1], [0, 0, 1, 1], [], []>} : vector<2x128xbf16>, vector<128x128xbf16>, vector<2x128xf32> -> vector<2x128xf32>
    %358 = vector.extract_strided_slice %6 {offsets = [0, 0], sizes = [1, 128], strides = [1, 1]} : vector<3x128xf32> to vector<1x128xf32>
    %359 = vector.broadcast %358 : vector<1x128xf32> to vector<2x128xf32>
    %360 = arith.addf %357, %359 : vector<2x128xf32>
    %cst_95 = arith.constant dense<0.000000e+00> : vector<2xf32>
    %361 = vector.multi_reduction <add>, %360, %cst_95 [1] : vector<2x128xf32> to vector<2xf32>
    %362 = vector.shape_cast %361 : vector<2xf32> to vector<2x1xf32>
    %cst_96 = arith.constant 0.020833334 : f32
    %363 = vector.broadcast %cst_96 : f32 to vector<2x1xf32>
    %364 = arith.mulf %362, %363 : vector<2x1xf32>
    %365 = vector.broadcast %364 : vector<2x1xf32> to vector<2x128xf32>
    %366 = arith.subf %360, %365 : vector<2x128xf32>
    %cst_97 = arith.constant 0.000000e+00 : f32
    %367 = vector.shape_cast %17 : vector<1x128xi1> to vector<1x128xi1>
    %368 = vector.broadcast %367 : vector<1x128xi1> to vector<2x128xi1>
    %369 = vector.broadcast %cst_97 : f32 to vector<2x128xf32>
    %370 = arith.select %368, %366, %369 : vector<2x128xi1>, vector<2x128xf32>
    %371 = arith.mulf %370, %370 : vector<2x128xf32>
    %cst_98 = arith.constant dense<0.000000e+00> : vector<2xf32>
    %372 = vector.multi_reduction <add>, %371, %cst_98 [1] : vector<2x128xf32> to vector<2xf32>
    %373 = vector.shape_cast %372 : vector<2xf32> to vector<2x1xf32>
    %cst_99 = arith.constant 0.020833334 : f32
    %374 = vector.broadcast %cst_99 : f32 to vector<2x1xf32>
    %375 = arith.mulf %373, %374 : vector<2x1xf32>
    %cst_100 = arith.constant 9.99999974E-6 : f32
    %376 = vector.broadcast %cst_100 : f32 to vector<2x1xf32>
    %377 = arith.addf %375, %376 : vector<2x1xf32>
    %378 = math.rsqrt %377 : vector<2x1xf32>
    %379 = vector.extract_strided_slice %6 {offsets = [1, 0], sizes = [1, 128], strides = [1, 1]} : vector<3x128xf32> to vector<1x128xf32>
    %380 = vector.broadcast %378 : vector<2x1xf32> to vector<2x128xf32>
    %381 = vector.broadcast %379 : vector<1x128xf32> to vector<2x128xf32>
    %382 = arith.mulf %380, %381 : vector<2x128xf32>
    %383 = arith.mulf %370, %382 : vector<2x128xf32>
    %384 = vector.extract_strided_slice %6 {offsets = [2, 0], sizes = [1, 128], strides = [1, 1]} : vector<3x128xf32> to vector<1x128xf32>
    %385 = vector.broadcast %384 : vector<1x128xf32> to vector<2x128xf32>
    %386 = arith.addf %383, %385 : vector<2x128xf32>
    %cst_101 = arith.constant 0.000000e+00 : f32
    %387 = vector.broadcast %cst_101 : f32 to vector<2x128xf32>
    %388 = arith.subf %387, %386 : vector<2x128xf32>
    %389 = math.exp %388 : vector<2x128xf32>
    %cst_102 = arith.constant 1.000000e+00 : f32
    %390 = vector.broadcast %cst_102 : f32 to vector<2x128xf32>
    %391 = arith.addf %390, %389 : vector<2x128xf32>
    %392 = tpu.reciprocal %391 : vector<2x128xf32> -> vector<2x128xf32>
    %393 = arith.mulf %386, %392 : vector<2x128xf32>
    %394 = arith.truncf %279 : vector<2x128xf32> to vector<2x128xbf16>
    %cst_103 = arith.constant dense<0.000000e+00> : vector<2x128xf32>
    %395 = tpu.matmul %394, %9, %cst_103 {dimension_numbers = #tpu.dot_dimension_numbers<[1], [0], [0], [1], [0, 0, 1, 1], [], []>} : vector<2x128xbf16>, vector<128x128xbf16>, vector<2x128xf32> -> vector<2x128xf32>
    %396 = vector.extract_strided_slice %6 {offsets = [0, 0], sizes = [1, 128], strides = [1, 1]} : vector<3x128xf32> to vector<1x128xf32>
    %397 = vector.broadcast %396 : vector<1x128xf32> to vector<2x128xf32>
    %398 = arith.addf %395, %397 : vector<2x128xf32>
    %cst_104 = arith.constant dense<0.000000e+00> : vector<2xf32>
    %399 = vector.multi_reduction <add>, %398, %cst_104 [1] : vector<2x128xf32> to vector<2xf32>
    %400 = vector.shape_cast %399 : vector<2xf32> to vector<2x1xf32>
    %cst_105 = arith.constant 0.020833334 : f32
    %401 = vector.broadcast %cst_105 : f32 to vector<2x1xf32>
    %402 = arith.mulf %400, %401 : vector<2x1xf32>
    %403 = vector.broadcast %402 : vector<2x1xf32> to vector<2x128xf32>
    %404 = arith.subf %398, %403 : vector<2x128xf32>
    %cst_106 = arith.constant 0.000000e+00 : f32
    %405 = vector.shape_cast %17 : vector<1x128xi1> to vector<1x128xi1>
    %406 = vector.broadcast %405 : vector<1x128xi1> to vector<2x128xi1>
    %407 = vector.broadcast %cst_106 : f32 to vector<2x128xf32>
    %408 = arith.select %406, %404, %407 : vector<2x128xi1>, vector<2x128xf32>
    %409 = arith.mulf %408, %408 : vector<2x128xf32>
    %cst_107 = arith.constant dense<0.000000e+00> : vector<2xf32>
    %410 = vector.multi_reduction <add>, %409, %cst_107 [1] : vector<2x128xf32> to vector<2xf32>
    %411 = vector.shape_cast %410 : vector<2xf32> to vector<2x1xf32>
    %cst_108 = arith.constant 0.020833334 : f32
    %412 = vector.broadcast %cst_108 : f32 to vector<2x1xf32>
    %413 = arith.mulf %411, %412 : vector<2x1xf32>
    %cst_109 = arith.constant 9.99999974E-6 : f32
    %414 = vector.broadcast %cst_109 : f32 to vector<2x1xf32>
    %415 = arith.addf %413, %414 : vector<2x1xf32>
    %416 = math.rsqrt %415 : vector<2x1xf32>
    %417 = vector.extract_strided_slice %6 {offsets = [1, 0], sizes = [1, 128], strides = [1, 1]} : vector<3x128xf32> to vector<1x128xf32>
    %418 = vector.broadcast %416 : vector<2x1xf32> to vector<2x128xf32>
    %419 = vector.broadcast %417 : vector<1x128xf32> to vector<2x128xf32>
    %420 = arith.mulf %418, %419 : vector<2x128xf32>
    %421 = arith.mulf %408, %420 : vector<2x128xf32>
    %422 = vector.extract_strided_slice %6 {offsets = [2, 0], sizes = [1, 128], strides = [1, 1]} : vector<3x128xf32> to vector<1x128xf32>
    %423 = vector.broadcast %422 : vector<1x128xf32> to vector<2x128xf32>
    %424 = arith.addf %421, %423 : vector<2x128xf32>
    %cst_110 = arith.constant 0.000000e+00 : f32
    %425 = vector.broadcast %cst_110 : f32 to vector<2x128xf32>
    %426 = arith.subf %425, %424 : vector<2x128xf32>
    %427 = math.exp %426 : vector<2x128xf32>
    %cst_111 = arith.constant 1.000000e+00 : f32
    %428 = vector.broadcast %cst_111 : f32 to vector<2x128xf32>
    %429 = arith.addf %428, %427 : vector<2x128xf32>
    %430 = tpu.reciprocal %429 : vector<2x128xf32> -> vector<2x128xf32>
    %431 = arith.mulf %424, %430 : vector<2x128xf32>
    %432 = arith.truncf %317 : vector<2x128xf32> to vector<2x128xbf16>
    %cst_112 = arith.constant dense<0.000000e+00> : vector<2x128xf32>
    %433 = tpu.matmul %432, %9, %cst_112 {dimension_numbers = #tpu.dot_dimension_numbers<[1], [0], [0], [1], [0, 0, 1, 1], [], []>} : vector<2x128xbf16>, vector<128x128xbf16>, vector<2x128xf32> -> vector<2x128xf32>
    %434 = vector.extract_strided_slice %6 {offsets = [0, 0], sizes = [1, 128], strides = [1, 1]} : vector<3x128xf32> to vector<1x128xf32>
    %435 = vector.broadcast %434 : vector<1x128xf32> to vector<2x128xf32>
    %436 = arith.addf %433, %435 : vector<2x128xf32>
    %cst_113 = arith.constant dense<0.000000e+00> : vector<2xf32>
    %437 = vector.multi_reduction <add>, %436, %cst_113 [1] : vector<2x128xf32> to vector<2xf32>
    %438 = vector.shape_cast %437 : vector<2xf32> to vector<2x1xf32>
    %cst_114 = arith.constant 0.020833334 : f32
    %439 = vector.broadcast %cst_114 : f32 to vector<2x1xf32>
    %440 = arith.mulf %438, %439 : vector<2x1xf32>
    %441 = vector.broadcast %440 : vector<2x1xf32> to vector<2x128xf32>
    %442 = arith.subf %436, %441 : vector<2x128xf32>
    %cst_115 = arith.constant 0.000000e+00 : f32
    %443 = vector.shape_cast %17 : vector<1x128xi1> to vector<1x128xi1>
    %444 = vector.broadcast %443 : vector<1x128xi1> to vector<2x128xi1>
    %445 = vector.broadcast %cst_115 : f32 to vector<2x128xf32>
    %446 = arith.select %444, %442, %445 : vector<2x128xi1>, vector<2x128xf32>
    %447 = arith.mulf %446, %446 : vector<2x128xf32>
    %cst_116 = arith.constant dense<0.000000e+00> : vector<2xf32>
    %448 = vector.multi_reduction <add>, %447, %cst_116 [1] : vector<2x128xf32> to vector<2xf32>
    %449 = vector.shape_cast %448 : vector<2xf32> to vector<2x1xf32>
    %cst_117 = arith.constant 0.020833334 : f32
    %450 = vector.broadcast %cst_117 : f32 to vector<2x1xf32>
    %451 = arith.mulf %449, %450 : vector<2x1xf32>
    %cst_118 = arith.constant 9.99999974E-6 : f32
    %452 = vector.broadcast %cst_118 : f32 to vector<2x1xf32>
    %453 = arith.addf %451, %452 : vector<2x1xf32>
    %454 = math.rsqrt %453 : vector<2x1xf32>
    %455 = vector.extract_strided_slice %6 {offsets = [1, 0], sizes = [1, 128], strides = [1, 1]} : vector<3x128xf32> to vector<1x128xf32>
    %456 = vector.broadcast %454 : vector<2x1xf32> to vector<2x128xf32>
    %457 = vector.broadcast %455 : vector<1x128xf32> to vector<2x128xf32>
    %458 = arith.mulf %456, %457 : vector<2x128xf32>
    %459 = arith.mulf %446, %458 : vector<2x128xf32>
    %460 = vector.extract_strided_slice %6 {offsets = [2, 0], sizes = [1, 128], strides = [1, 1]} : vector<3x128xf32> to vector<1x128xf32>
    %461 = vector.broadcast %460 : vector<1x128xf32> to vector<2x128xf32>
    %462 = arith.addf %459, %461 : vector<2x128xf32>
    %cst_119 = arith.constant 0.000000e+00 : f32
    %463 = vector.broadcast %cst_119 : f32 to vector<2x128xf32>
    %464 = arith.subf %463, %462 : vector<2x128xf32>
    %465 = math.exp %464 : vector<2x128xf32>
    %cst_120 = arith.constant 1.000000e+00 : f32
    %466 = vector.broadcast %cst_120 : f32 to vector<2x128xf32>
    %467 = arith.addf %466, %465 : vector<2x128xf32>
    %468 = tpu.reciprocal %467 : vector<2x128xf32> -> vector<2x128xf32>
    %469 = arith.mulf %462, %468 : vector<2x128xf32>
    %470 = arith.truncf %355 : vector<2x128xf32> to vector<2x128xbf16>
    %cst_121 = arith.constant dense<0.000000e+00> : vector<2x32xf32>
    %471 = tpu.matmul %470, %10, %cst_121 {dimension_numbers = #tpu.dot_dimension_numbers<[1], [0], [0], [1], [0, 0, 1, 1], [], []>} : vector<2x128xbf16>, vector<128x32xbf16>, vector<2x32xf32> -> vector<2x32xf32>
    %472 = vector.extract_strided_slice %7 {offsets = [0, 0], sizes = [1, 32], strides = [1, 1]} : vector<3x32xf32> to vector<1x32xf32>
    %473 = vector.broadcast %472 : vector<1x32xf32> to vector<2x32xf32>
    %474 = arith.addf %471, %473 : vector<2x32xf32>
    %cst_122 = arith.constant dense<0.000000e+00> : vector<2xf32>
    %475 = vector.multi_reduction <add>, %474, %cst_122 [1] : vector<2x32xf32> to vector<2xf32>
    %476 = vector.shape_cast %475 : vector<2xf32> to vector<2x1xf32>
    %cst_123 = arith.constant 3.125000e-02 : f32
    %477 = vector.broadcast %cst_123 : f32 to vector<2x1xf32>
    %478 = arith.mulf %476, %477 : vector<2x1xf32>
    %479 = vector.broadcast %478 : vector<2x1xf32> to vector<2x32xf32>
    %480 = arith.subf %474, %479 : vector<2x32xf32>
    %481 = arith.mulf %480, %480 : vector<2x32xf32>
    %cst_124 = arith.constant dense<0.000000e+00> : vector<2xf32>
    %482 = vector.multi_reduction <add>, %481, %cst_124 [1] : vector<2x32xf32> to vector<2xf32>
    %483 = vector.shape_cast %482 : vector<2xf32> to vector<2x1xf32>
    %cst_125 = arith.constant 3.125000e-02 : f32
    %484 = vector.broadcast %cst_125 : f32 to vector<2x1xf32>
    %485 = arith.mulf %483, %484 : vector<2x1xf32>
    %cst_126 = arith.constant 9.99999974E-6 : f32
    %486 = vector.broadcast %cst_126 : f32 to vector<2x1xf32>
    %487 = arith.addf %485, %486 : vector<2x1xf32>
    %488 = math.rsqrt %487 : vector<2x1xf32>
    %489 = vector.extract_strided_slice %7 {offsets = [1, 0], sizes = [1, 32], strides = [1, 1]} : vector<3x32xf32> to vector<1x32xf32>
    %490 = vector.broadcast %488 : vector<2x1xf32> to vector<2x32xf32>
    %491 = vector.broadcast %489 : vector<1x32xf32> to vector<2x32xf32>
    %492 = arith.mulf %490, %491 : vector<2x32xf32>
    %493 = arith.mulf %480, %492 : vector<2x32xf32>
    %494 = vector.extract_strided_slice %7 {offsets = [2, 0], sizes = [1, 32], strides = [1, 1]} : vector<3x32xf32> to vector<1x32xf32>
    %495 = vector.broadcast %494 : vector<1x32xf32> to vector<2x32xf32>
    %496 = arith.addf %493, %495 : vector<2x32xf32>
    %cst_127 = arith.constant 0.000000e+00 : f32
    %497 = vector.broadcast %cst_127 : f32 to vector<2x32xf32>
    %498 = arith.subf %497, %496 : vector<2x32xf32>
    %499 = math.exp %498 : vector<2x32xf32>
    %cst_128 = arith.constant 1.000000e+00 : f32
    %500 = vector.broadcast %cst_128 : f32 to vector<2x32xf32>
    %501 = arith.addf %500, %499 : vector<2x32xf32>
    %502 = tpu.reciprocal %501 : vector<2x32xf32> -> vector<2x32xf32>
    %503 = arith.mulf %496, %502 : vector<2x32xf32>
    %504 = arith.truncf %393 : vector<2x128xf32> to vector<2x128xbf16>
    %cst_129 = arith.constant dense<0.000000e+00> : vector<2x32xf32>
    %505 = tpu.matmul %504, %10, %cst_129 {dimension_numbers = #tpu.dot_dimension_numbers<[1], [0], [0], [1], [0, 0, 1, 1], [], []>} : vector<2x128xbf16>, vector<128x32xbf16>, vector<2x32xf32> -> vector<2x32xf32>
    %506 = vector.extract_strided_slice %7 {offsets = [0, 0], sizes = [1, 32], strides = [1, 1]} : vector<3x32xf32> to vector<1x32xf32>
    %507 = vector.broadcast %506 : vector<1x32xf32> to vector<2x32xf32>
    %508 = arith.addf %505, %507 : vector<2x32xf32>
    %cst_130 = arith.constant dense<0.000000e+00> : vector<2xf32>
    %509 = vector.multi_reduction <add>, %508, %cst_130 [1] : vector<2x32xf32> to vector<2xf32>
    %510 = vector.shape_cast %509 : vector<2xf32> to vector<2x1xf32>
    %cst_131 = arith.constant 3.125000e-02 : f32
    %511 = vector.broadcast %cst_131 : f32 to vector<2x1xf32>
    %512 = arith.mulf %510, %511 : vector<2x1xf32>
    %513 = vector.broadcast %512 : vector<2x1xf32> to vector<2x32xf32>
    %514 = arith.subf %508, %513 : vector<2x32xf32>
    %515 = arith.mulf %514, %514 : vector<2x32xf32>
    %cst_132 = arith.constant dense<0.000000e+00> : vector<2xf32>
    %516 = vector.multi_reduction <add>, %515, %cst_132 [1] : vector<2x32xf32> to vector<2xf32>
    %517 = vector.shape_cast %516 : vector<2xf32> to vector<2x1xf32>
    %cst_133 = arith.constant 3.125000e-02 : f32
    %518 = vector.broadcast %cst_133 : f32 to vector<2x1xf32>
    %519 = arith.mulf %517, %518 : vector<2x1xf32>
    %cst_134 = arith.constant 9.99999974E-6 : f32
    %520 = vector.broadcast %cst_134 : f32 to vector<2x1xf32>
    %521 = arith.addf %519, %520 : vector<2x1xf32>
    %522 = math.rsqrt %521 : vector<2x1xf32>
    %523 = vector.extract_strided_slice %7 {offsets = [1, 0], sizes = [1, 32], strides = [1, 1]} : vector<3x32xf32> to vector<1x32xf32>
    %524 = vector.broadcast %522 : vector<2x1xf32> to vector<2x32xf32>
    %525 = vector.broadcast %523 : vector<1x32xf32> to vector<2x32xf32>
    %526 = arith.mulf %524, %525 : vector<2x32xf32>
    %527 = arith.mulf %514, %526 : vector<2x32xf32>
    %528 = vector.extract_strided_slice %7 {offsets = [2, 0], sizes = [1, 32], strides = [1, 1]} : vector<3x32xf32> to vector<1x32xf32>
    %529 = vector.broadcast %528 : vector<1x32xf32> to vector<2x32xf32>
    %530 = arith.addf %527, %529 : vector<2x32xf32>
    %cst_135 = arith.constant 0.000000e+00 : f32
    %531 = vector.broadcast %cst_135 : f32 to vector<2x32xf32>
    %532 = arith.subf %531, %530 : vector<2x32xf32>
    %533 = math.exp %532 : vector<2x32xf32>
    %cst_136 = arith.constant 1.000000e+00 : f32
    %534 = vector.broadcast %cst_136 : f32 to vector<2x32xf32>
    %535 = arith.addf %534, %533 : vector<2x32xf32>
    %536 = tpu.reciprocal %535 : vector<2x32xf32> -> vector<2x32xf32>
    %537 = arith.mulf %530, %536 : vector<2x32xf32>
    %538 = arith.truncf %431 : vector<2x128xf32> to vector<2x128xbf16>
    %cst_137 = arith.constant dense<0.000000e+00> : vector<2x32xf32>
    %539 = tpu.matmul %538, %10, %cst_137 {dimension_numbers = #tpu.dot_dimension_numbers<[1], [0], [0], [1], [0, 0, 1, 1], [], []>} : vector<2x128xbf16>, vector<128x32xbf16>, vector<2x32xf32> -> vector<2x32xf32>
    %540 = vector.extract_strided_slice %7 {offsets = [0, 0], sizes = [1, 32], strides = [1, 1]} : vector<3x32xf32> to vector<1x32xf32>
    %541 = vector.broadcast %540 : vector<1x32xf32> to vector<2x32xf32>
    %542 = arith.addf %539, %541 : vector<2x32xf32>
    %cst_138 = arith.constant dense<0.000000e+00> : vector<2xf32>
    %543 = vector.multi_reduction <add>, %542, %cst_138 [1] : vector<2x32xf32> to vector<2xf32>
    %544 = vector.shape_cast %543 : vector<2xf32> to vector<2x1xf32>
    %cst_139 = arith.constant 3.125000e-02 : f32
    %545 = vector.broadcast %cst_139 : f32 to vector<2x1xf32>
    %546 = arith.mulf %544, %545 : vector<2x1xf32>
    %547 = vector.broadcast %546 : vector<2x1xf32> to vector<2x32xf32>
    %548 = arith.subf %542, %547 : vector<2x32xf32>
    %549 = arith.mulf %548, %548 : vector<2x32xf32>
    %cst_140 = arith.constant dense<0.000000e+00> : vector<2xf32>
    %550 = vector.multi_reduction <add>, %549, %cst_140 [1] : vector<2x32xf32> to vector<2xf32>
    %551 = vector.shape_cast %550 : vector<2xf32> to vector<2x1xf32>
    %cst_141 = arith.constant 3.125000e-02 : f32
    %552 = vector.broadcast %cst_141 : f32 to vector<2x1xf32>
    %553 = arith.mulf %551, %552 : vector<2x1xf32>
    %cst_142 = arith.constant 9.99999974E-6 : f32
    %554 = vector.broadcast %cst_142 : f32 to vector<2x1xf32>
    %555 = arith.addf %553, %554 : vector<2x1xf32>
    %556 = math.rsqrt %555 : vector<2x1xf32>
    %557 = vector.extract_strided_slice %7 {offsets = [1, 0], sizes = [1, 32], strides = [1, 1]} : vector<3x32xf32> to vector<1x32xf32>
    %558 = vector.broadcast %556 : vector<2x1xf32> to vector<2x32xf32>
    %559 = vector.broadcast %557 : vector<1x32xf32> to vector<2x32xf32>
    %560 = arith.mulf %558, %559 : vector<2x32xf32>
    %561 = arith.mulf %548, %560 : vector<2x32xf32>
    %562 = vector.extract_strided_slice %7 {offsets = [2, 0], sizes = [1, 32], strides = [1, 1]} : vector<3x32xf32> to vector<1x32xf32>
    %563 = vector.broadcast %562 : vector<1x32xf32> to vector<2x32xf32>
    %564 = arith.addf %561, %563 : vector<2x32xf32>
    %cst_143 = arith.constant 0.000000e+00 : f32
    %565 = vector.broadcast %cst_143 : f32 to vector<2x32xf32>
    %566 = arith.subf %565, %564 : vector<2x32xf32>
    %567 = math.exp %566 : vector<2x32xf32>
    %cst_144 = arith.constant 1.000000e+00 : f32
    %568 = vector.broadcast %cst_144 : f32 to vector<2x32xf32>
    %569 = arith.addf %568, %567 : vector<2x32xf32>
    %570 = tpu.reciprocal %569 : vector<2x32xf32> -> vector<2x32xf32>
    %571 = arith.mulf %564, %570 : vector<2x32xf32>
    %572 = arith.truncf %469 : vector<2x128xf32> to vector<2x128xbf16>
    %cst_145 = arith.constant dense<0.000000e+00> : vector<2x32xf32>
    %573 = tpu.matmul %572, %10, %cst_145 {dimension_numbers = #tpu.dot_dimension_numbers<[1], [0], [0], [1], [0, 0, 1, 1], [], []>} : vector<2x128xbf16>, vector<128x32xbf16>, vector<2x32xf32> -> vector<2x32xf32>
    %574 = vector.extract_strided_slice %7 {offsets = [0, 0], sizes = [1, 32], strides = [1, 1]} : vector<3x32xf32> to vector<1x32xf32>
    %575 = vector.broadcast %574 : vector<1x32xf32> to vector<2x32xf32>
    %576 = arith.addf %573, %575 : vector<2x32xf32>
    %cst_146 = arith.constant dense<0.000000e+00> : vector<2xf32>
    %577 = vector.multi_reduction <add>, %576, %cst_146 [1] : vector<2x32xf32> to vector<2xf32>
    %578 = vector.shape_cast %577 : vector<2xf32> to vector<2x1xf32>
    %cst_147 = arith.constant 3.125000e-02 : f32
    %579 = vector.broadcast %cst_147 : f32 to vector<2x1xf32>
    %580 = arith.mulf %578, %579 : vector<2x1xf32>
    %581 = vector.broadcast %580 : vector<2x1xf32> to vector<2x32xf32>
    %582 = arith.subf %576, %581 : vector<2x32xf32>
    %583 = arith.mulf %582, %582 : vector<2x32xf32>
    %cst_148 = arith.constant dense<0.000000e+00> : vector<2xf32>
    %584 = vector.multi_reduction <add>, %583, %cst_148 [1] : vector<2x32xf32> to vector<2xf32>
    %585 = vector.shape_cast %584 : vector<2xf32> to vector<2x1xf32>
    %cst_149 = arith.constant 3.125000e-02 : f32
    %586 = vector.broadcast %cst_149 : f32 to vector<2x1xf32>
    %587 = arith.mulf %585, %586 : vector<2x1xf32>
    %cst_150 = arith.constant 9.99999974E-6 : f32
    %588 = vector.broadcast %cst_150 : f32 to vector<2x1xf32>
    %589 = arith.addf %587, %588 : vector<2x1xf32>
    %590 = math.rsqrt %589 : vector<2x1xf32>
    %591 = vector.extract_strided_slice %7 {offsets = [1, 0], sizes = [1, 32], strides = [1, 1]} : vector<3x32xf32> to vector<1x32xf32>
    %592 = vector.broadcast %590 : vector<2x1xf32> to vector<2x32xf32>
    %593 = vector.broadcast %591 : vector<1x32xf32> to vector<2x32xf32>
    %594 = arith.mulf %592, %593 : vector<2x32xf32>
    %595 = arith.mulf %582, %594 : vector<2x32xf32>
    %596 = vector.extract_strided_slice %7 {offsets = [2, 0], sizes = [1, 32], strides = [1, 1]} : vector<3x32xf32> to vector<1x32xf32>
    %597 = vector.broadcast %596 : vector<1x32xf32> to vector<2x32xf32>
    %598 = arith.addf %595, %597 : vector<2x32xf32>
    %cst_151 = arith.constant 0.000000e+00 : f32
    %599 = vector.broadcast %cst_151 : f32 to vector<2x32xf32>
    %600 = arith.subf %599, %598 : vector<2x32xf32>
    %601 = math.exp %600 : vector<2x32xf32>
    %cst_152 = arith.constant 1.000000e+00 : f32
    %602 = vector.broadcast %cst_152 : f32 to vector<2x32xf32>
    %603 = arith.addf %602, %601 : vector<2x32xf32>
    %604 = tpu.reciprocal %603 : vector<2x32xf32> -> vector<2x32xf32>
    %605 = arith.mulf %598, %604 : vector<2x32xf32>
    %606 = tpu.concatenate %503, %537, %571, %605 in 1 : vector<2x32xf32>, vector<2x32xf32>, vector<2x32xf32>, vector<2x32xf32> -> vector<2x128xf32>
    %c0_153 = arith.constant 0 : index
    %c0_154 = arith.constant 0 : index
    %607 = vector.load %arg9[%c0_153, %c0_154] : memref<2x128xf32, #tpu.memory_space<vmem>>, vector<2x128xf32>
    tpu.vector_store %arg9[%c0_153, %c0_154], %606 {strides = array<i32>} : memref<2x128xf32, #tpu.memory_space<vmem>>, vector<2x128xf32>,
    return
  }
}

</mosaic_0001>

<llo_original>
// kernel: tpu_custom_call.1
$region0: #{tpu_custom_call.1}
  #allocation0 [shape = 'u32[]', space=smem, size = 0x4, offset = 0x4, fixed_abs, tag = 'smem constant byte address 0x4 - core index']
  #allocation1 [shape = 'u32[72,128]{1,0:T(1,128)}', space=vmem, size = 0x9000, scoped, tag = 'internal scratch']
  %s0 = inlined_call_operand.vmem [shape: f32[2,720], index: 0, kind: input, shape index: {}]
  %s1 = inlined_call_operand.hbm [shape: bf16[720,512], index: 1, kind: input, shape index: {}]
  %s2 = inlined_call_operand.vmem [shape: bf16[128,128], index: 2, kind: input, shape index: {}]
  %s3 = inlined_call_operand.hbm [shape: bf16[128,128], index: 3, kind: input, shape index: {}]
  %s4 = inlined_call_operand.vmem [shape: bf16[128,32], index: 4, kind: input, shape index: {}]
  %s5 = inlined_call_operand.vmem [shape: f32[3,128], index: 5, kind: input, shape index: {}]
  %s6 = inlined_call_operand.vmem [shape: f32[3,128], index: 6, kind: input, shape index: {}]
  %s7 = inlined_call_operand.hbm [shape: f32[3,128], index: 7, kind: input, shape index: {}]
  %s8 = inlined_call_operand.hbm [shape: f32[3,32], index: 8, kind: input, shape index: {}]
  %s9 = inlined_call_operand.hbm [shape: f32[2,128], index: 9, kind: output, shape index: {}]
  %s10 = sld [smem:[#allocation0]]
  $region62: #{tpu_custom_call.1} parent=0
    _
  %s12 = ssub.s32 1, %s10
  %s13 = scalar_select 0, %s12, %s10
  $region1: #{tpu_custom_call.1} parent=0
    #allocation2 [shape = 'u8[737280]{0}', space=vmem, size = 0xb4000, scoped, tag = 'input window, operand 1, single buffered']
    #allocation3 [shape = 's32[1]{0}', space=sflag, size = 0x4, scoped, tag = 'scoped memory for tpu_custom_call.1']
    #allocation4 [shape = 's32[1]{0}', space=sflag, size = 0x4, scoped, tag = 'scoped memory for tpu_custom_call.1']
    #allocation5 [shape = 'u8[32768]{0}', space=vmem, size = 0x8000, scoped, tag = 'input window, operand 3, single buffered']
    #allocation6 [shape = 's32[1]{0}', space=sflag, size = 0x4, scoped, tag = 'scoped memory for tpu_custom_call.1']
    #allocation7 [shape = 'u8[2048]{0}', space=vmem, size = 0x800, scoped, tag = 'input window, operand 7, single buffered']
    #allocation8 [shape = 'u8[2048]{0}', space=vmem, size = 0x800, scoped, tag = 'input window, operand 8, single buffered']
    #allocation9 [shape = 's32[1]{0}', space=sflag, size = 0x4, scoped, tag = 'scoped memory for tpu_custom_call.1']
    #allocation10 [shape = 'u8[1024]{0}', space=vmem, size = 0x400, scoped, tag = 'output window, operand 0, single buffered']
    %14 = vsyncpa [#allocation3], 0
    %15 = vsyncpa [#allocation6], 0
    %16 = vsyncpa [#allocation9], 0
    %17 = vsyncpa [#allocation4], 0
    // Predicated region
    $region2: #{tpu_custom_call.1} parent=1 // pred_check
      _
    $region3: #{tpu_custom_call.1} parent=1 // pred_check_branch
      %19 = sbr.rel (0) target = $region5
    $region4: #{tpu_custom_call.1} parent=1 // pred_region
      _
    $region5: #{tpu_custom_call.1} parent=1 // pred_fallthru
      _
    // Predicated region
    $region6: #{tpu_custom_call.1} parent=1 // pred_check
      _
    $region7: #{tpu_custom_call.1} parent=1 // pred_check_branch
      %21 = sbr.rel (0) target = $region9
    $region8: #{tpu_custom_call.1} parent=1 // pred_region
      %23 = vsyncadd [#allocation3], 0
      %s24 = sshll.u32 %s1, 4
      %s25 = int_to_ptr.hbm [resolvable:$true] %s24
      %s26 = sshll.u32 [#allocation2], 4
      %s27 = int_to_ptr.vmem [resolvable:$true] %s26
      %32 = dma.hbm_to_vmem [thread:$0]  %s25, 23040, %s27, [#allocation3], 256, 256, 16
    $region9: #{tpu_custom_call.1} parent=1 // pred_fallthru
      _
    // Predicated region
    $region10: #{tpu_custom_call.1} parent=1 // pred_check
      _
    $region11: #{tpu_custom_call.1} parent=1 // pred_check_branch
      %34 = sbr.rel (0) target = $region13
    $region12: #{tpu_custom_call.1} parent=1 // pred_region
      _
    $region13: #{tpu_custom_call.1} parent=1 // pred_fallthru
      _
    // Predicated region
    $region14: #{tpu_custom_call.1} parent=1 // pred_check
      _
    $region15: #{tpu_custom_call.1} parent=1 // pred_check_branch
      %36 = sbr.rel (0) target = $region17
    $region16: #{tpu_custom_call.1} parent=1 // pred_region
      %38 = vsyncadd [#allocation6], 0
      %s39 = sshll.u32 %s3, 4
      %s40 = int_to_ptr.hbm [resolvable:$true] %s39
      %s41 = sshll.u32 [#allocation5], 4
      %s42 = int_to_ptr.vmem [resolvable:$true] %s41
      %47 = dma.hbm_to_vmem [thread:$0]  %s40, 1024, %s42, [#allocation6], 64, 64, 4
    $region17: #{tpu_custom_call.1} parent=1 // pred_fallthru
      _
    // Predicated region
    $region18: #{tpu_custom_call.1} parent=1 // pred_check
      _
    $region19: #{tpu_custom_call.1} parent=1 // pred_check_branch
      %49 = sbr.rel (0) target = $region21
    $region20: #{tpu_custom_call.1} parent=1 // pred_region
      _
    $region21: #{tpu_custom_call.1} parent=1 // pred_fallthru
      _
    // Predicated region
    $region22: #{tpu_custom_call.1} parent=1 // pred_check
      _
    $region23: #{tpu_custom_call.1} parent=1 // pred_check_branch
      %51 = sbr.rel (0) target = $region25
    $region24: #{tpu_custom_call.1} parent=1 // pred_region
      _
    $region25: #{tpu_custom_call.1} parent=1 // pred_fallthru
      _
    // Predicated region
    $region26: #{tpu_custom_call.1} parent=1 // pred_check
      _
    $region27: #{tpu_custom_call.1} parent=1 // pred_check_branch
      %53 = sbr.rel (0) target = $region29
    $region28: #{tpu_custom_call.1} parent=1 // pred_region
      _
    $region29: #{tpu_custom_call.1} parent=1 // pred_fallthru
      _
    // Predicated region
    $region30: #{tpu_custom_call.1} parent=1 // pred_check
      _
    $region31: #{tpu_custom_call.1} parent=1 // pred_check_branch
      %55 = sbr.rel (0) target = $region33
    $region32: #{tpu_custom_call.1} parent=1 // pred_region
      %57 = vsyncadd [#allocation6], 0
      %s59 = sshll.u32 %s7, 4
      %s60 = int_to_ptr.hbm [resolvable:$true] %s59
      %s61 = sshll.u32 [#allocation7], 4
      %s62 = int_to_ptr.vmem [resolvable:$true] %s61
      %64 = dma.hbm_to_vmem [thread:$0]  %s60, 64, %s62, [#allocation6]
    $region33: #{tpu_custom_call.1} parent=1 // pred_fallthru
      _
    // Predicated region
    $region34: #{tpu_custom_call.1} parent=1 // pred_check
      _
    $region35: #{tpu_custom_call.1} parent=1 // pred_check_branch
      %66 = sbr.rel (0) target = $region37
    $region36: #{tpu_custom_call.1} parent=1 // pred_region
      %68 = vsyncadd [#allocation9], 0
      %s70 = sshll.u32 %s8, 4
      %s71 = int_to_ptr.hbm [resolvable:$true] %s70
      %s72 = sshll.u32 [#allocation8], 4
      %s73 = int_to_ptr.vmem [resolvable:$true] %s72
      %75 = dma.hbm_to_vmem [thread:$0]  %s71, 64, %s73, [#allocation9]
    $region37: #{tpu_custom_call.1} parent=1 // pred_fallthru
      _
    // Predicated region
    $region38: #{tpu_custom_call.1} parent=1 // pred_check
      _
    $region39: #{tpu_custom_call.1} parent=1 // pred_check_branch
      %77 = sbr.rel (0) target = $region41
    $region40: #{tpu_custom_call.1} parent=1 // pred_region
      %79 = dma.done [#allocation3], 23040
    $region41: #{tpu_custom_call.1} parent=1 // pred_fallthru
      _
    // Predicated region
    $region42: #{tpu_custom_call.1} parent=1 // pred_check
      _
    $region43: #{tpu_custom_call.1} parent=1 // pred_check_branch
      %81 = sbr.rel (0) target = $region45
    $region44: #{tpu_custom_call.1} parent=1 // pred_region
      %83 = dma.done [#allocation6], 1024
    $region45: #{tpu_custom_call.1} parent=1 // pred_fallthru
      _
    // Predicated region
    $region46: #{tpu_custom_call.1} parent=1 // pred_check
      _
    $region47: #{tpu_custom_call.1} parent=1 // pred_check_branch
      %85 = sbr.rel (0) target = $region49
    $region48: #{tpu_custom_call.1} parent=1 // pred_region
      %87 = dma.done [#allocation6], 64
    $region49: #{tpu_custom_call.1} parent=1 // pred_fallthru
      _
    // Predicated region
    $region50: #{tpu_custom_call.1} parent=1 // pred_check
      _
    $region51: #{tpu_custom_call.1} parent=1 // pred_check_branch
      %89 = sbr.rel (0) target = $region53
    $region52: #{tpu_custom_call.1} parent=1 // pred_region
      %91 = dma.done [#allocation9], 64
    $region53: #{tpu_custom_call.1} parent=1 // pred_fallthru
      _
    %v93 = vld [vmem:[%s0] sm:$0xff]
    %v94 = vld [vmem:[%s0 + $0x8] sm:$0xf]
    %97 = vst [vmem:[#allocation1] ss:$4 sm:$0xff] %v93
    %s98 = scalar_lea.vmem [#allocation1], 32
    %99 = vst [vmem:[%s98] ss:$4 sm:$0xff] %v94
    %v100 = vld.sshfl [vmem:[#allocation1] sm:$0xff pattern:$0x73625140]
    %v101 = vld.sshfl [vmem:[#allocation1 + $0x8] sm:$0xff pattern:$0x73625140]
    %v102 = vld.sshfl [vmem:[#allocation1 + $0x10] sm:$0xff pattern:$0x73625140]
    %v103 = vld.sshfl [vmem:[#allocation1 + $0x18] sm:$0xff pattern:$0x73625140]
    %v104 = vld.sshfl [vmem:[#allocation1 + $0x20] sm:$0xff pattern:$0x73625140]
    %v105 = vld.sshfl [vmem:[#allocation1 + $0x28] sm:$0xff pattern:$0x73625140]
    %v112 = vpack.c.bf16 %v100, %v100
    %v113 = vpack.c.bf16 %v101, %v101
    %v114 = vpack.c.bf16 %v102, %v102
    %v115 = vpack.c.bf16 %v103, %v103
    %v116 = vpack.c.bf16 %v104, %v104
    %v117 = vpack.c.bf16 %v105, %v105
    %v118 = vld [vmem:[#allocation2] sm:$0xff]
    %v119 = vld [vmem:[#allocation2 + $0x8] sm:$0xff]
    %v120 = vld [vmem:[#allocation2 + $0x10] sm:$0xff]
    %v121 = vld [vmem:[#allocation2 + $0x18] sm:$0xff]
    %v122 = vld [vmem:[#allocation2 + $0x20] sm:$0xff]
    %v123 = vld [vmem:[#allocation2 + $0x28] sm:$0xff]
    %v124 = vld [vmem:[#allocation2 + $0x30] sm:$0xff]
    %v125 = vld [vmem:[#allocation2 + $0x38] sm:$0xff]
    %v126 = vld [vmem:[#allocation2 + $0x40] sm:$0xff]
    %v127 = vld [vmem:[#allocation2 + $0x48] sm:$0xff]
    %v128 = vld [vmem:[#allocation2 + $0x50] sm:$0xff]
    %v129 = vld [vmem:[#allocation2 + $0x58] sm:$0xff]
    %v130 = vld [vmem:[#allocation2 + $0x60] sm:$0xff]
    %v131 = vld [vmem:[#allocation2 + $0x68] sm:$0xff]
    %v132 = vld [vmem:[#allocation2 + $0x70] sm:$0xff]
    %v133 = vld [vmem:[#allocation2 + $0x78] sm:$0xff]
    %v134 = vld [vmem:[#allocation2 + $0x80] sm:$0xff]
    %v135 = vld [vmem:[#allocation2 + $0x88] sm:$0xff]
    %v136 = vld [vmem:[#allocation2 + $0x90] sm:$0xff]
    %v137 = vld [vmem:[#allocation2 + $0x98] sm:$0xff]
    %v138 = vld [vmem:[#allocation2 + $0xa0] sm:$0xff]
    %v139 = vld [vmem:[#allocation2 + $0xa8] sm:$0xff]
    %v140 = vld [vmem:[#allocation2 + $0xb0] sm:$0xff]
    %v141 = vld [vmem:[#allocation2 + $0xb8] sm:$0xff]
    %v142 = vld [vmem:[#allocation2 + $0xc0] sm:$0xff]
    %v143 = vld [vmem:[#allocation2 + $0xc8] sm:$0xff]
    %v144 = vld [vmem:[#allocation2 + $0xd0] sm:$0xff]
    %v145 = vld [vmem:[#allocation2 + $0xd8] sm:$0xff]
    %v146 = vld [vmem:[#allocation2 + $0xe0] sm:$0xff]
    %v147 = vld [vmem:[#allocation2 + $0xe8] sm:$0xff]
    %v148 = vld [vmem:[#allocation2 + $0xf0] sm:$0xff]
    %v149 = vld [vmem:[#allocation2 + $0xf8] sm:$0xff]
    %v150 = vld [vmem:[#allocation2 + $0x100] sm:$0xff]
    %v151 = vld [vmem:[#allocation2 + $0x108] sm:$0xff]
    %v152 = vld [vmem:[#allocation2 + $0x110] sm:$0xff]
    %v153 = vld [vmem:[#allocation2 + $0x118] sm:$0xff]
    %v154 = vld [vmem:[#allocation2 + $0x120] sm:$0xff]
    %v155 = vld [vmem:[#allocation2 + $0x128] sm:$0xff]
    %v156 = vld [vmem:[#allocation2 + $0x130] sm:$0xff]
    %v157 = vld [vmem:[#allocation2 + $0x138] sm:$0xff]
    %v158 = vld [vmem:[#allocation2 + $0x140] sm:$0xff]
    %v159 = vld [vmem:[#allocation2 + $0x148] sm:$0xff]
    %v160 = vld [vmem:[#allocation2 + $0x150] sm:$0xff]
    %v161 = vld [vmem:[#allocation2 + $0x158] sm:$0xff]
    %v162 = vld [vmem:[#allocation2 + $0x160] sm:$0xff]
    %v163 = vld [vmem:[#allocation2 + $0x168] sm:$0xff]
    %v164 = vld [vmem:[#allocation2 + $0x170] sm:$0xff]
    %v165 = vld [vmem:[#allocation2 + $0x178] sm:$0xff]
    %v166 = vld [vmem:[#allocation2 + $0x180] sm:$0xff]
    %v167 = vld [vmem:[#allocation2 + $0x188] sm:$0xff]
    %v168 = vld [vmem:[#allocation2 + $0x190] sm:$0xff]
    %v169 = vld [vmem:[#allocation2 + $0x198] sm:$0xff]
    %v170 = vld [vmem:[#allocation2 + $0x1a0] sm:$0xff]
    %v171 = vld [vmem:[#allocation2 + $0x1a8] sm:$0xff]
    %v172 = vld [vmem:[#allocation2 + $0x1b0] sm:$0xff]
    %v173 = vld [vmem:[#allocation2 + $0x1b8] sm:$0xff]
    %v174 = vld [vmem:[#allocation2 + $0x1c0] sm:$0xff]
    %v175 = vld [vmem:[#allocation2 + $0x1c8] sm:$0xff]
    %v176 = vld [vmem:[#allocation2 + $0x1d0] sm:$0xff]
    %v177 = vld [vmem:[#allocation2 + $0x1d8] sm:$0xff]
    %v178 = vld [vmem:[#allocation2 + $0x1e0] sm:$0xff]
    %v179 = vld [vmem:[#allocation2 + $0x1e8] sm:$0xff]
    %v180 = vld [vmem:[#allocation2 + $0x1f0] sm:$0xff]
    %v181 = vld [vmem:[#allocation2 + $0x1f8] sm:$0xff]
    %v182 = vld [vmem:[#allocation2 + $0x200] sm:$0xff]
    %v183 = vld [vmem:[#allocation2 + $0x208] sm:$0xff]
    %v184 = vld [vmem:[#allocation2 + $0x210] sm:$0xff]
    %v185 = vld [vmem:[#allocation2 + $0x218] sm:$0xff]
    %v186 = vld [vmem:[#allocation2 + $0x220] sm:$0xff]
    %v187 = vld [vmem:[#allocation2 + $0x228] sm:$0xff]
    %v188 = vld [vmem:[#allocation2 + $0x230] sm:$0xff]
    %v189 = vld [vmem:[#allocation2 + $0x238] sm:$0xff]
    %v190 = vld [vmem:[#allocation2 + $0x240] sm:$0xff]
    %v191 = vld [vmem:[#allocation2 + $0x248] sm:$0xff]
    %v192 = vld [vmem:[#allocation2 + $0x250] sm:$0xff]
    %v193 = vld [vmem:[#allocation2 + $0x258] sm:$0xff]
    %v194 = vld [vmem:[#allocation2 + $0x260] sm:$0xff]
    %v195 = vld [vmem:[#allocation2 + $0x268] sm:$0xff]
    %v196 = vld [vmem:[#allocation2 + $0x270] sm:$0xff]
    %v197 = vld [vmem:[#allocation2 + $0x278] sm:$0xff]
    %v198 = vld [vmem:[#allocation2 + $0x280] sm:$0xff]
    %v199 = vld [vmem:[#allocation2 + $0x288] sm:$0xff]
    %v200 = vld [vmem:[#allocation2 + $0x290] sm:$0xff]
    %v201 = vld [vmem:[#allocation2 + $0x298] sm:$0xff]
    %v202 = vld [vmem:[#allocation2 + $0x2a0] sm:$0xff]
    %v203 = vld [vmem:[#allocation2 + $0x2a8] sm:$0xff]
    %v204 = vld [vmem:[#allocation2 + $0x2b0] sm:$0xff]
    %v205 = vld [vmem:[#allocation2 + $0x2b8] sm:$0xff]
    %v206 = vld [vmem:[#allocation2 + $0x2c0] sm:$0xff]
    %v207 = vld [vmem:[#allocation2 + $0x2c8] sm:$0xff]
    %v208 = vld [vmem:[#allocation2 + $0x2d0] sm:$0xff]
    %v209 = vld [vmem:[#allocation2 + $0x2d8] sm:$0xff]
    %v210 = vld [vmem:[#allocation2 + $0x2e0] sm:$0xff]
    %v211 = vld [vmem:[#allocation2 + $0x2e8] sm:$0xff]
    %v212 = vld [vmem:[#allocation2 + $0x2f0] sm:$0xff]
    %v213 = vld [vmem:[#allocation2 + $0x2f8] sm:$0xff]
    %v214 = vld [vmem:[#allocation2 + $0x300] sm:$0xff]
    %v215 = vld [vmem:[#allocation2 + $0x308] sm:$0xff]
    %v216 = vld [vmem:[#allocation2 + $0x310] sm:$0xff]
    %v217 = vld [vmem:[#allocation2 + $0x318] sm:$0xff]
    %v218 = vld [vmem:[#allocation2 + $0x320] sm:$0xff]
    %v219 = vld [vmem:[#allocation2 + $0x328] sm:$0xff]
    %v220 = vld [vmem:[#allocation2 + $0x330] sm:$0xff]
    %v221 = vld [vmem:[#allocation2 + $0x338] sm:$0xff]
    %v222 = vld [vmem:[#allocation2 + $0x340] sm:$0xff]
    %v223 = vld [vmem:[#allocation2 + $0x348] sm:$0xff]
    %v224 = vld [vmem:[#allocation2 + $0x350] sm:$0xff]
    %v225 = vld [vmem:[#allocation2 + $0x358] sm:$0xff]
    %v226 = vld [vmem:[#allocation2 + $0x360] sm:$0xff]
    %v227 = vld [vmem:[#allocation2 + $0x368] sm:$0xff]
    %v228 = vld [vmem:[#allocation2 + $0x370] sm:$0xff]
    %v229 = vld [vmem:[#allocation2 + $0x378] sm:$0xff]
    %v230 = vld [vmem:[#allocation2 + $0x380] sm:$0xff]
    %v231 = vld [vmem:[#allocation2 + $0x388] sm:$0xff]
    %v232 = vld [vmem:[#allocation2 + $0x390] sm:$0xff]
    %v233 = vld [vmem:[#allocation2 + $0x398] sm:$0xff]
    %v234 = vld [vmem:[#allocation2 + $0x3a0] sm:$0xff]
    %v235 = vld [vmem:[#allocation2 + $0x3a8] sm:$0xff]
    %v236 = vld [vmem:[#allocation2 + $0x3b0] sm:$0xff]
    %v237 = vld [vmem:[#allocation2 + $0x3b8] sm:$0xff]
    %v238 = vld [vmem:[#allocation2 + $0x3c0] sm:$0xff]
    %v239 = vld [vmem:[#allocation2 + $0x3c8] sm:$0xff]
    %v240 = vld [vmem:[#allocation2 + $0x3d0] sm:$0xff]
    %v241 = vld [vmem:[#allocation2 + $0x3d8] sm:$0xff]
    %v242 = vld [vmem:[#allocation2 + $0x3e0] sm:$0xff]
    %v243 = vld [vmem:[#allocation2 + $0x3e8] sm:$0xff]
    %v244 = vld [vmem:[#allocation2 + $0x3f0] sm:$0xff]
    %v245 = vld [vmem:[#allocation2 + $0x3f8] sm:$0xff]
    %v246 = vld [vmem:[#allocation2 + $0x400] sm:$0xff]
    %v247 = vld [vmem:[#allocation2 + $0x408] sm:$0xff]
    %v248 = vld [vmem:[#allocation2 + $0x410] sm:$0xff]
    %v249 = vld [vmem:[#allocation2 + $0x418] sm:$0xff]
    %v250 = vld [vmem:[#allocation2 + $0x420] sm:$0xff]
    %v251 = vld [vmem:[#allocation2 + $0x428] sm:$0xff]
    %v252 = vld [vmem:[#allocation2 + $0x430] sm:$0xff]
    %v253 = vld [vmem:[#allocation2 + $0x438] sm:$0xff]
    %v254 = vld [vmem:[#allocation2 + $0x440] sm:$0xff]
    %v255 = vld [vmem:[#allocation2 + $0x448] sm:$0xff]
    %v256 = vld [vmem:[#allocation2 + $0x450] sm:$0xff]
    %v257 = vld [vmem:[#allocation2 + $0x458] sm:$0xff]
    %v258 = vld [vmem:[#allocation2 + $0x460] sm:$0xff]
    %v259 = vld [vmem:[#allocation2 + $0x468] sm:$0xff]
    %v260 = vld [vmem:[#allocation2 + $0x470] sm:$0xff]
    %v261 = vld [vmem:[#allocation2 + $0x478] sm:$0xff]
    %v262 = vld [vmem:[#allocation2 + $0x480] sm:$0xff]
    %v263 = vld [vmem:[#allocation2 + $0x488] sm:$0xff]
    %v264 = vld [vmem:[#allocation2 + $0x490] sm:$0xff]
    %v265 = vld [vmem:[#allocation2 + $0x498] sm:$0xff]
    %v266 = vld [vmem:[#allocation2 + $0x4a0] sm:$0xff]
    %v267 = vld [vmem:[#allocation2 + $0x4a8] sm:$0xff]
    %v268 = vld [vmem:[#allocation2 + $0x4b0] sm:$0xff]
    %v269 = vld [vmem:[#allocation2 + $0x4b8] sm:$0xff]
    %v270 = vld [vmem:[#allocation2 + $0x4c0] sm:$0xff]
    %v271 = vld [vmem:[#allocation2 + $0x4c8] sm:$0xff]
    %v272 = vld [vmem:[#allocation2 + $0x4d0] sm:$0xff]
    %v273 = vld [vmem:[#allocation2 + $0x4d8] sm:$0xff]
    %v274 = vld [vmem:[#allocation2 + $0x4e0] sm:$0xff]
    %v275 = vld [vmem:[#allocation2 + $0x4e8] sm:$0xff]
    %v276 = vld [vmem:[#allocation2 + $0x4f0] sm:$0xff]
    %v277 = vld [vmem:[#allocation2 + $0x4f8] sm:$0xff]
    %v278 = vld [vmem:[#allocation2 + $0x500] sm:$0xff]
    %v279 = vld [vmem:[#allocation2 + $0x508] sm:$0xff]
    %v280 = vld [vmem:[#allocation2 + $0x510] sm:$0xff]
    %v281 = vld [vmem:[#allocation2 + $0x518] sm:$0xff]
    %v282 = vld [vmem:[#allocation2 + $0x520] sm:$0xff]
    %v283 = vld [vmem:[#allocation2 + $0x528] sm:$0xff]
    %v284 = vld [vmem:[#allocation2 + $0x530] sm:$0xff]
    %v285 = vld [vmem:[#allocation2 + $0x538] sm:$0xff]
    %v286 = vld [vmem:[#allocation2 + $0x540] sm:$0xff]
    %v287 = vld [vmem:[#allocation2 + $0x548] sm:$0xff]
    %v288 = vld [vmem:[#allocation2 + $0x550] sm:$0xff]
    %v289 = vld [vmem:[#allocation2 + $0x558] sm:$0xff]
    %v290 = vld [vmem:[#allocation2 + $0x560] sm:$0xff]
    %v291 = vld [vmem:[#allocation2 + $0x568] sm:$0xff]
    %v292 = vld [vmem:[#allocation2 + $0x570] sm:$0xff]
    %v293 = vld [vmem:[#allocation2 + $0x578] sm:$0xff]
    %v294 = vld [vmem:[#allocation2 + $0x580] sm:$0xff]
    %v295 = vld [vmem:[#allocation2 + $0x588] sm:$0xff]
    %v296 = vld [vmem:[#allocation2 + $0x590] sm:$0xff]
    %v297 = vld [vmem:[#allocation2 + $0x598] sm:$0xff]
    %v478 = vunpack.c.l.b16 %v118
    %v479 = vunpack.c.h.b16 %v118
    %v480 = vunpack.c.l.b16 %v119
    %v481 = vunpack.c.h.b16 %v119
    %v482 = vunpack.c.l.b16 %v120
    %v483 = vunpack.c.h.b16 %v120
    %v484 = vunpack.c.l.b16 %v121
    %v485 = vunpack.c.h.b16 %v121
    %v486 = vunpack.c.l.b16 %v122
    %v487 = vunpack.c.h.b16 %v122
    %v488 = vunpack.c.l.b16 %v123
    %v489 = vunpack.c.h.b16 %v123
    %v490 = vunpack.c.l.b16 %v124
    %v491 = vunpack.c.h.b16 %v124
    %v492 = vunpack.c.l.b16 %v125
    %v493 = vunpack.c.h.b16 %v125
    %v494 = vunpack.c.l.b16 %v126
    %v495 = vunpack.c.h.b16 %v126
    %v496 = vunpack.c.l.b16 %v127
    %v497 = vunpack.c.h.b16 %v127
    %v498 = vunpack.c.l.b16 %v128
    %v499 = vunpack.c.h.b16 %v128
    %v500 = vunpack.c.l.b16 %v129
    %v501 = vunpack.c.h.b16 %v129
    %v502 = vunpack.c.l.b16 %v130
    %v503 = vunpack.c.h.b16 %v130
    %v504 = vunpack.c.l.b16 %v131
    %v505 = vunpack.c.h.b16 %v131
    %v506 = vunpack.c.l.b16 %v132
    %v507 = vunpack.c.h.b16 %v132
    %v508 = vunpack.c.l.b16 %v133
    %v509 = vunpack.c.h.b16 %v133
    %v510 = vunpack.c.l.b16 %v134
    %v511 = vunpack.c.h.b16 %v134
    %v512 = vunpack.c.l.b16 %v135
    %v513 = vunpack.c.h.b16 %v135
    %v514 = vunpack.c.l.b16 %v136
    %v515 = vunpack.c.h.b16 %v136
    %v516 = vunpack.c.l.b16 %v137
    %v517 = vunpack.c.h.b16 %v137
    %v518 = vunpack.c.l.b16 %v138
    %v519 = vunpack.c.h.b16 %v138
    %v520 = vunpack.c.l.b16 %v139
    %v521 = vunpack.c.h.b16 %v139
    %v522 = vunpack.c.l.b16 %v140
    %v523 = vunpack.c.h.b16 %v140
    %v524 = vunpack.c.l.b16 %v141
    %v525 = vunpack.c.h.b16 %v141
    %v526 = vunpack.c.l.b16 %v142
    %v527 = vunpack.c.h.b16 %v142
    %v528 = vunpack.c.l.b16 %v143
    %v529 = vunpack.c.h.b16 %v143
    %v530 = vunpack.c.l.b16 %v144
    %v531 = vunpack.c.h.b16 %v144
    %v532 = vunpack.c.l.b16 %v145
    %v533 = vunpack.c.h.b16 %v145
    %v534 = vunpack.c.l.b16 %v146
    %v535 = vunpack.c.h.b16 %v146
    %v536 = vunpack.c.l.b16 %v147
    %v537 = vunpack.c.h.b16 %v147
    %v538 = vunpack.c.l.b16 %v148
    %v539 = vunpack.c.h.b16 %v148
    %v540 = vunpack.c.l.b16 %v149
    %v541 = vunpack.c.h.b16 %v149
    %v542 = vunpack.c.l.b16 %v150
    %v543 = vunpack.c.h.b16 %v150
    %v544 = vunpack.c.l.b16 %v151
    %v545 = vunpack.c.h.b16 %v151
    %v546 = vunpack.c.l.b16 %v152
    %v547 = vunpack.c.h.b16 %v152
    %v548 = vunpack.c.l.b16 %v153
    %v549 = vunpack.c.h.b16 %v153
    %v550 = vunpack.c.l.b16 %v154
    %v551 = vunpack.c.h.b16 %v154
    %v552 = vunpack.c.l.b16 %v155
    %v553 = vunpack.c.h.b16 %v155
    %v554 = vunpack.c.l.b16 %v156
    %v555 = vunpack.c.h.b16 %v156
    %v556 = vunpack.c.l.b16 %v157
    %v557 = vunpack.c.h.b16 %v157
    %v558 = vunpack.c.l.b16 %v158
    %v559 = vunpack.c.h.b16 %v158
    %v560 = vunpack.c.l.b16 %v159
    %v561 = vunpack.c.h.b16 %v159
    %v562 = vunpack.c.l.b16 %v160
    %v563 = vunpack.c.h.b16 %v160
    %v564 = vunpack.c.l.b16 %v161
    %v565 = vunpack.c.h.b16 %v161
    %v566 = vunpack.c.l.b16 %v162
    %v567 = vunpack.c.h.b16 %v162
    %v568 = vunpack.c.l.b16 %v163
    %v569 = vunpack.c.h.b16 %v163
    %v570 = vunpack.c.l.b16 %v164
    %v571 = vunpack.c.h.b16 %v164
    %v572 = vunpack.c.l.b16 %v165
    %v573 = vunpack.c.h.b16 %v165
    %v574 = vunpack.c.l.b16 %v166
    %v575 = vunpack.c.h.b16 %v166
    %v576 = vunpack.c.l.b16 %v167
    %v577 = vunpack.c.h.b16 %v167
    %v578 = vunpack.c.l.b16 %v168
    %v579 = vunpack.c.h.b16 %v168
    %v580 = vunpack.c.l.b16 %v169
    %v581 = vunpack.c.h.b16 %v169
    %v582 = vunpack.c.l.b16 %v170
    %v583 = vunpack.c.h.b16 %v170
    %v584 = vunpack.c.l.b16 %v171
    %v585 = vunpack.c.h.b16 %v171
    %v586 = vunpack.c.l.b16 %v172
    %v587 = vunpack.c.h.b16 %v172
    %v588 = vunpack.c.l.b16 %v173
    %v589 = vunpack.c.h.b16 %v173
    %v590 = vunpack.c.l.b16 %v174
    %v591 = vunpack.c.h.b16 %v174
    %v592 = vunpack.c.l.b16 %v175
    %v593 = vunpack.c.h.b16 %v175
    %v594 = vunpack.c.l.b16 %v176
    %v595 = vunpack.c.h.b16 %v176
    %v596 = vunpack.c.l.b16 %v177
    %v597 = vunpack.c.h.b16 %v177
    %v598 = vunpack.c.l.b16 %v178
    %v599 = vunpack.c.h.b16 %v178
    %v600 = vunpack.c.l.b16 %v179
    %v601 = vunpack.c.h.b16 %v179
    %v602 = vunpack.c.l.b16 %v180
    %v603 = vunpack.c.h.b16 %v180
    %v604 = vunpack.c.l.b16 %v181
    %v605 = vunpack.c.h.b16 %v181
    %v606 = vunpack.c.l.b16 %v182
    %v607 = vunpack.c.h.b16 %v182
    %v608 = vunpack.c.l.b16 %v183
    %v609 = vunpack.c.h.b16 %v183
    %v610 = vunpack.c.l.b16 %v184
    %v611 = vunpack.c.h.b16 %v184
    %v612 = vunpack.c.l.b16 %v185
    %v613 = vunpack.c.h.b16 %v185
    %v614 = vunpack.c.l.b16 %v186
    %v615 = vunpack.c.h.b16 %v186
    %v616 = vunpack.c.l.b16 %v187
    %v617 = vunpack.c.h.b16 %v187
    %v618 = vunpack.c.l.b16 %v188
    %v619 = vunpack.c.h.b16 %v188
    %v620 = vunpack.c.l.b16 %v189
    %v621 = vunpack.c.h.b16 %v189
    %v622 = vunpack.c.l.b16 %v190
    %v623 = vunpack.c.h.b16 %v190
    %v624 = vunpack.c.l.b16 %v191
    %v625 = vunpack.c.h.b16 %v191
    %v626 = vunpack.c.l.b16 %v192
    %v627 = vunpack.c.h.b16 %v192
    %v628 = vunpack.c.l.b16 %v193
    %v629 = vunpack.c.h.b16 %v193
    %v630 = vunpack.c.l.b16 %v194
    %v631 = vunpack.c.h.b16 %v194
    %v632 = vunpack.c.l.b16 %v195
    %v633 = vunpack.c.h.b16 %v195
    %v634 = vunpack.c.l.b16 %v196
    %v635 = vunpack.c.h.b16 %v196
    %v636 = vunpack.c.l.b16 %v197
    %v637 = vunpack.c.h.b16 %v197
    %v638 = vunpack.c.l.b16 %v198
    %v639 = vunpack.c.h.b16 %v198
    %v640 = vunpack.c.l.b16 %v199
    %v641 = vunpack.c.h.b16 %v199
    %v642 = vunpack.c.l.b16 %v200
    %v643 = vunpack.c.h.b16 %v200
    %v644 = vunpack.c.l.b16 %v201
    %v645 = vunpack.c.h.b16 %v201
    %v646 = vunpack.c.l.b16 %v202
    %v647 = vunpack.c.h.b16 %v202
    %v648 = vunpack.c.l.b16 %v203
    %v649 = vunpack.c.h.b16 %v203
    %v650 = vunpack.c.l.b16 %v204
    %v651 = vunpack.c.h.b16 %v204
    %v652 = vunpack.c.l.b16 %v205
    %v653 = vunpack.c.h.b16 %v205
    %v654 = vunpack.c.l.b16 %v206
    %v655 = vunpack.c.h.b16 %v206
    %v656 = vunpack.c.l.b16 %v207
    %v657 = vunpack.c.h.b16 %v207
    %v658 = vunpack.c.l.b16 %v208
    %v659 = vunpack.c.h.b16 %v208
    %v660 = vunpack.c.l.b16 %v209
    %v661 = vunpack.c.h.b16 %v209
    %v662 = vunpack.c.l.b16 %v210
    %v663 = vunpack.c.h.b16 %v210
    %v664 = vunpack.c.l.b16 %v211
    %v665 = vunpack.c.h.b16 %v211
    %v666 = vunpack.c.l.b16 %v212
    %v667 = vunpack.c.h.b16 %v212
    %v668 = vunpack.c.l.b16 %v213
    %v669 = vunpack.c.h.b16 %v213
    %v670 = vunpack.c.l.b16 %v214
    %v671 = vunpack.c.h.b16 %v214
    %v672 = vunpack.c.l.b16 %v215
    %v673 = vunpack.c.h.b16 %v215
    %v674 = vunpack.c.l.b16 %v216
    %v675 = vunpack.c.h.b16 %v216
    %v676 = vunpack.c.l.b16 %v217
    %v677 = vunpack.c.h.b16 %v217
    %v678 = vunpack.c.l.b16 %v218
    %v679 = vunpack.c.h.b16 %v218
    %v680 = vunpack.c.l.b16 %v219
    %v681 = vunpack.c.h.b16 %v219
    %v682 = vunpack.c.l.b16 %v220
    %v683 = vunpack.c.h.b16 %v220
    %v684 = vunpack.c.l.b16 %v221
    %v685 = vunpack.c.h.b16 %v221
    %v686 = vunpack.c.l.b16 %v222
    %v687 = vunpack.c.h.b16 %v222
    %v688 = vunpack.c.l.b16 %v223
    %v689 = vunpack.c.h.b16 %v223
    %v690 = vunpack.c.l.b16 %v224
    %v691 = vunpack.c.h.b16 %v224
    %v692 = vunpack.c.l.b16 %v225
    %v693 = vunpack.c.h.b16 %v225
    %v694 = vunpack.c.l.b16 %v226
    %v695 = vunpack.c.h.b16 %v226
    %v696 = vunpack.c.l.b16 %v227
    %v697 = vunpack.c.h.b16 %v227
    %v698 = vunpack.c.l.b16 %v228
    %v699 = vunpack.c.h.b16 %v228
    %v700 = vunpack.c.l.b16 %v229
    %v701 = vunpack.c.h.b16 %v229
    %v702 = vunpack.c.l.b16 %v230
    %v703 = vunpack.c.h.b16 %v230
    %v704 = vunpack.c.l.b16 %v231
    %v705 = vunpack.c.h.b16 %v231
    %v706 = vunpack.c.l.b16 %v232
    %v707 = vunpack.c.h.b16 %v232
    %v708 = vunpack.c.l.b16 %v233
    %v709 = vunpack.c.h.b16 %v233
    %v710 = vunpack.c.l.b16 %v234
    %v711 = vunpack.c.h.b16 %v234
    %v712 = vunpack.c.l.b16 %v235
    %v713 = vunpack.c.h.b16 %v235
    %v714 = vunpack.c.l.b16 %v236
    %v715 = vunpack.c.h.b16 %v236
    %v716 = vunpack.c.l.b16 %v237
    %v717 = vunpack.c.h.b16 %v237
    %v718 = vunpack.c.l.b16 %v238
    %v719 = vunpack.c.h.b16 %v238
    %v720 = vunpack.c.l.b16 %v239
    %v721 = vunpack.c.h.b16 %v239
    %v722 = vunpack.c.l.b16 %v240
    %v723 = vunpack.c.h.b16 %v240
    %v724 = vunpack.c.l.b16 %v241
    %v725 = vunpack.c.h.b16 %v241
    %v726 = vunpack.c.l.b16 %v242
    %v727 = vunpack.c.h.b16 %v242
    %v728 = vunpack.c.l.b16 %v243
    %v729 = vunpack.c.h.b16 %v243
    %v730 = vunpack.c.l.b16 %v244
    %v731 = vunpack.c.h.b16 %v244
    %v732 = vunpack.c.l.b16 %v245
    %v733 = vunpack.c.h.b16 %v245
    %v734 = vunpack.c.l.b16 %v246
    %v735 = vunpack.c.h.b16 %v246
    %v736 = vunpack.c.l.b16 %v247
    %v737 = vunpack.c.h.b16 %v247
    %v738 = vunpack.c.l.b16 %v248
    %v739 = vunpack.c.h.b16 %v248
    %v740 = vunpack.c.l.b16 %v249
    %v741 = vunpack.c.h.b16 %v249
    %v742 = vunpack.c.l.b16 %v250
    %v743 = vunpack.c.h.b16 %v250
    %v744 = vunpack.c.l.b16 %v251
    %v745 = vunpack.c.h.b16 %v251
    %v746 = vunpack.c.l.b16 %v252
    %v747 = vunpack.c.h.b16 %v252
    %v748 = vunpack.c.l.b16 %v253
    %v749 = vunpack.c.h.b16 %v253
    %v750 = vunpack.c.l.b16 %v254
    %v751 = vunpack.c.h.b16 %v254
    %v752 = vunpack.c.l.b16 %v255
    %v753 = vunpack.c.h.b16 %v255
    %v754 = vunpack.c.l.b16 %v256
    %v755 = vunpack.c.h.b16 %v256
    %v756 = vunpack.c.l.b16 %v257
    %v757 = vunpack.c.h.b16 %v257
    %v758 = vunpack.c.l.b16 %v258
    %v759 = vunpack.c.h.b16 %v258
    %v760 = vunpack.c.l.b16 %v259
    %v761 = vunpack.c.h.b16 %v259
    %v762 = vunpack.c.l.b16 %v260
    %v763 = vunpack.c.h.b16 %v260
    %v764 = vunpack.c.l.b16 %v261
    %v765 = vunpack.c.h.b16 %v261
    %v766 = vunpack.c.l.b16 %v262
    %v767 = vunpack.c.h.b16 %v262
    %v768 = vunpack.c.l.b16 %v263
    %v769 = vunpack.c.h.b16 %v263
    %v770 = vunpack.c.l.b16 %v264
    %v771 = vunpack.c.h.b16 %v264
    %v772 = vunpack.c.l.b16 %v265
    %v773 = vunpack.c.h.b16 %v265
    %v774 = vunpack.c.l.b16 %v266
    %v775 = vunpack.c.h.b16 %v266
    %v776 = vunpack.c.l.b16 %v267
    %v777 = vunpack.c.h.b16 %v267
    %v778 = vunpack.c.l.b16 %v268
    %v779 = vunpack.c.h.b16 %v268
    %v780 = vunpack.c.l.b16 %v269
    %v781 = vunpack.c.h.b16 %v269
    %v782 = vunpack.c.l.b16 %v270
    %v783 = vunpack.c.h.b16 %v270
    %v784 = vunpack.c.l.b16 %v271
    %v785 = vunpack.c.h.b16 %v271
    %v786 = vunpack.c.l.b16 %v272
    %v787 = vunpack.c.h.b16 %v272
    %v788 = vunpack.c.l.b16 %v273
    %v789 = vunpack.c.h.b16 %v273
    %v790 = vunpack.c.l.b16 %v274
    %v791 = vunpack.c.h.b16 %v274
    %v792 = vunpack.c.l.b16 %v275
    %v793 = vunpack.c.h.b16 %v275
    %v794 = vunpack.c.l.b16 %v276
    %v795 = vunpack.c.h.b16 %v276
    %v796 = vunpack.c.l.b16 %v277
    %v797 = vunpack.c.h.b16 %v277
    %v798 = vunpack.c.l.b16 %v278
    %v799 = vunpack.c.h.b16 %v278
    %v800 = vunpack.c.l.b16 %v279
    %v801 = vunpack.c.h.b16 %v279
    %v802 = vunpack.c.l.b16 %v280
    %v803 = vunpack.c.h.b16 %v280
    %v804 = vunpack.c.l.b16 %v281
    %v805 = vunpack.c.h.b16 %v281
    %v806 = vunpack.c.l.b16 %v282
    %v807 = vunpack.c.h.b16 %v282
    %v808 = vunpack.c.l.b16 %v283
    %v809 = vunpack.c.h.b16 %v283
    %v810 = vunpack.c.l.b16 %v284
    %v811 = vunpack.c.h.b16 %v284
    %v812 = vunpack.c.l.b16 %v285
    %v813 = vunpack.c.h.b16 %v285
    %v814 = vunpack.c.l.b16 %v286
    %v815 = vunpack.c.h.b16 %v286
    %v816 = vunpack.c.l.b16 %v287
    %v817 = vunpack.c.h.b16 %v287
    %v818 = vunpack.c.l.b16 %v288
    %v819 = vunpack.c.h.b16 %v288
    %v820 = vunpack.c.l.b16 %v289
    %v821 = vunpack.c.h.b16 %v289
    %v822 = vunpack.c.l.b16 %v290
    %v823 = vunpack.c.h.b16 %v290
    %v824 = vunpack.c.l.b16 %v291
    %v825 = vunpack.c.h.b16 %v291
    %v826 = vunpack.c.l.b16 %v292
    %v827 = vunpack.c.h.b16 %v292
    %v828 = vunpack.c.l.b16 %v293
    %v829 = vunpack.c.h.b16 %v293
    %v830 = vunpack.c.l.b16 %v294
    %v831 = vunpack.c.h.b16 %v294
    %v832 = vunpack.c.l.b16 %v295
    %v833 = vunpack.c.h.b16 %v295
    %v834 = vunpack.c.l.b16 %v296
    %v835 = vunpack.c.h.b16 %v296
    %v836 = vunpack.c.l.b16 %v297
    %v837 = vunpack.c.h.b16 %v297
    %v838 = vpack.c.b16 %v482, %v478
    %v839 = vpack.c.b16 %v483, %v479
    %v840 = vpack.c.b16 %v484, %v480
    %v841 = vpack.c.b16 %v485, %v481
    %v842 = vpack.c.b16 %v490, %v486
    %v843 = vpack.c.b16 %v491, %v487
    %v844 = vpack.c.b16 %v492, %v488
    %v845 = vpack.c.b16 %v493, %v489
    %v846 = vpack.c.b16 %v498, %v494
    %v847 = vpack.c.b16 %v499, %v495
    %v848 = vpack.c.b16 %v500, %v496
    %v849 = vpack.c.b16 %v501, %v497
    %v850 = vpack.c.b16 %v506, %v502
    %v851 = vpack.c.b16 %v507, %v503
    %v852 = vpack.c.b16 %v508, %v504
    %v853 = vpack.c.b16 %v509, %v505
    %v854 = vpack.c.b16 %v514, %v510
    %v855 = vpack.c.b16 %v515, %v511
    %v856 = vpack.c.b16 %v516, %v512
    %v857 = vpack.c.b16 %v517, %v513
    %v858 = vpack.c.b16 %v522, %v518
    %v859 = vpack.c.b16 %v523, %v519
    %v860 = vpack.c.b16 %v524, %v520
    %v861 = vpack.c.b16 %v525, %v521
    %v862 = vpack.c.b16 %v530, %v526
    %v863 = vpack.c.b16 %v531, %v527
    %v864 = vpack.c.b16 %v532, %v528
    %v865 = vpack.c.b16 %v533, %v529
    %v866 = vpack.c.b16 %v538, %v534
    %v867 = vpack.c.b16 %v539, %v535
    %v868 = vpack.c.b16 %v540, %v536
    %v869 = vpack.c.b16 %v541, %v537
    %v870 = vpack.c.b16 %v546, %v542
    %v871 = vpack.c.b16 %v547, %v543
    %v872 = vpack.c.b16 %v548, %v544
    %v873 = vpack.c.b16 %v549, %v545
    %v874 = vpack.c.b16 %v554, %v550
    %v875 = vpack.c.b16 %v555, %v551
    %v876 = vpack.c.b16 %v556, %v552
    %v877 = vpack.c.b16 %v557, %v553
    %v878 = vpack.c.b16 %v562, %v558
    %v879 = vpack.c.b16 %v563, %v559
    %v880 = vpack.c.b16 %v564, %v560
    %v881 = vpack.c.b16 %v565, %v561
    %v882 = vpack.c.b16 %v570, %v566
    %v883 = vpack.c.b16 %v571, %v567
    %v884 = vpack.c.b16 %v572, %v568
    %v885 = vpack.c.b16 %v573, %v569
    %v886 = vpack.c.b16 %v578, %v574
    %v887 = vpack.c.b16 %v579, %v575
    %v888 = vpack.c.b16 %v580, %v576
    %v889 = vpack.c.b16 %v581, %v577
    %v890 = vpack.c.b16 %v586, %v582
    %v891 = vpack.c.b16 %v587, %v583
    %v892 = vpack.c.b16 %v588, %v584
    %v893 = vpack.c.b16 %v589, %v585
    %v894 = vpack.c.b16 %v594, %v590
    %v895 = vpack.c.b16 %v595, %v591
    %v896 = vpack.c.b16 %v596, %v592
    %v897 = vpack.c.b16 %v597, %v593
    %v898 = vpack.c.b16 %v602, %v598
    %v899 = vpack.c.b16 %v603, %v599
    %v900 = vpack.c.b16 %v604, %v600
    %v901 = vpack.c.b16 %v605, %v601
    %v902 = vpack.c.b16 %v610, %v606
    %v903 = vpack.c.b16 %v611, %v607
    %v904 = vpack.c.b16 %v612, %v608
    %v905 = vpack.c.b16 %v613, %v609
    %v906 = vpack.c.b16 %v618, %v614
    %v907 = vpack.c.b16 %v619, %v615
    %v908 = vpack.c.b16 %v620, %v616
    %v909 = vpack.c.b16 %v621, %v617
    %v910 = vpack.c.b16 %v626, %v622
    %v911 = vpack.c.b16 %v627, %v623
    %v912 = vpack.c.b16 %v628, %v624
    %v913 = vpack.c.b16 %v629, %v625
    %v914 = vpack.c.b16 %v634, %v630
    %v915 = vpack.c.b16 %v635, %v631
    %v916 = vpack.c.b16 %v636, %v632
    %v917 = vpack.c.b16 %v637, %v633
    %v918 = vpack.c.b16 %v642, %v638
    %v919 = vpack.c.b16 %v643, %v639
    %v920 = vpack.c.b16 %v644, %v640
    %v921 = vpack.c.b16 %v645, %v641
    %v922 = vpack.c.b16 %v650, %v646
    %v923 = vpack.c.b16 %v651, %v647
    %v924 = vpack.c.b16 %v652, %v648
    %v925 = vpack.c.b16 %v653, %v649
    %v926 = vpack.c.b16 %v658, %v654
    %v927 = vpack.c.b16 %v659, %v655
    %v928 = vpack.c.b16 %v660, %v656
    %v929 = vpack.c.b16 %v661, %v657
    %v930 = vpack.c.b16 %v666, %v662
    %v931 = vpack.c.b16 %v667, %v663
    %v932 = vpack.c.b16 %v668, %v664
    %v933 = vpack.c.b16 %v669, %v665
    %v934 = vpack.c.b16 %v674, %v670
    %v935 = vpack.c.b16 %v675, %v671
    %v936 = vpack.c.b16 %v676, %v672
    %v937 = vpack.c.b16 %v677, %v673
    %v938 = vpack.c.b16 %v682, %v678
    %v939 = vpack.c.b16 %v683, %v679
    %v940 = vpack.c.b16 %v684, %v680
    %v941 = vpack.c.b16 %v685, %v681
    %v942 = vpack.c.b16 %v690, %v686
    %v943 = vpack.c.b16 %v691, %v687
    %v944 = vpack.c.b16 %v692, %v688
    %v945 = vpack.c.b16 %v693, %v689
    %v946 = vpack.c.b16 %v698, %v694
    %v947 = vpack.c.b16 %v699, %v695
    %v948 = vpack.c.b16 %v700, %v696
    %v949 = vpack.c.b16 %v701, %v697
    %v950 = vpack.c.b16 %v706, %v702
    %v951 = vpack.c.b16 %v707, %v703
    %v952 = vpack.c.b16 %v708, %v704
    %v953 = vpack.c.b16 %v709, %v705
    %v954 = vpack.c.b16 %v714, %v710
    %v955 = vpack.c.b16 %v715, %v711
    %v956 = vpack.c.b16 %v716, %v712
    %v957 = vpack.c.b16 %v717, %v713
    %v958 = vpack.c.b16 %v722, %v718
    %v959 = vpack.c.b16 %v723, %v719
    %v960 = vpack.c.b16 %v724, %v720
    %v961 = vpack.c.b16 %v725, %v721
    %v962 = vpack.c.b16 %v730, %v726
    %v963 = vpack.c.b16 %v731, %v727
    %v964 = vpack.c.b16 %v732, %v728
    %v965 = vpack.c.b16 %v733, %v729
    %v966 = vpack.c.b16 %v738, %v734
    %v967 = vpack.c.b16 %v739, %v735
    %v968 = vpack.c.b16 %v740, %v736
    %v969 = vpack.c.b16 %v741, %v737
    %v970 = vpack.c.b16 %v746, %v742
    %v971 = vpack.c.b16 %v747, %v743
    %v972 = vpack.c.b16 %v748, %v744
    %v973 = vpack.c.b16 %v749, %v745
    %v974 = vpack.c.b16 %v754, %v750
    %v975 = vpack.c.b16 %v755, %v751
    %v976 = vpack.c.b16 %v756, %v752
    %v977 = vpack.c.b16 %v757, %v753
    %v978 = vpack.c.b16 %v762, %v758
    %v979 = vpack.c.b16 %v763, %v759
    %v980 = vpack.c.b16 %v764, %v760
    %v981 = vpack.c.b16 %v765, %v761
    %v982 = vpack.c.b16 %v770, %v766
    %v983 = vpack.c.b16 %v771, %v767
    %v984 = vpack.c.b16 %v772, %v768
    %v985 = vpack.c.b16 %v773, %v769
    %v986 = vpack.c.b16 %v778, %v774
    %v987 = vpack.c.b16 %v779, %v775
    %v988 = vpack.c.b16 %v780, %v776
    %v989 = vpack.c.b16 %v781, %v777
    %v990 = vpack.c.b16 %v786, %v782
    %v991 = vpack.c.b16 %v787, %v783
    %v992 = vpack.c.b16 %v788, %v784
    %v993 = vpack.c.b16 %v789, %v785
    %v994 = vpack.c.b16 %v794, %v790
    %v995 = vpack.c.b16 %v795, %v791
    %v996 = vpack.c.b16 %v796, %v792
    %v997 = vpack.c.b16 %v797, %v793
    %v998 = vpack.c.b16 %v802, %v798
    %v999 = vpack.c.b16 %v803, %v799
    %v1000 = vpack.c.b16 %v804, %v800
    %v1001 = vpack.c.b16 %v805, %v801
    %v1002 = vpack.c.b16 %v810, %v806
    %v1003 = vpack.c.b16 %v811, %v807
    %v1004 = vpack.c.b16 %v812, %v808
    %v1005 = vpack.c.b16 %v813, %v809
    %v1006 = vpack.c.b16 %v818, %v814
    %v1007 = vpack.c.b16 %v819, %v815
    %v1008 = vpack.c.b16 %v820, %v816
    %v1009 = vpack.c.b16 %v821, %v817
    %v1010 = vpack.c.b16 %v826, %v822
    %v1011 = vpack.c.b16 %v827, %v823
    %v1012 = vpack.c.b16 %v828, %v824
    %v1013 = vpack.c.b16 %v829, %v825
    %v1014 = vpack.c.b16 %v834, %v830
    %v1015 = vpack.c.b16 %v835, %v831
    %v1016 = vpack.c.b16 %v836, %v832
    %v1017 = vpack.c.b16 %v837, %v833
    %vm1198 = vcmask 654336
    %v1200 = vsel %vm1198, %v117, 0
    %1202 = vmatpush.bf16.msra.mxu0 %v866
    %1203 = vmatpush.bf16.msra.mxu0 %v862
    %1204 = vmatpush.bf16.msra.mxu0 %v858
    %1205 = vmatpush.bf16.msra.mxu0 %v854
    %1206 = vmatpush.bf16.msra.mxu0 %v850
    %1207 = vmatpush.bf16.msra.mxu0 %v846
    %1208 = vmatpush.bf16.msra.mxu0 %v842
    %1209 = vmatpush.bf16.msra.mxu0 %v838
    %1210 = vmatmul.bf16.gmra.mxu0 %v112
    %v1211 = vpop.f32.mrf.mxu0
    %v1212 = vadd.f32 0.0, %v1211
    %v1213 = vpop.f32.mrf.mxu0
    %1214 = vdwg.mxu0
    %1215 = vmatpush.bf16.msra.mxu0 %v898
    %1216 = vmatpush.bf16.msra.mxu0 %v894
    %1217 = vmatpush.bf16.msra.mxu0 %v890
    %1218 = vmatpush.bf16.msra.mxu0 %v886
    %1219 = vmatpush.bf16.msra.mxu0 %v882
    %1220 = vmatpush.bf16.msra.mxu0 %v878
    %1221 = vmatpush.bf16.msra.mxu0 %v874
    %1222 = vmatpush.bf16.msra.mxu0 %v870
    %1223 = vmatmul.bf16.gmra.mxu0 %v113
    %v1224 = vpop.f32.mrf.mxu0
    %v1225 = vadd.f32 %v1212, %v1224
    %v1226 = vpop.f32.mrf.mxu0
    %1227 = vdwg.mxu0
    %1228 = vmatpush.bf16.msra.mxu0 %v930
    %1229 = vmatpush.bf16.msra.mxu0 %v926
    %1230 = vmatpush.bf16.msra.mxu0 %v922
    %1231 = vmatpush.bf16.msra.mxu0 %v918
    %1232 = vmatpush.bf16.msra.mxu0 %v914
    %1233 = vmatpush.bf16.msra.mxu0 %v910
    %1234 = vmatpush.bf16.msra.mxu0 %v906
    %1235 = vmatpush.bf16.msra.mxu0 %v902
    %1236 = vmatmul.bf16.gmra.mxu0 %v114
    %v1237 = vpop.f32.mrf.mxu0
    %v1238 = vadd.f32 %v1225, %v1237
    %v1239 = vpop.f32.mrf.mxu0
    %1240 = vdwg.mxu0
    %1241 = vmatpush.bf16.msra.mxu0 %v962
    %1242 = vmatpush.bf16.msra.mxu0 %v958
    %1243 = vmatpush.bf16.msra.mxu0 %v954
    %1244 = vmatpush.bf16.msra.mxu0 %v950
    %1245 = vmatpush.bf16.msra.mxu0 %v946
    %1246 = vmatpush.bf16.msra.mxu0 %v942
    %1247 = vmatpush.bf16.msra.mxu0 %v938
    %1248 = vmatpush.bf16.msra.mxu0 %v934
    %1249 = vmatmul.bf16.gmra.mxu0 %v115
    %v1250 = vpop.f32.mrf.mxu0
    %v1251 = vadd.f32 %v1238, %v1250
    %v1252 = vpop.f32.mrf.mxu0
    %1253 = vdwg.mxu0
    %1254 = vmatpush.bf16.msra.mxu0 %v994
    %1255 = vmatpush.bf16.msra.mxu0 %v990
    %1256 = vmatpush.bf16.msra.mxu0 %v986
    %1257 = vmatpush.bf16.msra.mxu0 %v982
    %1258 = vmatpush.bf16.msra.mxu0 %v978
    %1259 = vmatpush.bf16.msra.mxu0 %v974
    %1260 = vmatpush.bf16.msra.mxu0 %v970
    %1261 = vmatpush.bf16.msra.mxu0 %v966
    %1262 = vmatmul.bf16.gmra.mxu0 %v116
    %v1263 = vpop.f32.mrf.mxu0
    %v1264 = vadd.f32 %v1251, %v1263
    %v1265 = vpop.f32.mrf.mxu0
    %1266 = vdwg.mxu0
    %1267 = vmatpush.bf16.msra.mxu0 0
    %1268 = vmatpush.bf16.msra.mxu0 0
    %1269 = vmatpush.bf16.msra.mxu0 0
    %1270 = vmatpush.bf16.msra.mxu0 %v1014
    %1271 = vmatpush.bf16.msra.mxu0 %v1010
    %1272 = vmatpush.bf16.msra.mxu0 %v1006
    %1273 = vmatpush.bf16.msra.mxu0 %v1002
    %1274 = vmatpush.bf16.msra.mxu0 %v998
    %1275 = vmatmul.bf16.gmra.mxu0 %v1200
    %v1276 = vpop.f32.mrf.mxu0
    %v1277 = vadd.f32 %v1264, %v1276
    %v1278 = vpop.f32.mrf.mxu0
    %1279 = vdwg.mxu0
    %1280 = vmatpush.bf16.msra.mxu0 %v867
    %1281 = vmatpush.bf16.msra.mxu0 %v863
    %1282 = vmatpush.bf16.msra.mxu0 %v859
    %1283 = vmatpush.bf16.msra.mxu0 %v855
    %1284 = vmatpush.bf16.msra.mxu0 %v851
    %1285 = vmatpush.bf16.msra.mxu0 %v847
    %1286 = vmatpush.bf16.msra.mxu0 %v843
    %1287 = vmatpush.bf16.msra.mxu0 %v839
    %1288 = vmatmul.bf16.gmra.mxu0 %v112
    %v1289 = vpop.f32.mrf.mxu0
    %v1290 = vadd.f32 0.0, %v1289
    %v1291 = vpop.f32.mrf.mxu0
    %1292 = vdwg.mxu0
    %1293 = vmatpush.bf16.msra.mxu0 %v899
    %1294 = vmatpush.bf16.msra.mxu0 %v895
    %1295 = vmatpush.bf16.msra.mxu0 %v891
    %1296 = vmatpush.bf16.msra.mxu0 %v887
    %1297 = vmatpush.bf16.msra.mxu0 %v883
    %1298 = vmatpush.bf16.msra.mxu0 %v879
    %1299 = vmatpush.bf16.msra.mxu0 %v875
    %1300 = vmatpush.bf16.msra.mxu0 %v871
    %1301 = vmatmul.bf16.gmra.mxu0 %v113
    %v1302 = vpop.f32.mrf.mxu0
    %v1303 = vadd.f32 %v1290, %v1302
    %v1304 = vpop.f32.mrf.mxu0
    %1305 = vdwg.mxu0
    %1306 = vmatpush.bf16.msra.mxu0 %v931
    %1307 = vmatpush.bf16.msra.mxu0 %v927
    %1308 = vmatpush.bf16.msra.mxu0 %v923
    %1309 = vmatpush.bf16.msra.mxu0 %v919
    %1310 = vmatpush.bf16.msra.mxu0 %v915
    %1311 = vmatpush.bf16.msra.mxu0 %v911
    %1312 = vmatpush.bf16.msra.mxu0 %v907
    %1313 = vmatpush.bf16.msra.mxu0 %v903
    %1314 = vmatmul.bf16.gmra.mxu0 %v114
    %v1315 = vpop.f32.mrf.mxu0
    %v1316 = vadd.f32 %v1303, %v1315
    %v1317 = vpop.f32.mrf.mxu0
    %1318 = vdwg.mxu0
    %1319 = vmatpush.bf16.msra.mxu0 %v963
    %1320 = vmatpush.bf16.msra.mxu0 %v959
    %1321 = vmatpush.bf16.msra.mxu0 %v955
    %1322 = vmatpush.bf16.msra.mxu0 %v951
    %1323 = vmatpush.bf16.msra.mxu0 %v947
    %1324 = vmatpush.bf16.msra.mxu0 %v943
    %1325 = vmatpush.bf16.msra.mxu0 %v939
    %1326 = vmatpush.bf16.msra.mxu0 %v935
    %1327 = vmatmul.bf16.gmra.mxu0 %v115
    %v1328 = vpop.f32.mrf.mxu0
    %v1329 = vadd.f32 %v1316, %v1328
    %v1330 = vpop.f32.mrf.mxu0
    %1331 = vdwg.mxu0
    %1332 = vmatpush.bf16.msra.mxu0 %v995
    %1333 = vmatpush.bf16.msra.mxu0 %v991
    %1334 = vmatpush.bf16.msra.mxu0 %v987
    %1335 = vmatpush.bf16.msra.mxu0 %v983
    %1336 = vmatpush.bf16.msra.mxu0 %v979
    %1337 = vmatpush.bf16.msra.mxu0 %v975
    %1338 = vmatpush.bf16.msra.mxu0 %v971
    %1339 = vmatpush.bf16.msra.mxu0 %v967
    %1340 = vmatmul.bf16.gmra.mxu0 %v116
    %v1341 = vpop.f32.mrf.mxu0
    %v1342 = vadd.f32 %v1329, %v1341
    %v1343 = vpop.f32.mrf.mxu0
    %1344 = vdwg.mxu0
    %1345 = vmatpush.bf16.msra.mxu0 0
    %1346 = vmatpush.bf16.msra.mxu0 0
    %1347 = vmatpush.bf16.msra.mxu0 0
    %1348 = vmatpush.bf16.msra.mxu0 %v1015
    %1349 = vmatpush.bf16.msra.mxu0 %v1011
    %1350 = vmatpush.bf16.msra.mxu0 %v1007
    %1351 = vmatpush.bf16.msra.mxu0 %v1003
    %1352 = vmatpush.bf16.msra.mxu0 %v999
    %1353 = vmatmul.bf16.gmra.mxu0 %v1200
    %v1354 = vpop.f32.mrf.mxu0
    %v1355 = vadd.f32 %v1342, %v1354
    %v1356 = vpop.f32.mrf.mxu0
    %1357 = vdwg.mxu0
    %1358 = vmatpush.bf16.msra.mxu0 %v868
    %1359 = vmatpush.bf16.msra.mxu0 %v864
    %1360 = vmatpush.bf16.msra.mxu0 %v860
    %1361 = vmatpush.bf16.msra.mxu0 %v856
    %1362 = vmatpush.bf16.msra.mxu0 %v852
    %1363 = vmatpush.bf16.msra.mxu0 %v848
    %1364 = vmatpush.bf16.msra.mxu0 %v844
    %1365 = vmatpush.bf16.msra.mxu0 %v840
    %1366 = vmatmul.bf16.gmra.mxu0 %v112
    %v1367 = vpop.f32.mrf.mxu0
    %v1368 = vadd.f32 0.0, %v1367
    %v1369 = vpop.f32.mrf.mxu0
    %1370 = vdwg.mxu0
    %1371 = vmatpush.bf16.msra.mxu0 %v900
    %1372 = vmatpush.bf16.msra.mxu0 %v896
    %1373 = vmatpush.bf16.msra.mxu0 %v892
    %1374 = vmatpush.bf16.msra.mxu0 %v888
    %1375 = vmatpush.bf16.msra.mxu0 %v884
    %1376 = vmatpush.bf16.msra.mxu0 %v880
    %1377 = vmatpush.bf16.msra.mxu0 %v876
    %1378 = vmatpush.bf16.msra.mxu0 %v872
    %1379 = vmatmul.bf16.gmra.mxu0 %v113
    %v1380 = vpop.f32.mrf.mxu0
    %v1381 = vadd.f32 %v1368, %v1380
    %v1382 = vpop.f32.mrf.mxu0
    %1383 = vdwg.mxu0
    %1384 = vmatpush.bf16.msra.mxu0 %v932
    %1385 = vmatpush.bf16.msra.mxu0 %v928
    %1386 = vmatpush.bf16.msra.mxu0 %v924
    %1387 = vmatpush.bf16.msra.mxu0 %v920
    %1388 = vmatpush.bf16.msra.mxu0 %v916
    %1389 = vmatpush.bf16.msra.mxu0 %v912
    %1390 = vmatpush.bf16.msra.mxu0 %v908
    %1391 = vmatpush.bf16.msra.mxu0 %v904
    %1392 = vmatmul.bf16.gmra.mxu0 %v114
    %v1393 = vpop.f32.mrf.mxu0
    %v1394 = vadd.f32 %v1381, %v1393
    %v1395 = vpop.f32.mrf.mxu0
    %1396 = vdwg.mxu0
    %1397 = vmatpush.bf16.msra.mxu0 %v964
    %1398 = vmatpush.bf16.msra.mxu0 %v960
    %1399 = vmatpush.bf16.msra.mxu0 %v956
    %1400 = vmatpush.bf16.msra.mxu0 %v952
    %1401 = vmatpush.bf16.msra.mxu0 %v948
    %1402 = vmatpush.bf16.msra.mxu0 %v944
    %1403 = vmatpush.bf16.msra.mxu0 %v940
    %1404 = vmatpush.bf16.msra.mxu0 %v936
    %1405 = vmatmul.bf16.gmra.mxu0 %v115
    %v1406 = vpop.f32.mrf.mxu0
    %v1407 = vadd.f32 %v1394, %v1406
    %v1408 = vpop.f32.mrf.mxu0
    %1409 = vdwg.mxu0
    %1410 = vmatpush.bf16.msra.mxu0 %v996
    %1411 = vmatpush.bf16.msra.mxu0 %v992
    %1412 = vmatpush.bf16.msra.mxu0 %v988
    %1413 = vmatpush.bf16.msra.mxu0 %v984
    %1414 = vmatpush.bf16.msra.mxu0 %v980
    %1415 = vmatpush.bf16.msra.mxu0 %v976
    %1416 = vmatpush.bf16.msra.mxu0 %v972
    %1417 = vmatpush.bf16.msra.mxu0 %v968
    %1418 = vmatmul.bf16.gmra.mxu0 %v116
    %v1419 = vpop.f32.mrf.mxu0
    %v1420 = vadd.f32 %v1407, %v1419
    %v1421 = vpop.f32.mrf.mxu0
    %1422 = vdwg.mxu0
    %1423 = vmatpush.bf16.msra.mxu0 0
    %1424 = vmatpush.bf16.msra.mxu0 0
    %1425 = vmatpush.bf16.msra.mxu0 0
    %1426 = vmatpush.bf16.msra.mxu0 %v1016
    %1427 = vmatpush.bf16.msra.mxu0 %v1012
    %1428 = vmatpush.bf16.msra.mxu0 %v1008
    %1429 = vmatpush.bf16.msra.mxu0 %v1004
    %1430 = vmatpush.bf16.msra.mxu0 %v1000
    %1431 = vmatmul.bf16.gmra.mxu0 %v1200
    %v1432 = vpop.f32.mrf.mxu0
    %v1433 = vadd.f32 %v1420, %v1432
    %v1434 = vpop.f32.mrf.mxu0
    %1435 = vdwg.mxu0
    %1436 = vmatpush.bf16.msra.mxu0 %v869
    %1437 = vmatpush.bf16.msra.mxu0 %v865
    %1438 = vmatpush.bf16.msra.mxu0 %v861
    %1439 = vmatpush.bf16.msra.mxu0 %v857
    %1440 = vmatpush.bf16.msra.mxu0 %v853
    %1441 = vmatpush.bf16.msra.mxu0 %v849
    %1442 = vmatpush.bf16.msra.mxu0 %v845
    %1443 = vmatpush.bf16.msra.mxu0 %v841
    %1444 = vmatmul.bf16.gmra.mxu0 %v112
    %v1445 = vpop.f32.mrf.mxu0
    %v1446 = vadd.f32 0.0, %v1445
    %v1447 = vpop.f32.mrf.mxu0
    %1448 = vdwg.mxu0
    %1449 = vmatpush.bf16.msra.mxu0 %v901
    %1450 = vmatpush.bf16.msra.mxu0 %v897
    %1451 = vmatpush.bf16.msra.mxu0 %v893
    %1452 = vmatpush.bf16.msra.mxu0 %v889
    %1453 = vmatpush.bf16.msra.mxu0 %v885
    %1454 = vmatpush.bf16.msra.mxu0 %v881
    %1455 = vmatpush.bf16.msra.mxu0 %v877
    %1456 = vmatpush.bf16.msra.mxu0 %v873
    %1457 = vmatmul.bf16.gmra.mxu0 %v113
    %v1458 = vpop.f32.mrf.mxu0
    %v1459 = vadd.f32 %v1446, %v1458
    %v1460 = vpop.f32.mrf.mxu0
    %1461 = vdwg.mxu0
    %1462 = vmatpush.bf16.msra.mxu0 %v933
    %1463 = vmatpush.bf16.msra.mxu0 %v929
    %1464 = vmatpush.bf16.msra.mxu0 %v925
    %1465 = vmatpush.bf16.msra.mxu0 %v921
    %1466 = vmatpush.bf16.msra.mxu0 %v917
    %1467 = vmatpush.bf16.msra.mxu0 %v913
    %1468 = vmatpush.bf16.msra.mxu0 %v909
    %1469 = vmatpush.bf16.msra.mxu0 %v905
    %1470 = vmatmul.bf16.gmra.mxu0 %v114
    %v1471 = vpop.f32.mrf.mxu0
    %v1472 = vadd.f32 %v1459, %v1471
    %v1473 = vpop.f32.mrf.mxu0
    %1474 = vdwg.mxu0
    %1475 = vmatpush.bf16.msra.mxu0 %v965
    %1476 = vmatpush.bf16.msra.mxu0 %v961
    %1477 = vmatpush.bf16.msra.mxu0 %v957
    %1478 = vmatpush.bf16.msra.mxu0 %v953
    %1479 = vmatpush.bf16.msra.mxu0 %v949
    %1480 = vmatpush.bf16.msra.mxu0 %v945
    %1481 = vmatpush.bf16.msra.mxu0 %v941
    %1482 = vmatpush.bf16.msra.mxu0 %v937
    %1483 = vmatmul.bf16.gmra.mxu0 %v115
    %v1484 = vpop.f32.mrf.mxu0
    %v1485 = vadd.f32 %v1472, %v1484
    %v1486 = vpop.f32.mrf.mxu0
    %1487 = vdwg.mxu0
    %1488 = vmatpush.bf16.msra.mxu0 %v997
    %1489 = vmatpush.bf16.msra.mxu0 %v993
    %1490 = vmatpush.bf16.msra.mxu0 %v989
    %1491 = vmatpush.bf16.msra.mxu0 %v985
    %1492 = vmatpush.bf16.msra.mxu0 %v981
    %1493 = vmatpush.bf16.msra.mxu0 %v977
    %1494 = vmatpush.bf16.msra.mxu0 %v973
    %1495 = vmatpush.bf16.msra.mxu0 %v969
    %1496 = vmatmul.bf16.gmra.mxu0 %v116
    %v1497 = vpop.f32.mrf.mxu0
    %v1498 = vadd.f32 %v1485, %v1497
    %v1499 = vpop.f32.mrf.mxu0
    %1500 = vdwg.mxu0
    %1501 = vmatpush.bf16.msra.mxu0 0
    %1502 = vmatpush.bf16.msra.mxu0 0
    %1503 = vmatpush.bf16.msra.mxu0 0
    %1504 = vmatpush.bf16.msra.mxu0 %v1017
    %1505 = vmatpush.bf16.msra.mxu0 %v1013
    %1506 = vmatpush.bf16.msra.mxu0 %v1009
    %1507 = vmatpush.bf16.msra.mxu0 %v1005
    %1508 = vmatpush.bf16.msra.mxu0 %v1001
    %1509 = vmatmul.bf16.gmra.mxu0 %v1200
    %v1510 = vpop.f32.mrf.mxu0
    %v1511 = vadd.f32 %v1498, %v1510
    %v1512 = vpop.f32.mrf.mxu0
    %1513 = vdwg.mxu0
    %v1514 = vld [vmem:[%s5] sm:$0x7]
    %v1515 = vld [vmem:[%s6] sm:$0x7]
    %v1516 = vld [vmem:[#allocation7] sm:$0x7]
    %v1517 = vld [vmem:[#allocation8] sm:$0x7]
    %v1518 = vld [vmem:[%s2] sm:$0xf]
    %v1519 = vld [vmem:[%s2 + $0x4] sm:$0xf]
    %v1520 = vld [vmem:[%s2 + $0x8] sm:$0xf]
    %v1521 = vld [vmem:[%s2 + $0xc] sm:$0xf]
    %v1522 = vld [vmem:[%s2 + $0x10] sm:$0xf]
    %v1523 = vld [vmem:[%s2 + $0x14] sm:$0xf]
    %v1524 = vld [vmem:[%s2 + $0x18] sm:$0xf]
    %v1525 = vld [vmem:[%s2 + $0x1c] sm:$0xf]
    %v1526 = vld [vmem:[%s2 + $0x20] sm:$0xf]
    %v1527 = vld [vmem:[%s2 + $0x24] sm:$0xf]
    %v1528 = vld [vmem:[%s2 + $0x28] sm:$0xf]
    %v1529 = vld [vmem:[%s2 + $0x2c] sm:$0xf]
    %v1530 = vld [vmem:[%s2 + $0x30] sm:$0xf]
    %v1531 = vld [vmem:[%s2 + $0x34] sm:$0xf]
    %v1532 = vld [vmem:[%s2 + $0x38] sm:$0xf]
    %v1533 = vld [vmem:[%s2 + $0x3c] sm:$0xf]
    %v1534 = vld [vmem:[#allocation5] sm:$0xf]
    %v1535 = vld [vmem:[#allocation5 + $0x4] sm:$0xf]
    %v1536 = vld [vmem:[#allocation5 + $0x8] sm:$0xf]
    %v1537 = vld [vmem:[#allocation5 + $0xc] sm:$0xf]
    %v1538 = vld [vmem:[#allocation5 + $0x10] sm:$0xf]
    %v1539 = vld [vmem:[#allocation5 + $0x14] sm:$0xf]
    %v1540 = vld [vmem:[#allocation5 + $0x18] sm:$0xf]
    %v1541 = vld [vmem:[#allocation5 + $0x1c] sm:$0xf]
    %v1542 = vld [vmem:[#allocation5 + $0x20] sm:$0xf]
    %v1543 = vld [vmem:[#allocation5 + $0x24] sm:$0xf]
    %v1544 = vld [vmem:[#allocation5 + $0x28] sm:$0xf]
    %v1545 = vld [vmem:[#allocation5 + $0x2c] sm:$0xf]
    %v1546 = vld [vmem:[#allocation5 + $0x30] sm:$0xf]
    %v1547 = vld [vmem:[#allocation5 + $0x34] sm:$0xf]
    %v1548 = vld [vmem:[#allocation5 + $0x38] sm:$0xf]
    %v1549 = vld [vmem:[#allocation5 + $0x3c] sm:$0xf]
    %v1550 = vld [vmem:[%s4] sm:$0xf]
    %v1551 = vld [vmem:[%s4 + $0x4] sm:$0xf]
    %v1552 = vld [vmem:[%s4 + $0x8] sm:$0xf]
    %v1553 = vld [vmem:[%s4 + $0xc] sm:$0xf]
    %v1554 = vld [vmem:[%s4 + $0x10] sm:$0xf]
    %v1555 = vld [vmem:[%s4 + $0x14] sm:$0xf]
    %v1556 = vld [vmem:[%s4 + $0x18] sm:$0xf]
    %v1557 = vld [vmem:[%s4 + $0x1c] sm:$0xf]
    %v1558 = vld [vmem:[%s4 + $0x20] sm:$0xf]
    %v1559 = vld [vmem:[%s4 + $0x24] sm:$0xf]
    %v1560 = vld [vmem:[%s4 + $0x28] sm:$0xf]
    %v1561 = vld [vmem:[%s4 + $0x2c] sm:$0xf]
    %v1562 = vld [vmem:[%s4 + $0x30] sm:$0xf]
    %v1563 = vld [vmem:[%s4 + $0x34] sm:$0xf]
    %v1564 = vld [vmem:[%s4 + $0x38] sm:$0xf]
    %v1565 = vld [vmem:[%s4 + $0x3c] sm:$0xf]
    %v1566 = vlaneseq
    %v1567 = vand.u32 %v1566, 127
    %vm1568 = vcmp.lt.s32.totalorder %v1567, 116
    %vm1569 = vcmp.lt.s32.totalorder %v1567, 72
    %vm1570 = vcmp.lt.s32.totalorder %v1567, 48
    %v1571 = vperm.slane %v1514, 0
    %v1572 = vadd.f32 %v1277, %v1571
    %vm1573 = vcmask 1041408
    %v1574 = vsel %vm1573, %v1572, 0.0
    %1575 = vadd.xlane.f32.xlu0 %v1574
    %v1576 = vpop.xlane.xlu0 %1575
    %v1577 = vmul.f32 %v1576, 0.00862069
    %v1578 = vsub.f32 %v1572, %v1577
    %v1579 = vsel %vm1568, 1, 0
    %vm1580 = vcmp.eq.s32.totalorder %v1579, 1
    %v1581 = vsel %vm1580, %v1578, 0.0
    %v1582 = vmul.f32 %v1581, %v1581
    %v1583 = vsel %vm1573, %v1582, 0.0
    %1584 = vadd.xlane.f32.xlu0 %v1583
    %v1585 = vpop.xlane.xlu0 %1584
    %v1586 = vmul.f32 %v1585, 0.00862069
    %v1587 = vadd.f32 %v1586, 1e-05
    %v1588 = vrsqrt.pop %v1587
    %v1589 = vmul.f32 %v1588, %v1587
    %v1590 = vmul.f32 %v1589, %v1588
    %v1591 = vmul.f32 0.5, %v1590
    %v1592 = vsub.f32 1.5, %v1591
    %v1593 = vmul.f32 %v1588, %v1592
    %vm1594 = vweird.f32 %v1587
    %vm1595 = vweird.f32 %v1588
    %vm1596 = vmor %vm1594, %vm1595
    %v1597 = vsel %vm1596, %v1588, %v1593
    %v1598 = vperm.slane %v1514, 1
    %v1599 = vmul.f32 %v1597, %v1598
    %v1600 = vmul.f32 %v1581, %v1599
    %v1601 = vperm.slane %v1514, 2
    %v1602 = vadd.f32 %v1600, %v1601
    %v1603 = vsub.f32 0.0, %v1602
    %v1604 = vmul.f32 %v1603, 1.442695
    %v1605 = vpow.pop %v1604
    %v1606 = vadd.f32 %v1605, 1.0
    %v1607 = vrcp.pop %v1606
    %v1608 = vmul.f32 %v1606, %v1607
    %v1609 = vsub.f32 1.0, %v1608
    %v1610 = vmul.f32 %v1607, %v1609
    %v1611 = vadd.f32 %v1607, %v1610
    %vm1612 = vweird.f32 %v1606
    %vm1613 = vweird.f32 %v1607
    %vm1614 = vmor %vm1612, %vm1613
    %v1615 = vsel %vm1614, %v1607, %v1611
    %v1616 = vand.u32 2147483647, %v1606
    %vm1617 = vcmp.eq.f32.partialorder %v1616, 8.507059e+37
    %v1618 = vand.u32 %v1606, 2147483648
    %v1619 = vor.u32 1.1754944e-38, %v1618
    %v1620 = vsel %vm1617, %v1619, %v1615
    %v1621 = vmul.f32 %v1602, %v1620
    %v1622 = vadd.f32 %v1355, %v1571
    %v1623 = vsel %vm1573, %v1622, 0.0
    %1624 = vadd.xlane.f32.xlu0 %v1623
    %v1625 = vpop.xlane.xlu0 %1624
    %v1626 = vmul.f32 %v1625, 0.00862069
    %v1627 = vsub.f32 %v1622, %v1626
    %v1628 = vsel %vm1580, %v1627, 0.0
    %v1629 = vmul.f32 %v1628, %v1628
    %v1630 = vsel %vm1573, %v1629, 0.0
    %1631 = vadd.xlane.f32.xlu0 %v1630
    %v1632 = vpop.xlane.xlu0 %1631
    %v1633 = vmul.f32 %v1632, 0.00862069
    %v1634 = vadd.f32 %v1633, 1e-05
    %v1635 = vrsqrt.pop %v1634
    %v1636 = vmul.f32 %v1635, %v1634
    %v1637 = vmul.f32 %v1636, %v1635
    %v1638 = vmul.f32 0.5, %v1637
    %v1639 = vsub.f32 1.5, %v1638
    %v1640 = vmul.f32 %v1635, %v1639
    %vm1641 = vweird.f32 %v1634
    %vm1642 = vweird.f32 %v1635
    %vm1643 = vmor %vm1641, %vm1642
    %v1644 = vsel %vm1643, %v1635, %v1640
    %v1645 = vmul.f32 %v1644, %v1598
    %v1646 = vmul.f32 %v1628, %v1645
    %v1647 = vadd.f32 %v1646, %v1601
    %v1648 = vsub.f32 0.0, %v1647
    %v1649 = vmul.f32 %v1648, 1.442695
    %v1650 = vpow.pop %v1649
    %v1651 = vadd.f32 %v1650, 1.0
    %v1652 = vrcp.pop %v1651
    %v1653 = vmul.f32 %v1651, %v1652
    %v1654 = vsub.f32 1.0, %v1653
    %v1655 = vmul.f32 %v1652, %v1654
    %v1656 = vadd.f32 %v1652, %v1655
    %vm1657 = vweird.f32 %v1651
    %vm1658 = vweird.f32 %v1652
    %vm1659 = vmor %vm1657, %vm1658
    %v1660 = vsel %vm1659, %v1652, %v1656
    %v1661 = vand.u32 2147483647, %v1651
    %vm1662 = vcmp.eq.f32.partialorder %v1661, 8.507059e+37
    %v1663 = vand.u32 %v1651, 2147483648
    %v1664 = vor.u32 1.1754944e-38, %v1663
    %v1665 = vsel %vm1662, %v1664, %v1660
    %v1666 = vmul.f32 %v1647, %v1665
    %v1667 = vadd.f32 %v1433, %v1571
    %v1668 = vsel %vm1573, %v1667, 0.0
    %1669 = vadd.xlane.f32.xlu0 %v1668
    %v1670 = vpop.xlane.xlu0 %1669
    %v1671 = vmul.f32 %v1670, 0.00862069
    %v1672 = vsub.f32 %v1667, %v1671
    %v1673 = vsel %vm1580, %v1672, 0.0
    %v1674 = vmul.f32 %v1673, %v1673
    %v1675 = vsel %vm1573, %v1674, 0.0
    %1676 = vadd.xlane.f32.xlu0 %v1675
    %v1677 = vpop.xlane.xlu0 %1676
    %v1678 = vmul.f32 %v1677, 0.00862069
    %v1679 = vadd.f32 %v1678, 1e-05
    %v1680 = vrsqrt.pop %v1679
    %v1681 = vmul.f32 %v1680, %v1679
    %v1682 = vmul.f32 %v1681, %v1680
    %v1683 = vmul.f32 0.5, %v1682
    %v1684 = vsub.f32 1.5, %v1683
    %v1685 = vmul.f32 %v1680, %v1684
    %vm1686 = vweird.f32 %v1679
    %vm1687 = vweird.f32 %v1680
    %vm1688 = vmor %vm1686, %vm1687
    %v1689 = vsel %vm1688, %v1680, %v1685
    %v1690 = vmul.f32 %v1689, %v1598
    %v1691 = vmul.f32 %v1673, %v1690
    %v1692 = vadd.f32 %v1691, %v1601
    %v1693 = vsub.f32 0.0, %v1692
    %v1694 = vmul.f32 %v1693, 1.442695
    %v1695 = vpow.pop %v1694
    %v1696 = vadd.f32 %v1695, 1.0
    %v1697 = vrcp.pop %v1696
    %v1698 = vmul.f32 %v1696, %v1697
    %v1699 = vsub.f32 1.0, %v1698
    %v1700 = vmul.f32 %v1697, %v1699
    %v1701 = vadd.f32 %v1697, %v1700
    %vm1702 = vweird.f32 %v1696
    %vm1703 = vweird.f32 %v1697
    %vm1704 = vmor %vm1702, %vm1703
    %v1705 = vsel %vm1704, %v1697, %v1701
    %v1706 = vand.u32 2147483647, %v1696
    %vm1707 = vcmp.eq.f32.partialorder %v1706, 8.507059e+37
    %v1708 = vand.u32 %v1696, 2147483648
    %v1709 = vor.u32 1.1754944e-38, %v1708
    %v1710 = vsel %vm1707, %v1709, %v1705
    %v1711 = vmul.f32 %v1692, %v1710
    %v1712 = vadd.f32 %v1511, %v1571
    %v1713 = vsel %vm1573, %v1712, 0.0
    %1714 = vadd.xlane.f32.xlu0 %v1713
    %v1715 = vpop.xlane.xlu0 %1714
    %v1716 = vmul.f32 %v1715, 0.00862069
    %v1717 = vsub.f32 %v1712, %v1716
    %v1718 = vsel %vm1580, %v1717, 0.0
    %v1719 = vmul.f32 %v1718, %v1718
    %v1720 = vsel %vm1573, %v1719, 0.0
    %1721 = vadd.xlane.f32.xlu0 %v1720
    %v1722 = vpop.xlane.xlu0 %1721
    %v1723 = vmul.f32 %v1722, 0.00862069
    %v1724 = vadd.f32 %v1723, 1e-05
    %v1725 = vrsqrt.pop %v1724
    %v1726 = vmul.f32 %v1725, %v1724
    %v1727 = vmul.f32 %v1726, %v1725
    %v1728 = vmul.f32 0.5, %v1727
    %v1729 = vsub.f32 1.5, %v1728
    %v1730 = vmul.f32 %v1725, %v1729
    %vm1731 = vweird.f32 %v1724
    %vm1732 = vweird.f32 %v1725
    %vm1733 = vmor %vm1731, %vm1732
    %v1734 = vsel %vm1733, %v1725, %v1730
    %v1735 = vmul.f32 %v1734, %v1598
    %v1736 = vmul.f32 %v1718, %v1735
    %v1737 = vadd.f32 %v1736, %v1601
    %v1738 = vsub.f32 0.0, %v1737
    %v1739 = vmul.f32 %v1738, 1.442695
    %v1740 = vpow.pop %v1739
    %v1741 = vadd.f32 %v1740, 1.0
    %v1742 = vrcp.pop %v1741
    %v1743 = vmul.f32 %v1741, %v1742
    %v1744 = vsub.f32 1.0, %v1743
    %v1745 = vmul.f32 %v1742, %v1744
    %v1746 = vadd.f32 %v1742, %v1745
    %vm1747 = vweird.f32 %v1741
    %vm1748 = vweird.f32 %v1742
    %vm1749 = vmor %vm1747, %vm1748
    %v1750 = vsel %vm1749, %v1742, %v1746
    %v1751 = vand.u32 2147483647, %v1741
    %vm1752 = vcmp.eq.f32.partialorder %v1751, 8.507059e+37
    %v1753 = vand.u32 %v1741, 2147483648
    %v1754 = vor.u32 1.1754944e-38, %v1753
    %v1755 = vsel %vm1752, %v1754, %v1750
    %v1756 = vmul.f32 %v1737, %v1755
    %v1757 = vpack.c.bf16 %v1621, %v1621
    %v1758 = vperm.slane %v1515, 0
    %v1775 = vunpack.c.l.b16 %v1518
    %v1776 = vunpack.c.l.b16 %v1519
    %v1777 = vunpack.c.l.b16 %v1520
    %v1778 = vunpack.c.l.b16 %v1521
    %v1779 = vunpack.c.l.b16 %v1522
    %v1780 = vunpack.c.l.b16 %v1523
    %v1781 = vunpack.c.l.b16 %v1524
    %v1782 = vunpack.c.l.b16 %v1525
    %v1783 = vunpack.c.l.b16 %v1526
    %v1784 = vunpack.c.l.b16 %v1527
    %v1785 = vunpack.c.l.b16 %v1528
    %v1786 = vunpack.c.l.b16 %v1529
    %v1787 = vunpack.c.l.b16 %v1530
    %v1788 = vunpack.c.l.b16 %v1531
    %v1789 = vunpack.c.l.b16 %v1532
    %v1790 = vunpack.c.l.b16 %v1533
    %v1791 = vpack.c.b16 %v1776, %v1775
    %v1792 = vpack.c.b16 %v1778, %v1777
    %v1793 = vpack.c.b16 %v1780, %v1779
    %v1794 = vpack.c.b16 %v1782, %v1781
    %v1795 = vpack.c.b16 %v1784, %v1783
    %v1796 = vpack.c.b16 %v1786, %v1785
    %v1797 = vpack.c.b16 %v1788, %v1787
    %v1798 = vpack.c.b16 %v1790, %v1789
    %1807 = vmatpush.bf16.msra.mxu0 %v1798
    %1808 = vmatpush.bf16.msra.mxu0 %v1797
    %1809 = vmatpush.bf16.msra.mxu0 %v1796
    %1810 = vmatpush.bf16.msra.mxu0 %v1795
    %1811 = vmatpush.bf16.msra.mxu0 %v1794
    %1812 = vmatpush.bf16.msra.mxu0 %v1793
    %1813 = vmatpush.bf16.msra.mxu0 %v1792
    %1814 = vmatpush.bf16.msra.mxu0 %v1791
    %1815 = vmatmul.bf16.gmra.mxu0 %v1757
    %v1816 = vpop.f32.mrf.mxu0
    %v1817 = vadd.f32 %v1758, %v1816
    %v1818 = vpop.f32.mrf.mxu0
    %1819 = vdwg.mxu0
    %v1820 = vsel %vm1573, %v1817, 0.0
    %1821 = vadd.xlane.f32.xlu0 %v1820
    %v1822 = vpop.xlane.xlu0 %1821
    %v1823 = vmul.f32 %v1822, 0.013888889
    %v1824 = vsub.f32 %v1817, %v1823
    %v1825 = vsel %vm1569, 1, 0
    %vm1826 = vcmp.eq.s32.totalorder %v1825, 1
    %v1827 = vsel %vm1826, %v1824, 0.0
    %v1828 = vmul.f32 %v1827, %v1827
    %v1829 = vsel %vm1573, %v1828, 0.0
    %1830 = vadd.xlane.f32.xlu0 %v1829
    %v1831 = vpop.xlane.xlu0 %1830
    %v1832 = vmul.f32 %v1831, 0.013888889
    %v1833 = vadd.f32 %v1832, 1e-05
    %v1834 = vrsqrt.pop %v1833
    %v1835 = vmul.f32 %v1834, %v1833
    %v1836 = vmul.f32 %v1835, %v1834
    %v1837 = vmul.f32 0.5, %v1836
    %v1838 = vsub.f32 1.5, %v1837
    %v1839 = vmul.f32 %v1834, %v1838
    %vm1840 = vweird.f32 %v1833
    %vm1841 = vweird.f32 %v1834
    %vm1842 = vmor %vm1840, %vm1841
    %v1843 = vsel %vm1842, %v1834, %v1839
    %v1844 = vperm.slane %v1515, 1
    %v1845 = vmul.f32 %v1843, %v1844
    %v1846 = vmul.f32 %v1827, %v1845
    %v1847 = vperm.slane %v1515, 2
    %v1848 = vadd.f32 %v1846, %v1847
    %v1849 = vsub.f32 0.0, %v1848
    %v1850 = vmul.f32 %v1849, 1.442695
    %v1851 = vpow.pop %v1850
    %v1852 = vadd.f32 %v1851, 1.0
    %v1853 = vrcp.pop %v1852
    %v1854 = vmul.f32 %v1852, %v1853
    %v1855 = vsub.f32 1.0, %v1854
    %v1856 = vmul.f32 %v1853, %v1855
    %v1857 = vadd.f32 %v1853, %v1856
    %vm1858 = vweird.f32 %v1852
    %vm1859 = vweird.f32 %v1853
    %vm1860 = vmor %vm1858, %vm1859
    %v1861 = vsel %vm1860, %v1853, %v1857
    %v1862 = vand.u32 2147483647, %v1852
    %vm1863 = vcmp.eq.f32.partialorder %v1862, 8.507059e+37
    %v1864 = vand.u32 %v1852, 2147483648
    %v1865 = vor.u32 1.1754944e-38, %v1864
    %v1866 = vsel %vm1863, %v1865, %v1861
    %v1867 = vmul.f32 %v1848, %v1866
    %v1868 = vpack.c.bf16 %v1666, %v1666
    %1869 = vmatpush.bf16.msra.mxu0 %v1798
    %1870 = vmatpush.bf16.msra.mxu0 %v1797
    %1871 = vmatpush.bf16.msra.mxu0 %v1796
    %1872 = vmatpush.bf16.msra.mxu0 %v1795
    %1873 = vmatpush.bf16.msra.mxu0 %v1794
    %1874 = vmatpush.bf16.msra.mxu0 %v1793
    %1875 = vmatpush.bf16.msra.mxu0 %v1792
    %1876 = vmatpush.bf16.msra.mxu0 %v1791
    %1877 = vmatmul.bf16.gmra.mxu0 %v1868
    %v1878 = vpop.f32.mrf.mxu0
    %v1879 = vadd.f32 %v1758, %v1878
    %v1880 = vpop.f32.mrf.mxu0
    %1881 = vdwg.mxu0
    %v1882 = vsel %vm1573, %v1879, 0.0
    %1883 = vadd.xlane.f32.xlu0 %v1882
    %v1884 = vpop.xlane.xlu0 %1883
    %v1885 = vmul.f32 %v1884, 0.013888889
    %v1886 = vsub.f32 %v1879, %v1885
    %v1887 = vsel %vm1826, %v1886, 0.0
    %v1888 = vmul.f32 %v1887, %v1887
    %v1889 = vsel %vm1573, %v1888, 0.0
    %1890 = vadd.xlane.f32.xlu0 %v1889
    %v1891 = vpop.xlane.xlu0 %1890
    %v1892 = vmul.f32 %v1891, 0.013888889
    %v1893 = vadd.f32 %v1892, 1e-05
    %v1894 = vrsqrt.pop %v1893
    %v1895 = vmul.f32 %v1894, %v1893
    %v1896 = vmul.f32 %v1895, %v1894
    %v1897 = vmul.f32 0.5, %v1896
    %v1898 = vsub.f32 1.5, %v1897
    %v1899 = vmul.f32 %v1894, %v1898
    %vm1900 = vweird.f32 %v1893
    %vm1901 = vweird.f32 %v1894
    %vm1902 = vmor %vm1900, %vm1901
    %v1903 = vsel %vm1902, %v1894, %v1899
    %v1904 = vmul.f32 %v1903, %v1844
    %v1905 = vmul.f32 %v1887, %v1904
    %v1906 = vadd.f32 %v1905, %v1847
    %v1907 = vsub.f32 0.0, %v1906
    %v1908 = vmul.f32 %v1907, 1.442695
    %v1909 = vpow.pop %v1908
    %v1910 = vadd.f32 %v1909, 1.0
    %v1911 = vrcp.pop %v1910
    %v1912 = vmul.f32 %v1910, %v1911
    %v1913 = vsub.f32 1.0, %v1912
    %v1914 = vmul.f32 %v1911, %v1913
    %v1915 = vadd.f32 %v1911, %v1914
    %vm1916 = vweird.f32 %v1910
    %vm1917 = vweird.f32 %v1911
    %vm1918 = vmor %vm1916, %vm1917
    %v1919 = vsel %vm1918, %v1911, %v1915
    %v1920 = vand.u32 2147483647, %v1910
    %vm1921 = vcmp.eq.f32.partialorder %v1920, 8.507059e+37
    %v1922 = vand.u32 %v1910, 2147483648
    %v1923 = vor.u32 1.1754944e-38, %v1922
    %v1924 = vsel %vm1921, %v1923, %v1919
    %v1925 = vmul.f32 %v1906, %v1924
    %v1926 = vpack.c.bf16 %v1711, %v1711
    %1927 = vmatpush.bf16.msra.mxu0 %v1798
    %1928 = vmatpush.bf16.msra.mxu0 %v1797
    %1929 = vmatpush.bf16.msra.mxu0 %v1796
    %1930 = vmatpush.bf16.msra.mxu0 %v1795
    %1931 = vmatpush.bf16.msra.mxu0 %v1794
    %1932 = vmatpush.bf16.msra.mxu0 %v1793
    %1933 = vmatpush.bf16.msra.mxu0 %v1792
    %1934 = vmatpush.bf16.msra.mxu0 %v1791
    %1935 = vmatmul.bf16.gmra.mxu0 %v1926
    %v1936 = vpop.f32.mrf.mxu0
    %v1937 = vadd.f32 %v1758, %v1936
    %v1938 = vpop.f32.mrf.mxu0
    %1939 = vdwg.mxu0
    %v1940 = vsel %vm1573, %v1937, 0.0
    %1941 = vadd.xlane.f32.xlu0 %v1940
    %v1942 = vpop.xlane.xlu0 %1941
    %v1943 = vmul.f32 %v1942, 0.013888889
    %v1944 = vsub.f32 %v1937, %v1943
    %v1945 = vsel %vm1826, %v1944, 0.0
    %v1946 = vmul.f32 %v1945, %v1945
    %v1947 = vsel %vm1573, %v1946, 0.0
    %1948 = vadd.xlane.f32.xlu0 %v1947
    %v1949 = vpop.xlane.xlu0 %1948
    %v1950 = vmul.f32 %v1949, 0.013888889
    %v1951 = vadd.f32 %v1950, 1e-05
    %v1952 = vrsqrt.pop %v1951
    %v1953 = vmul.f32 %v1952, %v1951
    %v1954 = vmul.f32 %v1953, %v1952
    %v1955 = vmul.f32 0.5, %v1954
    %v1956 = vsub.f32 1.5, %v1955
    %v1957 = vmul.f32 %v1952, %v1956
    %vm1958 = vweird.f32 %v1951
    %vm1959 = vweird.f32 %v1952
    %vm1960 = vmor %vm1958, %vm1959
    %v1961 = vsel %vm1960, %v1952, %v1957
    %v1962 = vmul.f32 %v1961, %v1844
    %v1963 = vmul.f32 %v1945, %v1962
    %v1964 = vadd.f32 %v1963, %v1847
    %v1965 = vsub.f32 0.0, %v1964
    %v1966 = vmul.f32 %v1965, 1.442695
    %v1967 = vpow.pop %v1966
    %v1968 = vadd.f32 %v1967, 1.0
    %v1969 = vrcp.pop %v1968
    %v1970 = vmul.f32 %v1968, %v1969
    %v1971 = vsub.f32 1.0, %v1970
    %v1972 = vmul.f32 %v1969, %v1971
    %v1973 = vadd.f32 %v1969, %v1972
    %vm1974 = vweird.f32 %v1968
    %vm1975 = vweird.f32 %v1969
    %vm1976 = vmor %vm1974, %vm1975
    %v1977 = vsel %vm1976, %v1969, %v1973
    %v1978 = vand.u32 2147483647, %v1968
    %vm1979 = vcmp.eq.f32.partialorder %v1978, 8.507059e+37
    %v1980 = vand.u32 %v1968, 2147483648
    %v1981 = vor.u32 1.1754944e-38, %v1980
    %v1982 = vsel %vm1979, %v1981, %v1977
    %v1983 = vmul.f32 %v1964, %v1982
    %v1984 = vpack.c.bf16 %v1756, %v1756
    %1985 = vmatpush.bf16.msra.mxu0 %v1798
    %1986 = vmatpush.bf16.msra.mxu0 %v1797
    %1987 = vmatpush.bf16.msra.mxu0 %v1796
    %1988 = vmatpush.bf16.msra.mxu0 %v1795
    %1989 = vmatpush.bf16.msra.mxu0 %v1794
    %1990 = vmatpush.bf16.msra.mxu0 %v1793
    %1991 = vmatpush.bf16.msra.mxu0 %v1792
    %1992 = vmatpush.bf16.msra.mxu0 %v1791
    %1993 = vmatmul.bf16.gmra.mxu0 %v1984
    %v1994 = vpop.f32.mrf.mxu0
    %v1995 = vadd.f32 %v1758, %v1994
    %v1996 = vpop.f32.mrf.mxu0
    %1997 = vdwg.mxu0
    %v1998 = vsel %vm1573, %v1995, 0.0
    %1999 = vadd.xlane.f32.xlu0 %v1998
    %v2000 = vpop.xlane.xlu0 %1999
    %v2001 = vmul.f32 %v2000, 0.013888889
    %v2002 = vsub.f32 %v1995, %v2001
    %v2003 = vsel %vm1826, %v2002, 0.0
    %v2004 = vmul.f32 %v2003, %v2003
    %v2005 = vsel %vm1573, %v2004, 0.0
    %2006 = vadd.xlane.f32.xlu0 %v2005
    %v2007 = vpop.xlane.xlu0 %2006
    %v2008 = vmul.f32 %v2007, 0.013888889
    %v2009 = vadd.f32 %v2008, 1e-05
    %v2010 = vrsqrt.pop %v2009
    %v2011 = vmul.f32 %v2010, %v2009
    %v2012 = vmul.f32 %v2011, %v2010
    %v2013 = vmul.f32 0.5, %v2012
    %v2014 = vsub.f32 1.5, %v2013
    %v2015 = vmul.f32 %v2010, %v2014
    %vm2016 = vweird.f32 %v2009
    %vm2017 = vweird.f32 %v2010
    %vm2018 = vmor %vm2016, %vm2017
    %v2019 = vsel %vm2018, %v2010, %v2015
    %v2020 = vmul.f32 %v2019, %v1844
    %v2021 = vmul.f32 %v2003, %v2020
    %v2022 = vadd.f32 %v2021, %v1847
    %v2023 = vsub.f32 0.0, %v2022
    %v2024 = vmul.f32 %v2023, 1.442695
    %v2025 = vpow.pop %v2024
    %v2026 = vadd.f32 %v2025, 1.0
    %v2027 = vrcp.pop %v2026
    %v2028 = vmul.f32 %v2026, %v2027
    %v2029 = vsub.f32 1.0, %v2028
    %v2030 = vmul.f32 %v2027, %v2029
    %v2031 = vadd.f32 %v2027, %v2030
    %vm2032 = vweird.f32 %v2026
    %vm2033 = vweird.f32 %v2027
    %vm2034 = vmor %vm2032, %vm2033
    %v2035 = vsel %vm2034, %v2027, %v2031
    %v2036 = vand.u32 2147483647, %v2026
    %vm2037 = vcmp.eq.f32.partialorder %v2036, 8.507059e+37
    %v2038 = vand.u32 %v2026, 2147483648
    %v2039 = vor.u32 1.1754944e-38, %v2038
    %v2040 = vsel %vm2037, %v2039, %v2035
    %v2041 = vmul.f32 %v2022, %v2040
    %v2042 = vpack.c.bf16 %v1867, %v1867
    %v2043 = vperm.slane %v1516, 0
    %v2060 = vunpack.c.l.b16 %v1534
    %v2061 = vunpack.c.l.b16 %v1535
    %v2062 = vunpack.c.l.b16 %v1536
    %v2063 = vunpack.c.l.b16 %v1537
    %v2064 = vunpack.c.l.b16 %v1538
    %v2065 = vunpack.c.l.b16 %v1539
    %v2066 = vunpack.c.l.b16 %v1540
    %v2067 = vunpack.c.l.b16 %v1541
    %v2068 = vunpack.c.l.b16 %v1542
    %v2069 = vunpack.c.l.b16 %v1543
    %v2070 = vunpack.c.l.b16 %v1544
    %v2071 = vunpack.c.l.b16 %v1545
    %v2072 = vunpack.c.l.b16 %v1546
    %v2073 = vunpack.c.l.b16 %v1547
    %v2074 = vunpack.c.l.b16 %v1548
    %v2075 = vunpack.c.l.b16 %v1549
    %v2076 = vpack.c.b16 %v2061, %v2060
    %v2077 = vpack.c.b16 %v2063, %v2062
    %v2078 = vpack.c.b16 %v2065, %v2064
    %v2079 = vpack.c.b16 %v2067, %v2066
    %v2080 = vpack.c.b16 %v2069, %v2068
    %v2081 = vpack.c.b16 %v2071, %v2070
    %v2082 = vpack.c.b16 %v2073, %v2072
    %v2083 = vpack.c.b16 %v2075, %v2074
    %2092 = vmatpush.bf16.msra.mxu0 %v2083
    %2093 = vmatpush.bf16.msra.mxu0 %v2082
    %2094 = vmatpush.bf16.msra.mxu0 %v2081
    %2095 = vmatpush.bf16.msra.mxu0 %v2080
    %2096 = vmatpush.bf16.msra.mxu0 %v2079
    %2097 = vmatpush.bf16.msra.mxu0 %v2078
    %2098 = vmatpush.bf16.msra.mxu0 %v2077
    %2099 = vmatpush.bf16.msra.mxu0 %v2076
    %2100 = vmatmul.bf16.gmra.mxu0 %v2042
    %v2101 = vpop.f32.mrf.mxu0
    %v2102 = vadd.f32 %v2043, %v2101
    %v2103 = vpop.f32.mrf.mxu0
    %2104 = vdwg.mxu0
    %v2105 = vsel %vm1573, %v2102, 0.0
    %2106 = vadd.xlane.f32.xlu0 %v2105
    %v2107 = vpop.xlane.xlu0 %2106
    %v2108 = vmul.f32 %v2107, 0.020833334
    %v2109 = vsub.f32 %v2102, %v2108
    %v2110 = vsel %vm1570, 1, 0
    %vm2111 = vcmp.eq.s32.totalorder %v2110, 1
    %v2112 = vsel %vm2111, %v2109, 0.0
    %v2113 = vmul.f32 %v2112, %v2112
    %v2114 = vsel %vm1573, %v2113, 0.0
    %2115 = vadd.xlane.f32.xlu0 %v2114
    %v2116 = vpop.xlane.xlu0 %2115
    %v2117 = vmul.f32 %v2116, 0.020833334
    %v2118 = vadd.f32 %v2117, 1e-05
    %v2119 = vrsqrt.pop %v2118
    %v2120 = vmul.f32 %v2119, %v2118
    %v2121 = vmul.f32 %v2120, %v2119
    %v2122 = vmul.f32 0.5, %v2121
    %v2123 = vsub.f32 1.5, %v2122
    %v2124 = vmul.f32 %v2119, %v2123
    %vm2125 = vweird.f32 %v2118
    %vm2126 = vweird.f32 %v2119
    %vm2127 = vmor %vm2125, %vm2126
    %v2128 = vsel %vm2127, %v2119, %v2124
    %v2129 = vperm.slane %v1516, 1
    %v2130 = vmul.f32 %v2128, %v2129
    %v2131 = vmul.f32 %v2112, %v2130
    %v2132 = vperm.slane %v1516, 2
    %v2133 = vadd.f32 %v2131, %v2132
    %v2134 = vsub.f32 0.0, %v2133
    %v2135 = vmul.f32 %v2134, 1.442695
    %v2136 = vpow.pop %v2135
    %v2137 = vadd.f32 %v2136, 1.0
    %v2138 = vrcp.pop %v2137
    %v2139 = vmul.f32 %v2137, %v2138
    %v2140 = vsub.f32 1.0, %v2139
    %v2141 = vmul.f32 %v2138, %v2140
    %v2142 = vadd.f32 %v2138, %v2141
    %vm2143 = vweird.f32 %v2137
    %vm2144 = vweird.f32 %v2138
    %vm2145 = vmor %vm2143, %vm2144
    %v2146 = vsel %vm2145, %v2138, %v2142
    %v2147 = vand.u32 2147483647, %v2137
    %vm2148 = vcmp.eq.f32.partialorder %v2147, 8.507059e+37
    %v2149 = vand.u32 %v2137, 2147483648
    %v2150 = vor.u32 1.1754944e-38, %v2149
    %v2151 = vsel %vm2148, %v2150, %v2146
    %v2152 = vmul.f32 %v2133, %v2151
    %v2153 = vpack.c.bf16 %v1925, %v1925
    %2154 = vmatpush.bf16.msra.mxu0 %v2083
    %2155 = vmatpush.bf16.msra.mxu0 %v2082
    %2156 = vmatpush.bf16.msra.mxu0 %v2081
    %2157 = vmatpush.bf16.msra.mxu0 %v2080
    %2158 = vmatpush.bf16.msra.mxu0 %v2079
    %2159 = vmatpush.bf16.msra.mxu0 %v2078
    %2160 = vmatpush.bf16.msra.mxu0 %v2077
    %2161 = vmatpush.bf16.msra.mxu0 %v2076
    %2162 = vmatmul.bf16.gmra.mxu0 %v2153
    %v2163 = vpop.f32.mrf.mxu0
    %v2164 = vadd.f32 %v2043, %v2163
    %v2165 = vpop.f32.mrf.mxu0
    %2166 = vdwg.mxu0
    %v2167 = vsel %vm1573, %v2164, 0.0
    %2168 = vadd.xlane.f32.xlu0 %v2167
    %v2169 = vpop.xlane.xlu0 %2168
    %v2170 = vmul.f32 %v2169, 0.020833334
    %v2171 = vsub.f32 %v2164, %v2170
    %v2172 = vsel %vm2111, %v2171, 0.0
    %v2173 = vmul.f32 %v2172, %v2172
    %v2174 = vsel %vm1573, %v2173, 0.0
    %2175 = vadd.xlane.f32.xlu0 %v2174
    %v2176 = vpop.xlane.xlu0 %2175
    %v2177 = vmul.f32 %v2176, 0.020833334
    %v2178 = vadd.f32 %v2177, 1e-05
    %v2179 = vrsqrt.pop %v2178
    %v2180 = vmul.f32 %v2179, %v2178
    %v2181 = vmul.f32 %v2180, %v2179
    %v2182 = vmul.f32 0.5, %v2181
    %v2183 = vsub.f32 1.5, %v2182
    %v2184 = vmul.f32 %v2179, %v2183
    %vm2185 = vweird.f32 %v2178
    %vm2186 = vweird.f32 %v2179
    %vm2187 = vmor %vm2185, %vm2186
    %v2188 = vsel %vm2187, %v2179, %v2184
    %v2189 = vmul.f32 %v2188, %v2129
    %v2190 = vmul.f32 %v2172, %v2189
    %v2191 = vadd.f32 %v2190, %v2132
    %v2192 = vsub.f32 0.0, %v2191
    %v2193 = vmul.f32 %v2192, 1.442695
    %v2194 = vpow.pop %v2193
    %v2195 = vadd.f32 %v2194, 1.0
    %v2196 = vrcp.pop %v2195
    %v2197 = vmul.f32 %v2195, %v2196
    %v2198 = vsub.f32 1.0, %v2197
    %v2199 = vmul.f32 %v2196, %v2198
    %v2200 = vadd.f32 %v2196, %v2199
    %vm2201 = vweird.f32 %v2195
    %vm2202 = vweird.f32 %v2196
    %vm2203 = vmor %vm2201, %vm2202
    %v2204 = vsel %vm2203, %v2196, %v2200
    %v2205 = vand.u32 2147483647, %v2195
    %vm2206 = vcmp.eq.f32.partialorder %v2205, 8.507059e+37
    %v2207 = vand.u32 %v2195, 2147483648
    %v2208 = vor.u32 1.1754944e-38, %v2207
    %v2209 = vsel %vm2206, %v2208, %v2204
    %v2210 = vmul.f32 %v2191, %v2209
    %v2211 = vpack.c.bf16 %v1983, %v1983
    %2212 = vmatpush.bf16.msra.mxu0 %v2083
    %2213 = vmatpush.bf16.msra.mxu0 %v2082
    %2214 = vmatpush.bf16.msra.mxu0 %v2081
    %2215 = vmatpush.bf16.msra.mxu0 %v2080
    %2216 = vmatpush.bf16.msra.mxu0 %v2079
    %2217 = vmatpush.bf16.msra.mxu0 %v2078
    %2218 = vmatpush.bf16.msra.mxu0 %v2077
    %2219 = vmatpush.bf16.msra.mxu0 %v2076
    %2220 = vmatmul.bf16.gmra.mxu0 %v2211
    %v2221 = vpop.f32.mrf.mxu0
    %v2222 = vadd.f32 %v2043, %v2221
    %v2223 = vpop.f32.mrf.mxu0
    %2224 = vdwg.mxu0
    %v2225 = vsel %vm1573, %v2222, 0.0
    %2226 = vadd.xlane.f32.xlu0 %v2225
    %v2227 = vpop.xlane.xlu0 %2226
    %v2228 = vmul.f32 %v2227, 0.020833334
    %v2229 = vsub.f32 %v2222, %v2228
    %v2230 = vsel %vm2111, %v2229, 0.0
    %v2231 = vmul.f32 %v2230, %v2230
    %v2232 = vsel %vm1573, %v2231, 0.0
    %2233 = vadd.xlane.f32.xlu0 %v2232
    %v2234 = vpop.xlane.xlu0 %2233
    %v2235 = vmul.f32 %v2234, 0.020833334
    %v2236 = vadd.f32 %v2235, 1e-05
    %v2237 = vrsqrt.pop %v2236
    %v2238 = vmul.f32 %v2237, %v2236
    %v2239 = vmul.f32 %v2238, %v2237
    %v2240 = vmul.f32 0.5, %v2239
    %v2241 = vsub.f32 1.5, %v2240
    %v2242 = vmul.f32 %v2237, %v2241
    %vm2243 = vweird.f32 %v2236
    %vm2244 = vweird.f32 %v2237
    %vm2245 = vmor %vm2243, %vm2244
    %v2246 = vsel %vm2245, %v2237, %v2242
    %v2247 = vmul.f32 %v2246, %v2129
    %v2248 = vmul.f32 %v2230, %v2247
    %v2249 = vadd.f32 %v2248, %v2132
    %v2250 = vsub.f32 0.0, %v2249
    %v2251 = vmul.f32 %v2250, 1.442695
    %v2252 = vpow.pop %v2251
    %v2253 = vadd.f32 %v2252, 1.0
    %v2254 = vrcp.pop %v2253
    %v2255 = vmul.f32 %v2253, %v2254
    %v2256 = vsub.f32 1.0, %v2255
    %v2257 = vmul.f32 %v2254, %v2256
    %v2258 = vadd.f32 %v2254, %v2257
    %vm2259 = vweird.f32 %v2253
    %vm2260 = vweird.f32 %v2254
    %vm2261 = vmor %vm2259, %vm2260
    %v2262 = vsel %vm2261, %v2254, %v2258
    %v2263 = vand.u32 2147483647, %v2253
    %vm2264 = vcmp.eq.f32.partialorder %v2263, 8.507059e+37
    %v2265 = vand.u32 %v2253, 2147483648
    %v2266 = vor.u32 1.1754944e-38, %v2265
    %v2267 = vsel %vm2264, %v2266, %v2262
    %v2268 = vmul.f32 %v2249, %v2267
    %v2269 = vpack.c.bf16 %v2041, %v2041
    %2270 = vmatpush.bf16.msra.mxu0 %v2083
    %2271 = vmatpush.bf16.msra.mxu0 %v2082
    %2272 = vmatpush.bf16.msra.mxu0 %v2081
    %2273 = vmatpush.bf16.msra.mxu0 %v2080
    %2274 = vmatpush.bf16.msra.mxu0 %v2079
    %2275 = vmatpush.bf16.msra.mxu0 %v2078
    %2276 = vmatpush.bf16.msra.mxu0 %v2077
    %2277 = vmatpush.bf16.msra.mxu0 %v2076
    %2278 = vmatmul.bf16.gmra.mxu0 %v2269
    %v2279 = vpop.f32.mrf.mxu0
    %v2280 = vadd.f32 %v2043, %v2279
    %v2281 = vpop.f32.mrf.mxu0
    %2282 = vdwg.mxu0
    %v2283 = vsel %vm1573, %v2280, 0.0
    %2284 = vadd.xlane.f32.xlu0 %v2283
    %v2285 = vpop.xlane.xlu0 %2284
    %v2286 = vmul.f32 %v2285, 0.020833334
    %v2287 = vsub.f32 %v2280, %v2286
    %v2288 = vsel %vm2111, %v2287, 0.0
    %v2289 = vmul.f32 %v2288, %v2288
    %v2290 = vsel %vm1573, %v2289, 0.0
    %2291 = vadd.xlane.f32.xlu0 %v2290
    %v2292 = vpop.xlane.xlu0 %2291
    %v2293 = vmul.f32 %v2292, 0.020833334
    %v2294 = vadd.f32 %v2293, 1e-05
    %v2295 = vrsqrt.pop %v2294
    %v2296 = vmul.f32 %v2295, %v2294
    %v2297 = vmul.f32 %v2296, %v2295
    %v2298 = vmul.f32 0.5, %v2297
    %v2299 = vsub.f32 1.5, %v2298
    %v2300 = vmul.f32 %v2295, %v2299
    %vm2301 = vweird.f32 %v2294
    %vm2302 = vweird.f32 %v2295
    %vm2303 = vmor %vm2301, %vm2302
    %v2304 = vsel %vm2303, %v2295, %v2300
    %v2305 = vmul.f32 %v2304, %v2129
    %v2306 = vmul.f32 %v2288, %v2305
    %v2307 = vadd.f32 %v2306, %v2132
    %v2308 = vsub.f32 0.0, %v2307
    %v2309 = vmul.f32 %v2308, 1.442695
    %v2310 = vpow.pop %v2309
    %v2311 = vadd.f32 %v2310, 1.0
    %v2312 = vrcp.pop %v2311
    %v2313 = vmul.f32 %v2311, %v2312
    %v2314 = vsub.f32 1.0, %v2313
    %v2315 = vmul.f32 %v2312, %v2314
    %v2316 = vadd.f32 %v2312, %v2315
    %vm2317 = vweird.f32 %v2311
    %vm2318 = vweird.f32 %v2312
    %vm2319 = vmor %vm2317, %vm2318
    %v2320 = vsel %vm2319, %v2312, %v2316
    %v2321 = vand.u32 2147483647, %v2311
    %vm2322 = vcmp.eq.f32.partialorder %v2321, 8.507059e+37
    %v2323 = vand.u32 %v2311, 2147483648
    %v2324 = vor.u32 1.1754944e-38, %v2323
    %v2325 = vsel %vm2322, %v2324, %v2320
    %v2326 = vmul.f32 %v2307, %v2325
    %v2327 = vpack.c.bf16 %v2152, %v2152
    %v2328 = vperm.slane %v1517, 0
    %v2345 = vunpack.c.l.b16 %v1550
    %v2346 = vunpack.c.l.b16 %v1551
    %v2347 = vunpack.c.l.b16 %v1552
    %v2348 = vunpack.c.l.b16 %v1553
    %v2349 = vunpack.c.l.b16 %v1554
    %v2350 = vunpack.c.l.b16 %v1555
    %v2351 = vunpack.c.l.b16 %v1556
    %v2352 = vunpack.c.l.b16 %v1557
    %v2353 = vunpack.c.l.b16 %v1558
    %v2354 = vunpack.c.l.b16 %v1559
    %v2355 = vunpack.c.l.b16 %v1560
    %v2356 = vunpack.c.l.b16 %v1561
    %v2357 = vunpack.c.l.b16 %v1562
    %v2358 = vunpack.c.l.b16 %v1563
    %v2359 = vunpack.c.l.b16 %v1564
    %v2360 = vunpack.c.l.b16 %v1565
    %v2361 = vpack.c.b16 %v2346, %v2345
    %v2362 = vpack.c.b16 %v2348, %v2347
    %v2363 = vpack.c.b16 %v2350, %v2349
    %v2364 = vpack.c.b16 %v2352, %v2351
    %v2365 = vpack.c.b16 %v2354, %v2353
    %v2366 = vpack.c.b16 %v2356, %v2355
    %v2367 = vpack.c.b16 %v2358, %v2357
    %v2368 = vpack.c.b16 %v2360, %v2359
    %2377 = vmatpush.bf16.msra.mxu0 %v2368
    %2378 = vmatpush.bf16.msra.mxu0 %v2367
    %2379 = vmatpush.bf16.msra.mxu0 %v2366
    %2380 = vmatpush.bf16.msra.mxu0 %v2365
    %2381 = vmatpush.bf16.msra.mxu0 %v2364
    %2382 = vmatpush.bf16.msra.mxu0 %v2363
    %2383 = vmatpush.bf16.msra.mxu0 %v2362
    %2384 = vmatpush.bf16.msra.mxu0 %v2361
    %2385 = vmatmul.bf16.gmra.mxu0 %v2327
    %v2386 = vpop.f32.mrf.mxu0
    %v2387 = vadd.f32 %v2328, %v2386
    %v2388 = vpop.f32.mrf.mxu0
    %2389 = vdwg.mxu0
    %vm2390 = vcmask 254976
    %v2391 = vsel %vm2390, %v2387, 0.0
    %2392 = vadd.xlane.f32.xlu0 %v2391
    %v2393 = vpop.xlane.xlu0 %2392
    %v2394 = vmul.f32 %v2393, 0.03125
    %v2395 = vsub.f32 %v2387, %v2394
    %v2396 = vmul.f32 %v2395, %v2395
    %v2397 = vsel %vm2390, %v2396, 0.0
    %2398 = vadd.xlane.f32.xlu0 %v2397
    %v2399 = vpop.xlane.xlu0 %2398
    %v2400 = vmul.f32 %v2399, 0.03125
    %v2401 = vadd.f32 %v2400, 1e-05
    %v2402 = vrsqrt.pop %v2401
    %v2403 = vmul.f32 %v2402, %v2401
    %v2404 = vmul.f32 %v2403, %v2402
    %v2405 = vmul.f32 0.5, %v2404
    %v2406 = vsub.f32 1.5, %v2405
    %v2407 = vmul.f32 %v2402, %v2406
    %vm2408 = vweird.f32 %v2401
    %vm2409 = vweird.f32 %v2402
    %vm2410 = vmor %vm2408, %vm2409
    %v2411 = vsel %vm2410, %v2402, %v2407
    %v2412 = vperm.slane %v1517, 1
    %v2413 = vmul.f32 %v2411, %v2412
    %v2414 = vmul.f32 %v2395, %v2413
    %v2415 = vperm.slane %v1517, 2
    %v2416 = vadd.f32 %v2414, %v2415
    %v2417 = vsub.f32 0.0, %v2416
    %v2418 = vmul.f32 %v2417, 1.442695
    %v2419 = vpow.pop %v2418
    %v2420 = vadd.f32 %v2419, 1.0
    %v2421 = vrcp.pop %v2420
    %v2422 = vmul.f32 %v2420, %v2421
    %v2423 = vsub.f32 1.0, %v2422
    %v2424 = vmul.f32 %v2421, %v2423
    %v2425 = vadd.f32 %v2421, %v2424
    %vm2426 = vweird.f32 %v2420
    %vm2427 = vweird.f32 %v2421
    %vm2428 = vmor %vm2426, %vm2427
    %v2429 = vsel %vm2428, %v2421, %v2425
    %v2430 = vand.u32 2147483647, %v2420
    %vm2431 = vcmp.eq.f32.partialorder %v2430, 8.507059e+37
    %v2432 = vand.u32 %v2420, 2147483648
    %v2433 = vor.u32 1.1754944e-38, %v2432
    %v2434 = vsel %vm2431, %v2433, %v2429
    %v2435 = vmul.f32 %v2416, %v2434
    %v2436 = vpack.c.bf16 %v2210, %v2210
    %2437 = vmatpush.bf16.msra.mxu0 %v2368
    %2438 = vmatpush.bf16.msra.mxu0 %v2367
    %2439 = vmatpush.bf16.msra.mxu0 %v2366
    %2440 = vmatpush.bf16.msra.mxu0 %v2365
    %2441 = vmatpush.bf16.msra.mxu0 %v2364
    %2442 = vmatpush.bf16.msra.mxu0 %v2363
    %2443 = vmatpush.bf16.msra.mxu0 %v2362
    %2444 = vmatpush.bf16.msra.mxu0 %v2361
    %2445 = vmatmul.bf16.gmra.mxu0 %v2436
    %v2446 = vpop.f32.mrf.mxu0
    %v2447 = vadd.f32 %v2328, %v2446
    %v2448 = vpop.f32.mrf.mxu0
    %2449 = vdwg.mxu0
    %v2450 = vsel %vm2390, %v2447, 0.0
    %2451 = vadd.xlane.f32.xlu0 %v2450
    %v2452 = vpop.xlane.xlu0 %2451
    %v2453 = vmul.f32 %v2452, 0.03125
    %v2454 = vsub.f32 %v2447, %v2453
    %v2455 = vmul.f32 %v2454, %v2454
    %v2456 = vsel %vm2390, %v2455, 0.0
    %2457 = vadd.xlane.f32.xlu0 %v2456
    %v2458 = vpop.xlane.xlu0 %2457
    %v2459 = vmul.f32 %v2458, 0.03125
    %v2460 = vadd.f32 %v2459, 1e-05
    %v2461 = vrsqrt.pop %v2460
    %v2462 = vmul.f32 %v2461, %v2460
    %v2463 = vmul.f32 %v2462, %v2461
    %v2464 = vmul.f32 0.5, %v2463
    %v2465 = vsub.f32 1.5, %v2464
    %v2466 = vmul.f32 %v2461, %v2465
    %vm2467 = vweird.f32 %v2460
    %vm2468 = vweird.f32 %v2461
    %vm2469 = vmor %vm2467, %vm2468
    %v2470 = vsel %vm2469, %v2461, %v2466
    %v2471 = vmul.f32 %v2470, %v2412
    %v2472 = vmul.f32 %v2454, %v2471
    %v2473 = vadd.f32 %v2472, %v2415
    %v2474 = vsub.f32 0.0, %v2473
    %v2475 = vmul.f32 %v2474, 1.442695
    %v2476 = vpow.pop %v2475
    %v2477 = vadd.f32 %v2476, 1.0
    %v2478 = vrcp.pop %v2477
    %v2479 = vmul.f32 %v2477, %v2478
    %v2480 = vsub.f32 1.0, %v2479
    %v2481 = vmul.f32 %v2478, %v2480
    %v2482 = vadd.f32 %v2478, %v2481
    %vm2483 = vweird.f32 %v2477
    %vm2484 = vweird.f32 %v2478
    %vm2485 = vmor %vm2483, %vm2484
    %v2486 = vsel %vm2485, %v2478, %v2482
    %v2487 = vand.u32 2147483647, %v2477
    %vm2488 = vcmp.eq.f32.partialorder %v2487, 8.507059e+37
    %v2489 = vand.u32 %v2477, 2147483648
    %v2490 = vor.u32 1.1754944e-38, %v2489
    %v2491 = vsel %vm2488, %v2490, %v2486
    %v2492 = vmul.f32 %v2473, %v2491
    %v2493 = vpack.c.bf16 %v2268, %v2268
    %2494 = vmatpush.bf16.msra.mxu0 %v2368
    %2495 = vmatpush.bf16.msra.mxu0 %v2367
    %2496 = vmatpush.bf16.msra.mxu0 %v2366
    %2497 = vmatpush.bf16.msra.mxu0 %v2365
    %2498 = vmatpush.bf16.msra.mxu0 %v2364
    %2499 = vmatpush.bf16.msra.mxu0 %v2363
    %2500 = vmatpush.bf16.msra.mxu0 %v2362
    %2501 = vmatpush.bf16.msra.mxu0 %v2361
    %2502 = vmatmul.bf16.gmra.mxu0 %v2493
    %v2503 = vpop.f32.mrf.mxu0
    %v2504 = vadd.f32 %v2328, %v2503
    %v2505 = vpop.f32.mrf.mxu0
    %2506 = vdwg.mxu0
    %v2507 = vsel %vm2390, %v2504, 0.0
    %2508 = vadd.xlane.f32.xlu0 %v2507
    %v2509 = vpop.xlane.xlu0 %2508
    %v2510 = vmul.f32 %v2509, 0.03125
    %v2511 = vsub.f32 %v2504, %v2510
    %v2512 = vmul.f32 %v2511, %v2511
    %v2513 = vsel %vm2390, %v2512, 0.0
    %2514 = vadd.xlane.f32.xlu0 %v2513
    %v2515 = vpop.xlane.xlu0 %2514
    %v2516 = vmul.f32 %v2515, 0.03125
    %v2517 = vadd.f32 %v2516, 1e-05
    %v2518 = vrsqrt.pop %v2517
    %v2519 = vmul.f32 %v2518, %v2517
    %v2520 = vmul.f32 %v2519, %v2518
    %v2521 = vmul.f32 0.5, %v2520
    %v2522 = vsub.f32 1.5, %v2521
    %v2523 = vmul.f32 %v2518, %v2522
    %vm2524 = vweird.f32 %v2517
    %vm2525 = vweird.f32 %v2518
    %vm2526 = vmor %vm2524, %vm2525
    %v2527 = vsel %vm2526, %v2518, %v2523
    %v2528 = vmul.f32 %v2527, %v2412
    %v2529 = vmul.f32 %v2511, %v2528
    %v2530 = vadd.f32 %v2529, %v2415
    %v2531 = vsub.f32 0.0, %v2530
    %v2532 = vmul.f32 %v2531, 1.442695
    %v2533 = vpow.pop %v2532
    %v2534 = vadd.f32 %v2533, 1.0
    %v2535 = vrcp.pop %v2534
    %v2536 = vmul.f32 %v2534, %v2535
    %v2537 = vsub.f32 1.0, %v2536
    %v2538 = vmul.f32 %v2535, %v2537
    %v2539 = vadd.f32 %v2535, %v2538
    %vm2540 = vweird.f32 %v2534
    %vm2541 = vweird.f32 %v2535
    %vm2542 = vmor %vm2540, %vm2541
    %v2543 = vsel %vm2542, %v2535, %v2539
    %v2544 = vand.u32 2147483647, %v2534
    %vm2545 = vcmp.eq.f32.partialorder %v2544, 8.507059e+37
    %v2546 = vand.u32 %v2534, 2147483648
    %v2547 = vor.u32 1.1754944e-38, %v2546
    %v2548 = vsel %vm2545, %v2547, %v2543
    %v2549 = vmul.f32 %v2530, %v2548
    %v2550 = vpack.c.bf16 %v2326, %v2326
    %2551 = vmatpush.bf16.msra.mxu0 %v2368
    %2552 = vmatpush.bf16.msra.mxu0 %v2367
    %2553 = vmatpush.bf16.msra.mxu0 %v2366
    %2554 = vmatpush.bf16.msra.mxu0 %v2365
    %2555 = vmatpush.bf16.msra.mxu0 %v2364
    %2556 = vmatpush.bf16.msra.mxu0 %v2363
    %2557 = vmatpush.bf16.msra.mxu0 %v2362
    %2558 = vmatpush.bf16.msra.mxu0 %v2361
    %2559 = vmatmul.bf16.gmra.mxu0 %v2550
    %v2560 = vpop.f32.mrf.mxu0
    %v2561 = vadd.f32 %v2328, %v2560
    %v2562 = vpop.f32.mrf.mxu0
    %2563 = vdwg.mxu0
    %v2564 = vsel %vm2390, %v2561, 0.0
    %2565 = vadd.xlane.f32.xlu0 %v2564
    %v2566 = vpop.xlane.xlu0 %2565
    %v2567 = vmul.f32 %v2566, 0.03125
    %v2568 = vsub.f32 %v2561, %v2567
    %v2569 = vmul.f32 %v2568, %v2568
    %v2570 = vsel %vm2390, %v2569, 0.0
    %2571 = vadd.xlane.f32.xlu0 %v2570
    %v2572 = vpop.xlane.xlu0 %2571
    %v2573 = vmul.f32 %v2572, 0.03125
    %v2574 = vadd.f32 %v2573, 1e-05
    %v2575 = vrsqrt.pop %v2574
    %v2576 = vmul.f32 %v2575, %v2574
    %v2577 = vmul.f32 %v2576, %v2575
    %v2578 = vmul.f32 0.5, %v2577
    %v2579 = vsub.f32 1.5, %v2578
    %v2580 = vmul.f32 %v2575, %v2579
    %vm2581 = vweird.f32 %v2574
    %vm2582 = vweird.f32 %v2575
    %vm2583 = vmor %vm2581, %vm2582
    %v2584 = vsel %vm2583, %v2575, %v2580
    %v2585 = vmul.f32 %v2584, %v2412
    %v2586 = vmul.f32 %v2568, %v2585
    %v2587 = vadd.f32 %v2586, %v2415
    %v2588 = vsub.f32 0.0, %v2587
    %v2589 = vmul.f32 %v2588, 1.442695
    %v2590 = vpow.pop %v2589
    %v2591 = vadd.f32 %v2590, 1.0
    %v2592 = vrcp.pop %v2591
    %v2593 = vmul.f32 %v2591, %v2592
    %v2594 = vsub.f32 1.0, %v2593
    %v2595 = vmul.f32 %v2592, %v2594
    %v2596 = vadd.f32 %v2592, %v2595
    %vm2597 = vweird.f32 %v2591
    %vm2598 = vweird.f32 %v2592
    %vm2599 = vmor %vm2597, %vm2598
    %v2600 = vsel %vm2599, %v2592, %v2596
    %v2601 = vand.u32 2147483647, %v2591
    %vm2602 = vcmp.eq.f32.partialorder %v2601, 8.507059e+37
    %v2603 = vand.u32 %v2591, 2147483648
    %v2604 = vor.u32 1.1754944e-38, %v2603
    %v2605 = vsel %vm2602, %v2604, %v2600
    %v2606 = vmul.f32 %v2587, %v2605
    %2608 = vrot.lane.b32.xlu0 %v2492, 32
    %v2609 = vpop.permute.xlu0 %2608
    %2612 = vrot.lane.b32.xlu0 %v2549, 64
    %v2613 = vpop.permute.xlu0 %2612
    %2616 = vrot.lane.b32.xlu0 %v2606, 96
    %v2617 = vpop.permute.xlu0 %2616
    %vm2619 = vcmask 261120
    %v2620 = vsel %vm2619, %v2435, %v2609
    %vm2621 = vcmask 523264
    %v2622 = vsel %vm2621, %v2620, %v2613
    %vm2623 = vcmask 785408
    %v2624 = vsel %vm2623, %v2622, %v2617
    %2625 = vst [vmem:[#allocation10] sm:$0x3] %v2624
    // Predicated region
    $region54: #{tpu_custom_call.1} parent=1 // pred_check
      _
    $region55: #{tpu_custom_call.1} parent=1 // pred_check_branch
      %2627 = sbr.rel (0) target = $region57
    $region56: #{tpu_custom_call.1} parent=1 // pred_region
      %2629 = vsyncadd [#allocation4], 0
      %s2631 = sshll.u32 [#allocation10], 4
      %s2632 = int_to_ptr.vmem [resolvable:$true] %s2631
      %s2633 = sshll.u32 %s9, 4
      %s2634 = int_to_ptr.hbm [resolvable:$true] %s2633
      %2636 = dma.vmem_to_hbm [thread:$0]  %s2632, 32, %s2634, [#allocation4]
    $region57: #{tpu_custom_call.1} parent=1 // pred_fallthru
      _
    // Predicated region
    $region58: #{tpu_custom_call.1} parent=1 // pred_check
      _
    $region59: #{tpu_custom_call.1} parent=1 // pred_check_branch
      %2638 = sbr.rel (0) target = $region61
    $region60: #{tpu_custom_call.1} parent=1 // pred_region
      %2640 = dma.done [#allocation4], 32
    $region61: #{tpu_custom_call.1} parent=1 // pred_fallthru
      _
    %2641 = vsyncpa [#allocation3], 1
    %2642 = vsyncpa [#allocation6], 1
    %2643 = vsyncpa [#allocation9], 1
    %2644 = vsyncpa [#allocation4], 1

</llo_original>
